<compile_context>
chip_gen: v7x
topology: tpu7x:2x2x1
jax: 0.10.0
libtpu: 0.0.40
codegen_flags: <defaults>
</compile_context>

<pallas_src>
import functools
import math

import jax
import jax.numpy as jnp
from jax.experimental import pallas as pl
from jax.experimental.pallas import tpu as pltpu

_VMEM = pltpu.MemorySpace.VMEM
_BN_EPS = 1e-5


def _round_up(x, m):
    return ((x + m - 1) // m) * m


# ------------------------- parameter packing (wrapper) ---------------------- #

def _weight_items(params):
    items = []
    for i, lp in enumerate(params["imageMLP"]):
        items.append((f"imageMLP.{i}", lp["w"]))
    for i, lp in enumerate(params["textMLP"]):
        items.append((f"textMLP.{i}", lp["w"]))
    for name in ("imglabelatt", "txtlabelatt"):
        items.append((f"{name}.fc_v", params[name]["fc_v"]["w"]))
        items.append((f"{name}.dense", params[name]["dense"]["w"]))
    items.append(("Fcfusion", params["Fcfusion"]["w"]))
    f = params["fusionnn"]
    items += [("fusionnn.f1", f["f1"]["w"]),
              ("fusionnn.f2", f["f2"]["w"]),
              ("fusionnn.hash", f["hash"]["w"])]
    items += [("fusion_layer", params["fusion_layer"]["w"]),
              ("hash_output", params["hash_output"]["w"]),
              ("classify", params["classify"]["w"])]
    return items


def _vector_items(params):
    items = []
    for i, lp in enumerate(params["imageMLP"]):
        items.append((f"imageMLP.{i}", lp["b"]))
    for i, lp in enumerate(params["textMLP"]):
        items.append((f"textMLP.{i}", lp["b"]))
    for name in ("imglabelatt", "txtlabelatt"):
        p = params[name]
        items += [(f"{name}.fc_v", p["fc_v"]["b"]),
                  (f"{name}.dense", p["dense"]["b"]),
                  (f"{name}.bn.gamma", p["bn"]["gamma"]),
                  (f"{name}.bn.beta", p["bn"]["beta"])]
    items.append(("Fcfusion", params["Fcfusion"]["b"]))
    f = params["fusionnn"]
    items += [("fusionnn.f1", f["f1"]["b"]),
              ("fusionnn.f2", f["f2"]["b"]),
              ("fusionnn.hash", f["hash"]["b"]),
              ("fusionnn.bn.gamma", f["bn"]["gamma"]),
              ("fusionnn.bn.beta", f["bn"]["beta"])]
    items += [("fusion_layer", params["fusion_layer"]["b"]),
              ("hash_output", params["hash_output"]["b"]),
              ("classify", params["classify"]["b"])]
    return items


def _pack_params(params):
    """Pack all weights into one sublane-stacked slab and all vectors
    (biases / gamma / beta) into one row-per-vector slab.

    Layouts (Python dicts of ints, derived from static shapes only) map
      weight name -> (row_offset, rows, cols)   [row_offset % 8 == 0]
      vector name -> (row_index, width)
    """
    w_items = _weight_items(params)
    v_items = _vector_items(params)

    w_cols = max(w.shape[1] for _, w in w_items)
    w_layout, blocks, r = {}, [], 0
    for name, w in w_items:
        rows, cols = w.shape
        prows = _round_up(rows, 8)
        blocks.append(jnp.pad(w.astype(jnp.float32),
                              ((0, prows - rows), (0, w_cols - cols))))
        w_layout[name] = (r, rows, cols)
        r += prows
    w_slab = jnp.concatenate(blocks, axis=0)

    v_cols = max(b.shape[0] for _, b in v_items)
    v_layout, vrows = {}, []
    for i, (name, b) in enumerate(v_items):
        width = b.shape[0]
        vrows.append(jnp.pad(b.astype(jnp.float32), (0, v_cols - width))[None, :])
        v_layout[name] = (i, width)
    v_slab = jnp.concatenate(vrows, axis=0)
    pad_rows = _round_up(v_slab.shape[0], 8) - v_slab.shape[0]
    if pad_rows:
        v_slab = jnp.pad(v_slab, ((0, pad_rows), (0, 0)))

    return w_slab, v_slab, w_layout, v_layout


# ------------------------------ megakernel --------------------------------- #

def _pch_megakernel(image_ref, text_ref, w_ref, v_ref, o_ref, *,
                    w_layout, v_layout, n_img, n_txt):
    """Entire PCH forward in one kernel; all activations stay VMEM/vreg-resident."""
    batch = image_ref.shape[0]
    nbit = w_layout["hash_output"][2]
    classes = w_layout["classify"][2]
    stack_fc = (batch % 8 == 0)          # keep sublane concat tile-aligned

    def W(name):                         # static slice of the weight slab (free)
        r0, rows, cols = w_layout[name]
        return w_ref[r0:r0 + rows, :cols]

    def Wsplit(name):                    # [2d, d] -> (top, bottom) static slices
        r0, rows, cols = w_layout[name]
        half = rows // 2
        return (w_ref[r0:r0 + half, :cols],
                w_ref[r0 + half:r0 + rows, :cols])

    def V(name):                         # one (1, width) row of the vector slab
        i, width = v_layout[name]
        return v_ref[i:i + 1, :width]

    def linear(x, name):
        return jnp.dot(x, W(name), preferred_element_type=jnp.float32) + V(name)

    def bn(y, name):
        # Training-mode BatchNorm1d: batch mean, biased batch variance.
        mean = jnp.mean(y, axis=0, keepdims=True)
        centered = y - mean              # hoisted, reused for var AND y_hat
        var = jnp.mean(centered * centered, axis=0, keepdims=True)
        return (centered * jax.lax.rsqrt(var + _BN_EPS)
                * V(name + ".gamma") + V(name + ".beta"))

    # ---- image / text MLPs: Tanh after every Linear, dropout = identity ----
    h = image_ref[...]
    for i in range(n_img):
        h = jnp.tanh(linear(h, f"imageMLP.{i}"))
    imageH = h

    h = text_ref[...]
    for i in range(n_txt):
        h = jnp.tanh(linear(h, f"textMLP.{i}"))
    textH = h

    # ---- AttentionLayer (seq_len == 1 => softmax == 1 => att@V == V exactly) ----
    def attention(x, prefix):
        v = linear(x, prefix + ".fc_v")            # == multi-head attention output
        return jnp.maximum(bn(linear(v, prefix + ".dense"), prefix + ".bn"), 0.0)

    imagefine = attention(imageH, "imglabelatt")
    textfine = attention(textH, "txtlabelatt")

    # ---- Fcfusion (shared weights), concat split algebraically:
    #      [H | fine] @ W = H @ W_top + fine @ W_bot
    wtop, wbot = Wsplit("Fcfusion")
    bfc = V("Fcfusion")
    if stack_fc:
        # Batch image/text paths into one matmul via a sublane stack.
        H2 = jnp.concatenate([imageH, textH], axis=0)        # [2B, d]
        F2 = jnp.concatenate([imagefine, textfine], axis=0)  # [2B, d]
        feat2 = (jnp.dot(H2, wtop, preferred_element_type=jnp.float32)
                 + jnp.dot(F2, wbot, preferred_element_type=jnp.float32) + bfc)
        img_feature, text_feature = feat2[:batch], feat2[batch:]
    else:
        img_feature = (jnp.dot(imageH, wtop, preferred_element_type=jnp.float32)
                       + jnp.dot(imagefine, wbot, preferred_element_type=jnp.float32)
                       + bfc)
        text_feature = (jnp.dot(textH, wtop, preferred_element_type=jnp.float32)
                        + jnp.dot(textfine, wbot, preferred_element_type=jnp.float32)
                        + bfc)

    # ---- Fusion: (Linear+ReLU, Linear+ReLU) then (Linear+BN+Tanh), concat split ----
    w1t, w1b = Wsplit("fusionnn.f1")
    h = jnp.maximum(
        jnp.dot(img_feature, w1t, preferred_element_type=jnp.float32)
        + jnp.dot(text_feature, w1b, preferred_element_type=jnp.float32)
        + V("fusionnn.f1"), 0.0)
    h = jnp.maximum(linear(h, "fusionnn.f2"), 0.0)
    fused_fine = jnp.tanh(bn(linear(h, "fusionnn.hash"), "fusionnn.bn"))

    # ---- fusion_layer (Linear+ReLU) -> hash_output (Linear+Tanh) -> classify ----
    cfeat = jnp.maximum(linear(fused_fine, "fusion_layer"), 0.0)
    code = jnp.tanh(linear(cfeat, "hash_output"))
    logits = linear(code, "classify")

    # ---- lane-dense writeback: two static-slice stores into one (B, 128) slab ----
    o_ref[:, :nbit] = code
    o_ref[:, nbit:nbit + classes] = logits


# ------------------------------- wrapper ------------------------------------ #

def _cost_estimate(params, B, w_slab, v_slab, pad_width, image, text):
    def mm(shape, times=1):
        i, o = shape
        return 2 * B * i * o * times

    fl = 0
    for lp in params["imageMLP"] + params["textMLP"]:
        fl += mm(lp["w"].shape)
    for name in ("imglabelatt", "txtlabelatt"):
        fl += mm(params[name]["fc_v"]["w"].shape)
        fl += mm(params[name]["dense"]["w"].shape)
    fl += mm(params["Fcfusion"]["w"].shape, 2)
    f = params["fusionnn"]
    fl += mm(f["f1"]["w"].shape) + mm(f["f2"]["w"].shape) + mm(f["hash"]["w"].shape)
    fl += mm(params["fusion_layer"]["w"].shape)
    fl += mm(params["hash_output"]["w"].shape)
    fl += mm(params["classify"]["w"].shape)

    trans = B * (sum(lp["w"].shape[1] for lp in params["imageMLP"] + params["textMLP"])
                 + 2 * params["hash_output"]["w"].shape[1])
    bytes_acc = 4 * (image.size + text.size + w_slab.size + v_slab.size + B * pad_width)
    return pl.CostEstimate(flops=fl, transcendentals=trans, bytes_accessed=bytes_acc)


def pch_forward(params, image, text, label):
    # `label` provably does not affect the output (softmax over a length-1 key
    # axis is exactly 1, so att@V == V); kept only for interface fidelity.
    del label
    image = image.astype(jnp.float32)
    text = text.astype(jnp.float32)
    B = image.shape[0]
    nbit = params["hash_output"]["w"].shape[1]
    classes = params["classify"]["w"].shape[1]
    pad_width = max(128, _round_up(nbit + classes, 128))

    # Two packed slabs instead of ~37 tiny operands (layouts are static).
    w_slab, v_slab, w_layout, v_layout = _pack_params(params)

    kernel = functools.partial(
        _pch_megakernel,
        w_layout=w_layout, v_layout=v_layout,
        n_img=len(params["imageMLP"]), n_txt=len(params["textMLP"]))

    slab = pl.pallas_call(
        kernel,
        out_shape=jax.ShapeDtypeStruct((B, pad_width), jnp.float32),
        in_specs=[pl.BlockSpec(memory_space=_VMEM)] * 4,
        out_specs=pl.BlockSpec(memory_space=_VMEM),
        cost_estimate=_cost_estimate(params, B, w_slab, v_slab, pad_width,
                                     image, text),
    )(image, text, w_slab, v_slab)

    code = slab[:, :nbit]
    logits = slab[:, nbit:nbit + classes]
    return code, logits


# --------------------------- parameter helpers ------------------------------ #

def init_linear(key, in_dim, out_dim):
    """PyTorch nn.Linear default init: U(-1/sqrt(in), 1/sqrt(in)) for W and b."""
    kw, kb = jax.random.split(key)
    bound = 1.0 / math.sqrt(in_dim)
    w = jax.random.uniform(kw, (in_dim, out_dim), jnp.float32, -bound, bound)
    b = jax.random.uniform(kb, (out_dim,), jnp.float32, -bound, bound)
    return {"w": w, "b": b}


def init_bn(dim):
    return {"gamma": jnp.ones((dim,), jnp.float32),
            "beta": jnp.zeros((dim,), jnp.float32)}


def init_pch_params(key, image_dim, text_dim, img_hidden_dim, txt_hidden_dim,
                    classes, nbit):
    assert img_hidden_dim[-1] == txt_hidden_dim[-1]
    common_dim = img_hidden_dim[-1]
    keys = iter(jax.random.split(key, 64))

    def mlp_params(dims):
        return [init_linear(next(keys), dims[i], dims[i + 1])
                for i in range(len(dims) - 1)]

    def att_params(data_dim, hidden_dim):
        # fc_q / fc_k omitted: provably no effect on the output (seq_len == 1).
        return {"fc_v": init_linear(next(keys), data_dim, hidden_dim),
                "dense": init_linear(next(keys), hidden_dim, data_dim),
                "bn": init_bn(data_dim)}

    return {
        "imageMLP": mlp_params(img_hidden_dim),
        "textMLP": mlp_params(txt_hidden_dim),
        "imglabelatt": att_params(common_dim, common_dim),
        "txtlabelatt": att_params(common_dim, common_dim),
        "Fcfusion": init_linear(next(keys), 2 * common_dim, common_dim),
        "fusionnn": {
            "f1": init_linear(next(keys), 2 * common_dim, common_dim),
            "f2": init_linear(next(keys), common_dim, common_dim),
            "hash": init_linear(next(keys), common_dim, nbit),
            "bn": init_bn(nbit),
        },
        "fusion_layer": init_linear(next(keys), nbit, common_dim),
        "hash_output": init_linear(next(keys), common_dim, nbit),
        "classify": init_linear(next(keys), nbit, classes),
    }


# ------------------------ pure-jnp reference (for checking) ----------------- #

def pch_forward_reference(params, image, text, label):
    del label

    def mlp(layers, x):
        for lp in layers:
            x = jnp.tanh(x @ lp["w"] + lp["b"])
        return x

    def bn(y, p):
        mean = jnp.mean(y, axis=0, keepdims=True)
        var = jnp.mean((y - mean) ** 2, axis=0, keepdims=True)
        return (y - mean) * jax.lax.rsqrt(var + _BN_EPS) * p["gamma"] + p["beta"]

    def att(p, x):
        v = x @ p["fc_v"]["w"] + p["fc_v"]["b"]
        return jax.nn.relu(bn(v @ p["dense"]["w"] + p["dense"]["b"], p["bn"]))

    imageH = mlp(params["imageMLP"], image)
    textH = mlp(params["textMLP"], text)
    imagefine = att(params["imglabelatt"], imageH)
    textfine = att(params["txtlabelatt"], textH)
    fc = params["Fcfusion"]
    img_feature = jnp.concatenate([imageH, imagefine], 1) @ fc["w"] + fc["b"]
    text_feature = jnp.concatenate([textH, textfine], 1) @ fc["w"] + fc["b"]
    f = params["fusionnn"]
    h = jax.nn.relu(jnp.concatenate([img_feature, text_feature], -1) @ f["f1"]["w"]
                    + f["f1"]["b"])
    h = jax.nn.relu(h @ f["f2"]["w"] + f["f2"]["b"])
    fused_fine = jnp.tanh(bn(h @ f["hash"]["w"] + f["hash"]["b"], f["bn"]))
    cfeat = jax.nn.relu(fused_fine @ params["fusion_layer"]["w"]
                        + params["fusion_layer"]["b"])
    code = jnp.tanh(cfeat @ params["hash_output"]["w"] + params["hash_output"]["b"])
    logits = code @ params["classify"]["w"] + params["classify"]["b"]
    return code, logits


# ---------------------------------- main ------------------------------------ #

if __name__ == "__main__":
    batch_size = 64                       # multiple of 8 sublanes: aligned stacks
    image_dim = 32
    text_dim = 24
    img_hidden_dim = [image_dim, 64, 32]  # last entry = common_dim
    txt_hidden_dim = [text_dim, 64, 32]
    classes = 8
    nbit = 16

    key = jax.random.PRNGKey(0)
    k_params, k_img, k_txt, k_lbl = jax.random.split(key, 4)

    params = init_pch_params(k_params, image_dim, text_dim,
                             img_hidden_dim, txt_hidden_dim, classes, nbit)

    image = jax.random.normal(k_img, (batch_size, image_dim), jnp.float32)
    text = jax.random.normal(k_txt, (batch_size, text_dim), jnp.float32)
    label = jax.nn.one_hot(
        jax.random.randint(k_lbl, (batch_size,), 0, classes), classes,
        dtype=jnp.float32)

    code, logits = jax.jit(pch_forward)(params, image, text, label)
    jax.block_until_ready((code, logits))

    code_ref, logits_ref = jax.jit(pch_forward_reference)(params, image, text, label)
    jax.block_until_ready((code_ref, logits_ref))

    assert code.shape == (batch_size, nbit)
    assert logits.shape == (batch_size, classes)
    assert bool(jnp.all(jnp.isfinite(code))) and bool(jnp.all(jnp.isfinite(logits)))
    assert bool(jnp.allclose(code, code_ref, rtol=1e-3, atol=1e-3)), "code mismatch"
    assert bool(jnp.allclose(logits, logits_ref, rtol=1e-3, atol=1e-3)), "logits mismatch"
    print("KERNEL_OK")
</pallas_src>

<mosaic_0001>
module attributes {stable_mosaic.version = 11 : i64} {
  func.func @_pch_megakernel(%arg0: memref<64x32xf32, #tpu.memory_space<vmem>>, %arg1: memref<64x24xf32, #tpu.memory_space<vmem>>, %arg2: memref<568x64xf32, #tpu.memory_space<vmem>>, %arg3: memref<24x64xf32, #tpu.memory_space<vmem>>, %arg4: memref<64x128xf32, #tpu.memory_space<vmem>>) attributes {dimension_semantics = [], scalar_prefetch = 0 : i64, scratch_operands = 0 : i64, tpu.core_type = #tpu.core_type<tc>} {
    %c0 = arith.constant 0 : index
    %c0_0 = arith.constant 0 : index
    %0 = vector.load %arg0[%c0, %c0_0] : memref<64x32xf32, #tpu.memory_space<vmem>>, vector<64x32xf32>
    %c0_1 = arith.constant 0 : index
    %c0_2 = arith.constant 0 : index
    %1 = vector.load %arg2[%c0_1, %c0_2] : memref<568x64xf32, #tpu.memory_space<vmem>>, vector<32x64xf32>
    %cst = arith.constant dense<0.000000e+00> : vector<64x64xf32>
    %2 = tpu.matmul %0, %1, %cst {dimension_numbers = #tpu.dot_dimension_numbers<[1], [0], [0], [1], [0, 0, 1, 1], [], []>} : vector<64x32xf32>, vector<32x64xf32>, vector<64x64xf32> -> vector<64x64xf32>
    %c0_3 = arith.constant 0 : index
    %c0_4 = arith.constant 0 : index
    %3 = vector.load %arg3[%c0_3, %c0_4] : memref<24x64xf32, #tpu.memory_space<vmem>>, vector<1x64xf32>
    %4 = vector.broadcast %3 : vector<1x64xf32> to vector<64x64xf32>
    %5 = arith.addf %2, %4 : vector<64x64xf32>
    %6 = math.tanh %5 : vector<64x64xf32>
    %c32 = arith.constant 32 : index
    %c0_5 = arith.constant 0 : index
    %7 = vector.load %arg2[%c32, %c0_5] : memref<568x64xf32, #tpu.memory_space<vmem>>, vector<64x32xf32>
    %cst_6 = arith.constant dense<0.000000e+00> : vector<64x32xf32>
    %8 = tpu.matmul %6, %7, %cst_6 {dimension_numbers = #tpu.dot_dimension_numbers<[1], [0], [0], [1], [0, 0, 1, 1], [], []>} : vector<64x64xf32>, vector<64x32xf32>, vector<64x32xf32> -> vector<64x32xf32>
    %c1 = arith.constant 1 : index
    %c0_7 = arith.constant 0 : index
    %9 = vector.load %arg3[%c1, %c0_7] : memref<24x64xf32, #tpu.memory_space<vmem>>, vector<1x32xf32>
    %10 = vector.broadcast %9 : vector<1x32xf32> to vector<64x32xf32>
    %11 = arith.addf %8, %10 : vector<64x32xf32>
    %12 = math.tanh %11 : vector<64x32xf32>
    %c0_8 = arith.constant 0 : index
    %c0_9 = arith.constant 0 : index
    %13 = vector.load %arg1[%c0_8, %c0_9] : memref<64x24xf32, #tpu.memory_space<vmem>>, vector<64x24xf32>
    %c96 = arith.constant 96 : index
    %c0_10 = arith.constant 0 : index
    %14 = vector.load %arg2[%c96, %c0_10] : memref<568x64xf32, #tpu.memory_space<vmem>>, vector<24x64xf32>
    %cst_11 = arith.constant dense<0.000000e+00> : vector<64x64xf32>
    %15 = tpu.matmul %13, %14, %cst_11 {dimension_numbers = #tpu.dot_dimension_numbers<[1], [0], [0], [1], [0, 0, 1, 1], [], []>} : vector<64x24xf32>, vector<24x64xf32>, vector<64x64xf32> -> vector<64x64xf32>
    %c2 = arith.constant 2 : index
    %c0_12 = arith.constant 0 : index
    %16 = vector.load %arg3[%c2, %c0_12] : memref<24x64xf32, #tpu.memory_space<vmem>>, vector<1x64xf32>
    %17 = vector.broadcast %16 : vector<1x64xf32> to vector<64x64xf32>
    %18 = arith.addf %15, %17 : vector<64x64xf32>
    %19 = math.tanh %18 : vector<64x64xf32>
    %c120 = arith.constant 120 : index
    %c0_13 = arith.constant 0 : index
    %20 = vector.load %arg2[%c120, %c0_13] : memref<568x64xf32, #tpu.memory_space<vmem>>, vector<64x32xf32>
    %cst_14 = arith.constant dense<0.000000e+00> : vector<64x32xf32>
    %21 = tpu.matmul %19, %20, %cst_14 {dimension_numbers = #tpu.dot_dimension_numbers<[1], [0], [0], [1], [0, 0, 1, 1], [], []>} : vector<64x64xf32>, vector<64x32xf32>, vector<64x32xf32> -> vector<64x32xf32>
    %c3 = arith.constant 3 : index
    %c0_15 = arith.constant 0 : index
    %22 = vector.load %arg3[%c3, %c0_15] : memref<24x64xf32, #tpu.memory_space<vmem>>, vector<1x32xf32>
    %23 = vector.broadcast %22 : vector<1x32xf32> to vector<64x32xf32>
    %24 = arith.addf %21, %23 : vector<64x32xf32>
    %25 = math.tanh %24 : vector<64x32xf32>
    %c184 = arith.constant 184 : index
    %c0_16 = arith.constant 0 : index
    %26 = vector.load %arg2[%c184, %c0_16] : memref<568x64xf32, #tpu.memory_space<vmem>>, vector<32x32xf32>
    %cst_17 = arith.constant dense<0.000000e+00> : vector<64x32xf32>
    %27 = tpu.matmul %12, %26, %cst_17 {dimension_numbers = #tpu.dot_dimension_numbers<[1], [0], [0], [1], [0, 0, 1, 1], [], []>} : vector<64x32xf32>, vector<32x32xf32>, vector<64x32xf32> -> vector<64x32xf32>
    %c4 = arith.constant 4 : index
    %c0_18 = arith.constant 0 : index
    %28 = vector.load %arg3[%c4, %c0_18] : memref<24x64xf32, #tpu.memory_space<vmem>>, vector<1x32xf32>
    %29 = vector.broadcast %28 : vector<1x32xf32> to vector<64x32xf32>
    %30 = arith.addf %27, %29 : vector<64x32xf32>
    %c216 = arith.constant 216 : index
    %c0_19 = arith.constant 0 : index
    %31 = vector.load %arg2[%c216, %c0_19] : memref<568x64xf32, #tpu.memory_space<vmem>>, vector<32x32xf32>
    %cst_20 = arith.constant dense<0.000000e+00> : vector<64x32xf32>
    %32 = tpu.matmul %30, %31, %cst_20 {dimension_numbers = #tpu.dot_dimension_numbers<[1], [0], [0], [1], [0, 0, 1, 1], [], []>} : vector<64x32xf32>, vector<32x32xf32>, vector<64x32xf32> -> vector<64x32xf32>
    %c5 = arith.constant 5 : index
    %c0_21 = arith.constant 0 : index
    %33 = vector.load %arg3[%c5, %c0_21] : memref<24x64xf32, #tpu.memory_space<vmem>>, vector<1x32xf32>
    %34 = vector.broadcast %33 : vector<1x32xf32> to vector<64x32xf32>
    %35 = arith.addf %32, %34 : vector<64x32xf32>
    %cst_22 = arith.constant dense<0.000000e+00> : vector<32xf32>
    %36 = vector.multi_reduction <add>, %35, %cst_22 [0] : vector<64x32xf32> to vector<32xf32>
    %37 = vector.shape_cast %36 : vector<32xf32> to vector<1x32xf32>
    %cst_23 = arith.constant 6.400000e+01 : f32
    %38 = vector.broadcast %cst_23 : f32 to vector<1x32xf32>
    %39 = arith.divf %37, %38 : vector<1x32xf32>
    %40 = vector.broadcast %39 : vector<1x32xf32> to vector<64x32xf32>
    %41 = arith.subf %35, %40 : vector<64x32xf32>
    %42 = arith.mulf %41, %41 : vector<64x32xf32>
    %cst_24 = arith.constant dense<0.000000e+00> : vector<32xf32>
    %43 = vector.multi_reduction <add>, %42, %cst_24 [0] : vector<64x32xf32> to vector<32xf32>
    %44 = vector.shape_cast %43 : vector<32xf32> to vector<1x32xf32>
    %cst_25 = arith.constant 6.400000e+01 : f32
    %45 = vector.broadcast %cst_25 : f32 to vector<1x32xf32>
    %46 = arith.divf %44, %45 : vector<1x32xf32>
    %cst_26 = arith.constant 9.99999974E-6 : f32
    %47 = vector.broadcast %cst_26 : f32 to vector<1x32xf32>
    %48 = arith.addf %46, %47 : vector<1x32xf32>
    %49 = math.rsqrt %48 : vector<1x32xf32>
    %50 = vector.broadcast %49 : vector<1x32xf32> to vector<64x32xf32>
    %51 = arith.mulf %41, %50 : vector<64x32xf32>
    %c6 = arith.constant 6 : index
    %c0_27 = arith.constant 0 : index
    %52 = vector.load %arg3[%c6, %c0_27] : memref<24x64xf32, #tpu.memory_space<vmem>>, vector<1x32xf32>
    %53 = vector.broadcast %52 : vector<1x32xf32> to vector<64x32xf32>
    %54 = arith.mulf %51, %53 : vector<64x32xf32>
    %c7 = arith.constant 7 : index
    %c0_28 = arith.constant 0 : index
    %55 = vector.load %arg3[%c7, %c0_28] : memref<24x64xf32, #tpu.memory_space<vmem>>, vector<1x32xf32>
    %56 = vector.broadcast %55 : vector<1x32xf32> to vector<64x32xf32>
    %57 = arith.addf %54, %56 : vector<64x32xf32>
    %cst_29 = arith.constant 0.000000e+00 : f32
    %58 = vector.broadcast %cst_29 : f32 to vector<64x32xf32>
    %59 = arith.maximumf %57, %58 : vector<64x32xf32>
    %c248 = arith.constant 248 : index
    %c0_30 = arith.constant 0 : index
    %60 = vector.load %arg2[%c248, %c0_30] : memref<568x64xf32, #tpu.memory_space<vmem>>, vector<32x32xf32>
    %cst_31 = arith.constant dense<0.000000e+00> : vector<64x32xf32>
    %61 = tpu.matmul %25, %60, %cst_31 {dimension_numbers = #tpu.dot_dimension_numbers<[1], [0], [0], [1], [0, 0, 1, 1], [], []>} : vector<64x32xf32>, vector<32x32xf32>, vector<64x32xf32> -> vector<64x32xf32>
    %c8 = arith.constant 8 : index
    %c0_32 = arith.constant 0 : index
    %62 = vector.load %arg3[%c8, %c0_32] : memref<24x64xf32, #tpu.memory_space<vmem>>, vector<1x32xf32>
    %63 = vector.broadcast %62 : vector<1x32xf32> to vector<64x32xf32>
    %64 = arith.addf %61, %63 : vector<64x32xf32>
    %c280 = arith.constant 280 : index
    %c0_33 = arith.constant 0 : index
    %65 = vector.load %arg2[%c280, %c0_33] : memref<568x64xf32, #tpu.memory_space<vmem>>, vector<32x32xf32>
    %cst_34 = arith.constant dense<0.000000e+00> : vector<64x32xf32>
    %66 = tpu.matmul %64, %65, %cst_34 {dimension_numbers = #tpu.dot_dimension_numbers<[1], [0], [0], [1], [0, 0, 1, 1], [], []>} : vector<64x32xf32>, vector<32x32xf32>, vector<64x32xf32> -> vector<64x32xf32>
    %c9 = arith.constant 9 : index
    %c0_35 = arith.constant 0 : index
    %67 = vector.load %arg3[%c9, %c0_35] : memref<24x64xf32, #tpu.memory_space<vmem>>, vector<1x32xf32>
    %68 = vector.broadcast %67 : vector<1x32xf32> to vector<64x32xf32>
    %69 = arith.addf %66, %68 : vector<64x32xf32>
    %cst_36 = arith.constant dense<0.000000e+00> : vector<32xf32>
    %70 = vector.multi_reduction <add>, %69, %cst_36 [0] : vector<64x32xf32> to vector<32xf32>
    %71 = vector.shape_cast %70 : vector<32xf32> to vector<1x32xf32>
    %cst_37 = arith.constant 6.400000e+01 : f32
    %72 = vector.broadcast %cst_37 : f32 to vector<1x32xf32>
    %73 = arith.divf %71, %72 : vector<1x32xf32>
    %74 = vector.broadcast %73 : vector<1x32xf32> to vector<64x32xf32>
    %75 = arith.subf %69, %74 : vector<64x32xf32>
    %76 = arith.mulf %75, %75 : vector<64x32xf32>
    %cst_38 = arith.constant dense<0.000000e+00> : vector<32xf32>
    %77 = vector.multi_reduction <add>, %76, %cst_38 [0] : vector<64x32xf32> to vector<32xf32>
    %78 = vector.shape_cast %77 : vector<32xf32> to vector<1x32xf32>
    %cst_39 = arith.constant 6.400000e+01 : f32
    %79 = vector.broadcast %cst_39 : f32 to vector<1x32xf32>
    %80 = arith.divf %78, %79 : vector<1x32xf32>
    %cst_40 = arith.constant 9.99999974E-6 : f32
    %81 = vector.broadcast %cst_40 : f32 to vector<1x32xf32>
    %82 = arith.addf %80, %81 : vector<1x32xf32>
    %83 = math.rsqrt %82 : vector<1x32xf32>
    %84 = vector.broadcast %83 : vector<1x32xf32> to vector<64x32xf32>
    %85 = arith.mulf %75, %84 : vector<64x32xf32>
    %c10 = arith.constant 10 : index
    %c0_41 = arith.constant 0 : index
    %86 = vector.load %arg3[%c10, %c0_41] : memref<24x64xf32, #tpu.memory_space<vmem>>, vector<1x32xf32>
    %87 = vector.broadcast %86 : vector<1x32xf32> to vector<64x32xf32>
    %88 = arith.mulf %85, %87 : vector<64x32xf32>
    %c11 = arith.constant 11 : index
    %c0_42 = arith.constant 0 : index
    %89 = vector.load %arg3[%c11, %c0_42] : memref<24x64xf32, #tpu.memory_space<vmem>>, vector<1x32xf32>
    %90 = vector.broadcast %89 : vector<1x32xf32> to vector<64x32xf32>
    %91 = arith.addf %88, %90 : vector<64x32xf32>
    %cst_43 = arith.constant 0.000000e+00 : f32
    %92 = vector.broadcast %cst_43 : f32 to vector<64x32xf32>
    %93 = arith.maximumf %91, %92 : vector<64x32xf32>
    %c312 = arith.constant 312 : index
    %c0_44 = arith.constant 0 : index
    %94 = vector.load %arg2[%c312, %c0_44] : memref<568x64xf32, #tpu.memory_space<vmem>>, vector<32x32xf32>
    %c344 = arith.constant 344 : index
    %c0_45 = arith.constant 0 : index
    %95 = vector.load %arg2[%c344, %c0_45] : memref<568x64xf32, #tpu.memory_space<vmem>>, vector<32x32xf32>
    %c12 = arith.constant 12 : index
    %c0_46 = arith.constant 0 : index
    %96 = vector.load %arg3[%c12, %c0_46] : memref<24x64xf32, #tpu.memory_space<vmem>>, vector<1x32xf32>
    %97 = tpu.concatenate %12, %25 in 0 : vector<64x32xf32>, vector<64x32xf32> -> vector<128x32xf32>
    %98 = tpu.concatenate %59, %93 in 0 : vector<64x32xf32>, vector<64x32xf32> -> vector<128x32xf32>
    %cst_47 = arith.constant dense<0.000000e+00> : vector<128x32xf32>
    %99 = tpu.matmul %97, %94, %cst_47 {dimension_numbers = #tpu.dot_dimension_numbers<[1], [0], [0], [1], [0, 0, 1, 1], [], []>} : vector<128x32xf32>, vector<32x32xf32>, vector<128x32xf32> -> vector<128x32xf32>
    %cst_48 = arith.constant dense<0.000000e+00> : vector<128x32xf32>
    %100 = tpu.matmul %98, %95, %cst_48 {dimension_numbers = #tpu.dot_dimension_numbers<[1], [0], [0], [1], [0, 0, 1, 1], [], []>} : vector<128x32xf32>, vector<32x32xf32>, vector<128x32xf32> -> vector<128x32xf32>
    %101 = arith.addf %99, %100 : vector<128x32xf32>
    %102 = vector.broadcast %96 : vector<1x32xf32> to vector<128x32xf32>
    %103 = arith.addf %101, %102 : vector<128x32xf32>
    %104 = vector.extract_strided_slice %103 {offsets = [0, 0], sizes = [64, 32], strides = [1, 1]} : vector<128x32xf32> to vector<64x32xf32>
    %105 = vector.extract_strided_slice %103 {offsets = [64, 0], sizes = [64, 32], strides = [1, 1]} : vector<128x32xf32> to vector<64x32xf32>
    %c376 = arith.constant 376 : index
    %c0_49 = arith.constant 0 : index
    %106 = vector.load %arg2[%c376, %c0_49] : memref<568x64xf32, #tpu.memory_space<vmem>>, vector<32x32xf32>
    %c408 = arith.constant 408 : index
    %c0_50 = arith.constant 0 : index
    %107 = vector.load %arg2[%c408, %c0_50] : memref<568x64xf32, #tpu.memory_space<vmem>>, vector<32x32xf32>
    %cst_51 = arith.constant dense<0.000000e+00> : vector<64x32xf32>
    %108 = tpu.matmul %104, %106, %cst_51 {dimension_numbers = #tpu.dot_dimension_numbers<[1], [0], [0], [1], [0, 0, 1, 1], [], []>} : vector<64x32xf32>, vector<32x32xf32>, vector<64x32xf32> -> vector<64x32xf32>
    %cst_52 = arith.constant dense<0.000000e+00> : vector<64x32xf32>
    %109 = tpu.matmul %105, %107, %cst_52 {dimension_numbers = #tpu.dot_dimension_numbers<[1], [0], [0], [1], [0, 0, 1, 1], [], []>} : vector<64x32xf32>, vector<32x32xf32>, vector<64x32xf32> -> vector<64x32xf32>
    %110 = arith.addf %108, %109 : vector<64x32xf32>
    %c13 = arith.constant 13 : index
    %c0_53 = arith.constant 0 : index
    %111 = vector.load %arg3[%c13, %c0_53] : memref<24x64xf32, #tpu.memory_space<vmem>>, vector<1x32xf32>
    %112 = vector.broadcast %111 : vector<1x32xf32> to vector<64x32xf32>
    %113 = arith.addf %110, %112 : vector<64x32xf32>
    %cst_54 = arith.constant 0.000000e+00 : f32
    %114 = vector.broadcast %cst_54 : f32 to vector<64x32xf32>
    %115 = arith.maximumf %113, %114 : vector<64x32xf32>
    %c440 = arith.constant 440 : index
    %c0_55 = arith.constant 0 : index
    %116 = vector.load %arg2[%c440, %c0_55] : memref<568x64xf32, #tpu.memory_space<vmem>>, vector<32x32xf32>
    %cst_56 = arith.constant dense<0.000000e+00> : vector<64x32xf32>
    %117 = tpu.matmul %115, %116, %cst_56 {dimension_numbers = #tpu.dot_dimension_numbers<[1], [0], [0], [1], [0, 0, 1, 1], [], []>} : vector<64x32xf32>, vector<32x32xf32>, vector<64x32xf32> -> vector<64x32xf32>
    %c14 = arith.constant 14 : index
    %c0_57 = arith.constant 0 : index
    %118 = vector.load %arg3[%c14, %c0_57] : memref<24x64xf32, #tpu.memory_space<vmem>>, vector<1x32xf32>
    %119 = vector.broadcast %118 : vector<1x32xf32> to vector<64x32xf32>
    %120 = arith.addf %117, %119 : vector<64x32xf32>
    %cst_58 = arith.constant 0.000000e+00 : f32
    %121 = vector.broadcast %cst_58 : f32 to vector<64x32xf32>
    %122 = arith.maximumf %120, %121 : vector<64x32xf32>
    %c472 = arith.constant 472 : index
    %c0_59 = arith.constant 0 : index
    %123 = vector.load %arg2[%c472, %c0_59] : memref<568x64xf32, #tpu.memory_space<vmem>>, vector<32x16xf32>
    %cst_60 = arith.constant dense<0.000000e+00> : vector<64x16xf32>
    %124 = tpu.matmul %122, %123, %cst_60 {dimension_numbers = #tpu.dot_dimension_numbers<[1], [0], [0], [1], [0, 0, 1, 1], [], []>} : vector<64x32xf32>, vector<32x16xf32>, vector<64x16xf32> -> vector<64x16xf32>
    %c15 = arith.constant 15 : index
    %c0_61 = arith.constant 0 : index
    %125 = vector.load %arg3[%c15, %c0_61] : memref<24x64xf32, #tpu.memory_space<vmem>>, vector<1x16xf32>
    %126 = vector.broadcast %125 : vector<1x16xf32> to vector<64x16xf32>
    %127 = arith.addf %124, %126 : vector<64x16xf32>
    %cst_62 = arith.constant dense<0.000000e+00> : vector<16xf32>
    %128 = vector.multi_reduction <add>, %127, %cst_62 [0] : vector<64x16xf32> to vector<16xf32>
    %129 = vector.shape_cast %128 : vector<16xf32> to vector<1x16xf32>
    %cst_63 = arith.constant 6.400000e+01 : f32
    %130 = vector.broadcast %cst_63 : f32 to vector<1x16xf32>
    %131 = arith.divf %129, %130 : vector<1x16xf32>
    %132 = vector.broadcast %131 : vector<1x16xf32> to vector<64x16xf32>
    %133 = arith.subf %127, %132 : vector<64x16xf32>
    %134 = arith.mulf %133, %133 : vector<64x16xf32>
    %cst_64 = arith.constant dense<0.000000e+00> : vector<16xf32>
    %135 = vector.multi_reduction <add>, %134, %cst_64 [0] : vector<64x16xf32> to vector<16xf32>
    %136 = vector.shape_cast %135 : vector<16xf32> to vector<1x16xf32>
    %cst_65 = arith.constant 6.400000e+01 : f32
    %137 = vector.broadcast %cst_65 : f32 to vector<1x16xf32>
    %138 = arith.divf %136, %137 : vector<1x16xf32>
    %cst_66 = arith.constant 9.99999974E-6 : f32
    %139 = vector.broadcast %cst_66 : f32 to vector<1x16xf32>
    %140 = arith.addf %138, %139 : vector<1x16xf32>
    %141 = math.rsqrt %140 : vector<1x16xf32>
    %142 = vector.broadcast %141 : vector<1x16xf32> to vector<64x16xf32>
    %143 = arith.mulf %133, %142 : vector<64x16xf32>
    %c16 = arith.constant 16 : index
    %c0_67 = arith.constant 0 : index
    %144 = vector.load %arg3[%c16, %c0_67] : memref<24x64xf32, #tpu.memory_space<vmem>>, vector<1x16xf32>
    %145 = vector.broadcast %144 : vector<1x16xf32> to vector<64x16xf32>
    %146 = arith.mulf %143, %145 : vector<64x16xf32>
    %c17 = arith.constant 17 : index
    %c0_68 = arith.constant 0 : index
    %147 = vector.load %arg3[%c17, %c0_68] : memref<24x64xf32, #tpu.memory_space<vmem>>, vector<1x16xf32>
    %148 = vector.broadcast %147 : vector<1x16xf32> to vector<64x16xf32>
    %149 = arith.addf %146, %148 : vector<64x16xf32>
    %150 = math.tanh %149 : vector<64x16xf32>
    %c504 = arith.constant 504 : index
    %c0_69 = arith.constant 0 : index
    %151 = vector.load %arg2[%c504, %c0_69] : memref<568x64xf32, #tpu.memory_space<vmem>>, vector<16x32xf32>
    %cst_70 = arith.constant dense<0.000000e+00> : vector<64x32xf32>
    %152 = tpu.matmul %150, %151, %cst_70 {dimension_numbers = #tpu.dot_dimension_numbers<[1], [0], [0], [1], [0, 0, 1, 1], [], []>} : vector<64x16xf32>, vector<16x32xf32>, vector<64x32xf32> -> vector<64x32xf32>
    %c18 = arith.constant 18 : index
    %c0_71 = arith.constant 0 : index
    %153 = vector.load %arg3[%c18, %c0_71] : memref<24x64xf32, #tpu.memory_space<vmem>>, vector<1x32xf32>
    %154 = vector.broadcast %153 : vector<1x32xf32> to vector<64x32xf32>
    %155 = arith.addf %152, %154 : vector<64x32xf32>
    %cst_72 = arith.constant 0.000000e+00 : f32
    %156 = vector.broadcast %cst_72 : f32 to vector<64x32xf32>
    %157 = arith.maximumf %155, %156 : vector<64x32xf32>
    %c520 = arith.constant 520 : index
    %c0_73 = arith.constant 0 : index
    %158 = vector.load %arg2[%c520, %c0_73] : memref<568x64xf32, #tpu.memory_space<vmem>>, vector<32x16xf32>
    %cst_74 = arith.constant dense<0.000000e+00> : vector<64x16xf32>
    %159 = tpu.matmul %157, %158, %cst_74 {dimension_numbers = #tpu.dot_dimension_numbers<[1], [0], [0], [1], [0, 0, 1, 1], [], []>} : vector<64x32xf32>, vector<32x16xf32>, vector<64x16xf32> -> vector<64x16xf32>
    %c19 = arith.constant 19 : index
    %c0_75 = arith.constant 0 : index
    %160 = vector.load %arg3[%c19, %c0_75] : memref<24x64xf32, #tpu.memory_space<vmem>>, vector<1x16xf32>
    %161 = vector.broadcast %160 : vector<1x16xf32> to vector<64x16xf32>
    %162 = arith.addf %159, %161 : vector<64x16xf32>
    %163 = math.tanh %162 : vector<64x16xf32>
    %c552 = arith.constant 552 : index
    %c0_76 = arith.constant 0 : index
    %164 = vector.load %arg2[%c552, %c0_76] : memref<568x64xf32, #tpu.memory_space<vmem>>, vector<16x8xf32>
    %cst_77 = arith.constant dense<0.000000e+00> : vector<64x8xf32>
    %165 = tpu.matmul %163, %164, %cst_77 {dimension_numbers = #tpu.dot_dimension_numbers<[1], [0], [0], [1], [0, 0, 1, 1], [], []>} : vector<64x16xf32>, vector<16x8xf32>, vector<64x8xf32> -> vector<64x8xf32>
    %c20 = arith.constant 20 : index
    %c0_78 = arith.constant 0 : index
    %166 = vector.load %arg3[%c20, %c0_78] : memref<24x64xf32, #tpu.memory_space<vmem>>, vector<1x8xf32>
    %167 = vector.broadcast %166 : vector<1x8xf32> to vector<64x8xf32>
    %168 = arith.addf %165, %167 : vector<64x8xf32>
    %c0_79 = arith.constant 0 : index
    %c0_80 = arith.constant 0 : index
    %169 = vector.load %arg4[%c0_79, %c0_80] : memref<64x128xf32, #tpu.memory_space<vmem>>, vector<64x16xf32>
    tpu.vector_store %arg4[%c0_79, %c0_80], %163 {strides = array<i32>} : memref<64x128xf32, #tpu.memory_space<vmem>>, vector<64x16xf32>,
    %c0_81 = arith.constant 0 : index
    %c16_82 = arith.constant 16 : index
    %170 = vector.load %arg4[%c0_81, %c16_82] : memref<64x128xf32, #tpu.memory_space<vmem>>, vector<64x8xf32>
    tpu.vector_store %arg4[%c0_81, %c16_82], %168 {strides = array<i32>} : memref<64x128xf32, #tpu.memory_space<vmem>>, vector<64x8xf32>,
    return
  }
}

</mosaic_0001>

<llo_original>
// kernel: pch_forward.1
$region0: #{pch_forward.1}
  #allocation0 [shape = 'u32[]', space=smem, size = 0x4, offset = 0x4, fixed_abs, tag = 'smem constant byte address 0x4 - core index']
  #allocation1 [shape = 'u32[144,128]{1,0:T(1,128)}', space=vmem, size = 0x12000, scoped, tag = 'internal scratch']
  %s0 = inlined_call_operand.vmem [shape: f32[64,32], index: 0, kind: input, shape index: {}]
  %s1 = inlined_call_operand.vmem [shape: f32[64,24], index: 1, kind: input, shape index: {}]
  %s2 = inlined_call_operand.vmem [shape: f32[568,64], index: 2, kind: input, shape index: {}]
  %s3 = inlined_call_operand.vmem [shape: f32[24,64], index: 3, kind: input, shape index: {}]
  %s4 = inlined_call_operand.vmem [shape: f32[64,128], index: 4, kind: output, shape index: {}]
  %s5 = sld [smem:[#allocation0]]
  $region26: #{pch_forward.1} parent=0
    _
  %s7 = ssub.s32 1, %s5
  %s8 = scalar_select 0, %s7, %s5
  // Predicated region
  $region2: #{pch_forward.1} parent=0 // pred_check
    _
  $region3: #{pch_forward.1} parent=0 // pred_check_branch
    %10 = sbr.rel (0) target = $region5
  $region4: #{pch_forward.1} parent=0 // pred_region
    _
  $region5: #{pch_forward.1} parent=0 // pred_fallthru
    _
  // Predicated region
  $region6: #{pch_forward.1} parent=0 // pred_check
    _
  $region7: #{pch_forward.1} parent=0 // pred_check_branch
    %12 = sbr.rel (0) target = $region9
  $region8: #{pch_forward.1} parent=0 // pred_region
    _
  $region9: #{pch_forward.1} parent=0 // pred_fallthru
    _
  // Predicated region
  $region10: #{pch_forward.1} parent=0 // pred_check
    _
  $region11: #{pch_forward.1} parent=0 // pred_check_branch
    %14 = sbr.rel (0) target = $region13
  $region12: #{pch_forward.1} parent=0 // pred_region
    _
  $region13: #{pch_forward.1} parent=0 // pred_fallthru
    _
  // Predicated region
  $region14: #{pch_forward.1} parent=0 // pred_check
    _
  $region15: #{pch_forward.1} parent=0 // pred_check_branch
    %16 = sbr.rel (0) target = $region17
  $region16: #{pch_forward.1} parent=0 // pred_region
    _
  $region17: #{pch_forward.1} parent=0 // pred_fallthru
    _
  %v17 = vld [vmem:[%s0] sm:$0xff]
  %v18 = vld [vmem:[%s0 + $0x8] sm:$0xff]
  %v19 = vld [vmem:[%s0 + $0x10] sm:$0xff]
  %v20 = vld [vmem:[%s0 + $0x18] sm:$0xff]
  %v21 = vld [vmem:[%s0 + $0x20] sm:$0xff]
  %v22 = vld [vmem:[%s0 + $0x28] sm:$0xff]
  %v23 = vld [vmem:[%s0 + $0x30] sm:$0xff]
  %v24 = vld [vmem:[%s0 + $0x38] sm:$0xff]
  %v25 = vld [vmem:[%s2] sm:$0xff]
  %v26 = vld [vmem:[%s2 + $0x8] sm:$0xff]
  %v27 = vld [vmem:[%s2 + $0x10] sm:$0xff]
  %v28 = vld [vmem:[%s2 + $0x18] sm:$0xff]
  %v29 = vld [vmem:[%s3] sm:$0x1]
  %v30 = vlaneseq
  %v31 = vshrl.u32 %v30, 7
  %v32 = vsub.s32 0, %v31
  %v33 = vrot.slane %v29, %v32
  %vm34 = vcmask 261120
  %v36 = vsel %vm34, %v17, 0
  %v39 = vsel %vm34, %v18, 0
  %v42 = vsel %vm34, %v19, 0
  %v45 = vsel %vm34, %v20, 0
  %v48 = vsel %vm34, %v21, 0
  %v51 = vsel %vm34, %v22, 0
  %v54 = vsel %vm34, %v23, 0
  %v57 = vsel %vm34, %v24, 0
  %59 = vmatprep.subr.mxu0 0.0
  %60 = vmatpush1.msra.mxu0 %v25
  %61 = vmatprep.subr.mxu0 0.0
  %62 = vmatpush1.msra.mxu0 %v26
  %63 = vmatprep.subr.mxu0 0.0
  %64 = vmatpush1.msra.mxu0 %v27
  %65 = vmatprep.subr.mxu0 0.0
  %66 = vmatpush1.msra.mxu0 %v28
  %67 = vmatprep.subr.mxu0 0.0
  %68 = vmatpush1.msra.mxu0 0.0
  %69 = vmatprep.subr.mxu0 0.0
  %70 = vmatpush1.msra.mxu0 0.0
  %71 = vmatprep.subr.mxu0 0.0
  %72 = vmatpush1.msra.mxu0 0.0
  %73 = vmatprep.subr.mxu0 0.0
  %74 = vmatpush1.msra.mxu0 0.0
  %75 = vmatprep.subr.mxu0 0.0
  %76 = vmatpush1.msra.mxu0 0.0
  %77 = vmatprep.subr.mxu0 0.0
  %78 = vmatpush1.msra.mxu0 0.0
  %79 = vmatprep.subr.mxu0 0.0
  %80 = vmatpush1.msra.mxu0 0.0
  %81 = vmatprep.subr.mxu0 0.0
  %82 = vmatpush1.msra.mxu0 0.0
  %83 = vmatprep.subr.mxu0 0.0
  %84 = vmatpush1.msra.mxu0 0.0
  %85 = vmatprep.subr.mxu0 0.0
  %86 = vmatpush1.msra.mxu0 0.0
  %87 = vmatprep.subr.mxu0 0.0
  %88 = vmatpush1.msra.mxu0 0.0
  %89 = vmatprep.subr.mxu0 0.0
  %90 = vmatpush1.msra.mxu0 0.0
  %91 = vmatprep.subr.mxu0 0.0
  %92 = vmatpush1.msra.mxu0 0.0
  %93 = vmatprep.subr.mxu0 0.0
  %94 = vmatpush1.msra.mxu0 0.0
  %95 = vmatprep.subr.mxu0 0.0
  %96 = vmatpush1.msra.mxu0 0.0
  %97 = vmatprep.subr.mxu0 0.0
  %98 = vmatpush1.msra.mxu0 0.0
  %99 = vmatprep.subr.mxu0 0.0
  %100 = vmatpush1.msra.mxu0 0.0
  %101 = vmatprep.subr.mxu0 0.0
  %102 = vmatpush1.msra.mxu0 0.0
  %103 = vmatprep.subr.mxu0 0.0
  %104 = vmatpush1.msra.mxu0 0.0
  %105 = vmatprep.subr.mxu0 0.0
  %106 = vmatpush1.msra.mxu0 0.0
  %107 = vmatprep.subr.mxu0 0.0
  %108 = vmatpush1.msra.mxu0 0.0
  %109 = vmatprep.subr.mxu0 0.0
  %110 = vmatpush1.msra.mxu0 0.0
  %111 = vmatprep.subr.mxu0 0.0
  %112 = vmatpush1.msra.mxu0 0.0
  %113 = vmatprep.subr.mxu0 0.0
  %114 = vmatpush1.msra.mxu0 0.0
  %115 = vmatprep.subr.mxu0 0.0
  %116 = vmatpush1.msra.mxu0 0.0
  %117 = vmatprep.subr.mxu0 0.0
  %118 = vmatpush1.msra.mxu0 0.0
  %119 = vmatprep.subr.mxu0 0.0
  %120 = vmatpush1.msra.mxu0 0.0
  %121 = vmatprep.subr.mxu0 0.0
  %122 = vmatpush1.msra.mxu0 0.0
  %123 = vmatprep.mubr.f32.mxu0 0.0
  %124 = vmatmul.mubr.f32.gmra.mrb[0].mxu0 %v36
  %v125 = vpop.f32.mrb[0].mxu0
  %v126 = vadd.f32 %v33, %v125
  %v127 = vpop.f32.mrb[0].mxu0
  %128 = vmatprep.mubr.f32.mxu0 0.0
  %129 = vmatmul.mubr.f32.gmra.mrb[0].mxu0 %v39
  %v130 = vpop.f32.mrb[0].mxu0
  %v131 = vadd.f32 %v33, %v130
  %v132 = vpop.f32.mrb[0].mxu0
  %133 = vmatprep.mubr.f32.mxu0 0.0
  %134 = vmatmul.mubr.f32.gmra.mrb[0].mxu0 %v42
  %v135 = vpop.f32.mrb[0].mxu0
  %v136 = vadd.f32 %v33, %v135
  %v137 = vpop.f32.mrb[0].mxu0
  %138 = vmatprep.mubr.f32.mxu0 0.0
  %139 = vmatmul.mubr.f32.gmra.mrb[0].mxu0 %v45
  %v140 = vpop.f32.mrb[0].mxu0
  %v141 = vadd.f32 %v33, %v140
  %v142 = vpop.f32.mrb[0].mxu0
  %143 = vmatprep.mubr.f32.mxu0 0.0
  %144 = vmatmul.mubr.f32.gmra.mrb[0].mxu0 %v48
  %v145 = vpop.f32.mrb[0].mxu0
  %v146 = vadd.f32 %v33, %v145
  %v147 = vpop.f32.mrb[0].mxu0
  %148 = vmatprep.mubr.f32.mxu0 0.0
  %149 = vmatmul.mubr.f32.gmra.mrb[0].mxu0 %v51
  %v150 = vpop.f32.mrb[0].mxu0
  %v151 = vadd.f32 %v33, %v150
  %v152 = vpop.f32.mrb[0].mxu0
  %153 = vmatprep.mubr.f32.mxu0 0.0
  %154 = vmatmul.mubr.f32.gmra.mrb[0].mxu0 %v54
  %v155 = vpop.f32.mrb[0].mxu0
  %v156 = vadd.f32 %v33, %v155
  %v157 = vpop.f32.mrb[0].mxu0
  %158 = vmatprep.mubr.f32.mxu0 0.0
  %159 = vmatmul.mubr.f32.gmra.mrb[0].mxu0 %v57
  %v160 = vpop.f32.mrb[0].mxu0
  %v161 = vadd.f32 %v33, %v160
  %v162 = vpop.f32.mrb[0].mxu0
  %163 = vdwg.mxu0
  %v164 = vtanh.pop %v126
  %v165 = vtanh.pop %v131
  %v166 = vtanh.pop %v136
  %v167 = vtanh.pop %v141
  %v168 = vtanh.pop %v146
  %v169 = vtanh.pop %v151
  %v170 = vtanh.pop %v156
  %v171 = vtanh.pop %v161
  %v172 = vld [vmem:[%s2 + $0x20] sm:$0xff]
  %v173 = vld [vmem:[%s2 + $0x28] sm:$0xff]
  %v174 = vld [vmem:[%s2 + $0x30] sm:$0xff]
  %v175 = vld [vmem:[%s2 + $0x38] sm:$0xff]
  %v176 = vld [vmem:[%s2 + $0x40] sm:$0xff]
  %v177 = vld [vmem:[%s2 + $0x48] sm:$0xff]
  %v178 = vld [vmem:[%s2 + $0x50] sm:$0xff]
  %v179 = vld [vmem:[%s2 + $0x58] sm:$0xff]
  %v180 = vld [vmem:[%s3 + $0x1] sm:$0x1]
  %v181 = vlaneseq
  %v182 = vshrl.u32 %v181, 7
  %v183 = vsub.s32 0, %v182
  %v184 = vrot.slane %v180, %v183
  %vm185 = vcmask 523264
  %v187 = vsel %vm185, %v164, 0
  %v190 = vsel %vm185, %v165, 0
  %v193 = vsel %vm185, %v166, 0
  %v196 = vsel %vm185, %v167, 0
  %v199 = vsel %vm185, %v168, 0
  %v202 = vsel %vm185, %v169, 0
  %v205 = vsel %vm185, %v170, 0
  %v208 = vsel %vm185, %v171, 0
  %210 = vmatprep.subr.mxu0 0.0
  %211 = vmatpush1.msra.mxu0 %v172
  %212 = vmatprep.subr.mxu0 0.0
  %213 = vmatpush1.msra.mxu0 %v173
  %214 = vmatprep.subr.mxu0 0.0
  %215 = vmatpush1.msra.mxu0 %v174
  %216 = vmatprep.subr.mxu0 0.0
  %217 = vmatpush1.msra.mxu0 %v175
  %218 = vmatprep.subr.mxu0 0.0
  %219 = vmatpush1.msra.mxu0 %v176
  %220 = vmatprep.subr.mxu0 0.0
  %221 = vmatpush1.msra.mxu0 %v177
  %222 = vmatprep.subr.mxu0 0.0
  %223 = vmatpush1.msra.mxu0 %v178
  %224 = vmatprep.subr.mxu0 0.0
  %225 = vmatpush1.msra.mxu0 %v179
  %226 = vmatprep.subr.mxu0 0.0
  %227 = vmatpush1.msra.mxu0 0.0
  %228 = vmatprep.subr.mxu0 0.0
  %229 = vmatpush1.msra.mxu0 0.0
  %230 = vmatprep.subr.mxu0 0.0
  %231 = vmatpush1.msra.mxu0 0.0
  %232 = vmatprep.subr.mxu0 0.0
  %233 = vmatpush1.msra.mxu0 0.0
  %234 = vmatprep.subr.mxu0 0.0
  %235 = vmatpush1.msra.mxu0 0.0
  %236 = vmatprep.subr.mxu0 0.0
  %237 = vmatpush1.msra.mxu0 0.0
  %238 = vmatprep.subr.mxu0 0.0
  %239 = vmatpush1.msra.mxu0 0.0
  %240 = vmatprep.subr.mxu0 0.0
  %241 = vmatpush1.msra.mxu0 0.0
  %242 = vmatprep.subr.mxu0 0.0
  %243 = vmatpush1.msra.mxu0 0.0
  %244 = vmatprep.subr.mxu0 0.0
  %245 = vmatpush1.msra.mxu0 0.0
  %246 = vmatprep.subr.mxu0 0.0
  %247 = vmatpush1.msra.mxu0 0.0
  %248 = vmatprep.subr.mxu0 0.0
  %249 = vmatpush1.msra.mxu0 0.0
  %250 = vmatprep.subr.mxu0 0.0
  %251 = vmatpush1.msra.mxu0 0.0
  %252 = vmatprep.subr.mxu0 0.0
  %253 = vmatpush1.msra.mxu0 0.0
  %254 = vmatprep.subr.mxu0 0.0
  %255 = vmatpush1.msra.mxu0 0.0
  %256 = vmatprep.subr.mxu0 0.0
  %257 = vmatpush1.msra.mxu0 0.0
  %258 = vmatprep.subr.mxu0 0.0
  %259 = vmatpush1.msra.mxu0 0.0
  %260 = vmatprep.subr.mxu0 0.0
  %261 = vmatpush1.msra.mxu0 0.0
  %262 = vmatprep.subr.mxu0 0.0
  %263 = vmatpush1.msra.mxu0 0.0
  %264 = vmatprep.subr.mxu0 0.0
  %265 = vmatpush1.msra.mxu0 0.0
  %266 = vmatprep.subr.mxu0 0.0
  %267 = vmatpush1.msra.mxu0 0.0
  %268 = vmatprep.subr.mxu0 0.0
  %269 = vmatpush1.msra.mxu0 0.0
  %270 = vmatprep.subr.mxu0 0.0
  %271 = vmatpush1.msra.mxu0 0.0
  %272 = vmatprep.subr.mxu0 0.0
  %273 = vmatpush1.msra.mxu0 0.0
  %274 = vmatprep.mubr.f32.mxu0 0.0
  %275 = vmatmul.mubr.f32.gmra.mrb[0].mxu0 %v187
  %v276 = vpop.f32.mrb[0].mxu0
  %v277 = vadd.f32 %v184, %v276
  %v278 = vpop.f32.mrb[0].mxu0
  %279 = vmatprep.mubr.f32.mxu0 0.0
  %280 = vmatmul.mubr.f32.gmra.mrb[0].mxu0 %v190
  %v281 = vpop.f32.mrb[0].mxu0
  %v282 = vadd.f32 %v184, %v281
  %v283 = vpop.f32.mrb[0].mxu0
  %284 = vmatprep.mubr.f32.mxu0 0.0
  %285 = vmatmul.mubr.f32.gmra.mrb[0].mxu0 %v193
  %v286 = vpop.f32.mrb[0].mxu0
  %v287 = vadd.f32 %v184, %v286
  %v288 = vpop.f32.mrb[0].mxu0
  %289 = vmatprep.mubr.f32.mxu0 0.0
  %290 = vmatmul.mubr.f32.gmra.mrb[0].mxu0 %v196
  %v291 = vpop.f32.mrb[0].mxu0
  %v292 = vadd.f32 %v184, %v291
  %v293 = vpop.f32.mrb[0].mxu0
  %294 = vmatprep.mubr.f32.mxu0 0.0
  %295 = vmatmul.mubr.f32.gmra.mrb[0].mxu0 %v199
  %v296 = vpop.f32.mrb[0].mxu0
  %v297 = vadd.f32 %v184, %v296
  %v298 = vpop.f32.mrb[0].mxu0
  %299 = vmatprep.mubr.f32.mxu0 0.0
  %300 = vmatmul.mubr.f32.gmra.mrb[0].mxu0 %v202
  %v301 = vpop.f32.mrb[0].mxu0
  %v302 = vadd.f32 %v184, %v301
  %v303 = vpop.f32.mrb[0].mxu0
  %304 = vmatprep.mubr.f32.mxu0 0.0
  %305 = vmatmul.mubr.f32.gmra.mrb[0].mxu0 %v205
  %v306 = vpop.f32.mrb[0].mxu0
  %v307 = vadd.f32 %v184, %v306
  %v308 = vpop.f32.mrb[0].mxu0
  %309 = vmatprep.mubr.f32.mxu0 0.0
  %310 = vmatmul.mubr.f32.gmra.mrb[0].mxu0 %v208
  %v311 = vpop.f32.mrb[0].mxu0
  %v312 = vadd.f32 %v184, %v311
  %v313 = vpop.f32.mrb[0].mxu0
  %314 = vdwg.mxu0
  %v315 = vtanh.pop %v277
  %v316 = vtanh.pop %v282
  %v317 = vtanh.pop %v287
  %v318 = vtanh.pop %v292
  %v319 = vtanh.pop %v297
  %v320 = vtanh.pop %v302
  %v321 = vtanh.pop %v307
  %v322 = vtanh.pop %v312
  %v323 = vld [vmem:[%s1] sm:$0xff]
  %v324 = vld [vmem:[%s1 + $0x8] sm:$0xff]
  %v325 = vld [vmem:[%s1 + $0x10] sm:$0xff]
  %v326 = vld [vmem:[%s1 + $0x18] sm:$0xff]
  %v327 = vld [vmem:[%s1 + $0x20] sm:$0xff]
  %v328 = vld [vmem:[%s1 + $0x28] sm:$0xff]
  %v329 = vld [vmem:[%s1 + $0x30] sm:$0xff]
  %v330 = vld [vmem:[%s1 + $0x38] sm:$0xff]
  %v331 = vld [vmem:[%s2 + $0x60] sm:$0xff]
  %v332 = vld [vmem:[%s2 + $0x68] sm:$0xff]
  %v333 = vld [vmem:[%s2 + $0x70] sm:$0xff]
  %v334 = vld [vmem:[%s3 + $0x2] sm:$0x1]
  %v335 = vlaneseq
  %v336 = vshrl.u32 %v335, 7
  %v337 = vsub.s32 0, %v336
  %v338 = vrot.slane %v334, %v337
  %vm339 = vcmask 195584
  %v341 = vsel %vm339, %v323, 0
  %v344 = vsel %vm339, %v324, 0
  %v347 = vsel %vm339, %v325, 0
  %v350 = vsel %vm339, %v326, 0
  %v353 = vsel %vm339, %v327, 0
  %v356 = vsel %vm339, %v328, 0
  %v359 = vsel %vm339, %v329, 0
  %v362 = vsel %vm339, %v330, 0
  %364 = vmatprep.subr.mxu0 0.0
  %365 = vmatpush1.msra.mxu0 %v331
  %366 = vmatprep.subr.mxu0 0.0
  %367 = vmatpush1.msra.mxu0 %v332
  %368 = vmatprep.subr.mxu0 0.0
  %369 = vmatpush1.msra.mxu0 %v333
  %370 = vmatprep.subr.mxu0 0.0
  %371 = vmatpush1.msra.mxu0 0.0
  %372 = vmatprep.subr.mxu0 0.0
  %373 = vmatpush1.msra.mxu0 0.0
  %374 = vmatprep.subr.mxu0 0.0
  %375 = vmatpush1.msra.mxu0 0.0
  %376 = vmatprep.subr.mxu0 0.0
  %377 = vmatpush1.msra.mxu0 0.0
  %378 = vmatprep.subr.mxu0 0.0
  %379 = vmatpush1.msra.mxu0 0.0
  %380 = vmatprep.subr.mxu0 0.0
  %381 = vmatpush1.msra.mxu0 0.0
  %382 = vmatprep.subr.mxu0 0.0
  %383 = vmatpush1.msra.mxu0 0.0
  %384 = vmatprep.subr.mxu0 0.0
  %385 = vmatpush1.msra.mxu0 0.0
  %386 = vmatprep.subr.mxu0 0.0
  %387 = vmatpush1.msra.mxu0 0.0
  %388 = vmatprep.subr.mxu0 0.0
  %389 = vmatpush1.msra.mxu0 0.0
  %390 = vmatprep.subr.mxu0 0.0
  %391 = vmatpush1.msra.mxu0 0.0
  %392 = vmatprep.subr.mxu0 0.0
  %393 = vmatpush1.msra.mxu0 0.0
  %394 = vmatprep.subr.mxu0 0.0
  %395 = vmatpush1.msra.mxu0 0.0
  %396 = vmatprep.subr.mxu0 0.0
  %397 = vmatpush1.msra.mxu0 0.0
  %398 = vmatprep.subr.mxu0 0.0
  %399 = vmatpush1.msra.mxu0 0.0
  %400 = vmatprep.subr.mxu0 0.0
  %401 = vmatpush1.msra.mxu0 0.0
  %402 = vmatprep.subr.mxu0 0.0
  %403 = vmatpush1.msra.mxu0 0.0
  %404 = vmatprep.subr.mxu0 0.0
  %405 = vmatpush1.msra.mxu0 0.0
  %406 = vmatprep.subr.mxu0 0.0
  %407 = vmatpush1.msra.mxu0 0.0
  %408 = vmatprep.subr.mxu0 0.0
  %409 = vmatpush1.msra.mxu0 0.0
  %410 = vmatprep.subr.mxu0 0.0
  %411 = vmatpush1.msra.mxu0 0.0
  %412 = vmatprep.subr.mxu0 0.0
  %413 = vmatpush1.msra.mxu0 0.0
  %414 = vmatprep.subr.mxu0 0.0
  %415 = vmatpush1.msra.mxu0 0.0
  %416 = vmatprep.subr.mxu0 0.0
  %417 = vmatpush1.msra.mxu0 0.0
  %418 = vmatprep.subr.mxu0 0.0
  %419 = vmatpush1.msra.mxu0 0.0
  %420 = vmatprep.subr.mxu0 0.0
  %421 = vmatpush1.msra.mxu0 0.0
  %422 = vmatprep.subr.mxu0 0.0
  %423 = vmatpush1.msra.mxu0 0.0
  %424 = vmatprep.subr.mxu0 0.0
  %425 = vmatpush1.msra.mxu0 0.0
  %426 = vmatprep.subr.mxu0 0.0
  %427 = vmatpush1.msra.mxu0 0.0
  %428 = vmatprep.mubr.f32.mxu0 0.0
  %429 = vmatmul.mubr.f32.gmra.mrb[0].mxu0 %v341
  %v430 = vpop.f32.mrb[0].mxu0
  %v431 = vadd.f32 %v338, %v430
  %v432 = vpop.f32.mrb[0].mxu0
  %433 = vmatprep.mubr.f32.mxu0 0.0
  %434 = vmatmul.mubr.f32.gmra.mrb[0].mxu0 %v344
  %v435 = vpop.f32.mrb[0].mxu0
  %v436 = vadd.f32 %v338, %v435
  %v437 = vpop.f32.mrb[0].mxu0
  %438 = vmatprep.mubr.f32.mxu0 0.0
  %439 = vmatmul.mubr.f32.gmra.mrb[0].mxu0 %v347
  %v440 = vpop.f32.mrb[0].mxu0
  %v441 = vadd.f32 %v338, %v440
  %v442 = vpop.f32.mrb[0].mxu0
  %443 = vmatprep.mubr.f32.mxu0 0.0
  %444 = vmatmul.mubr.f32.gmra.mrb[0].mxu0 %v350
  %v445 = vpop.f32.mrb[0].mxu0
  %v446 = vadd.f32 %v338, %v445
  %v447 = vpop.f32.mrb[0].mxu0
  %448 = vmatprep.mubr.f32.mxu0 0.0
  %449 = vmatmul.mubr.f32.gmra.mrb[0].mxu0 %v353
  %v450 = vpop.f32.mrb[0].mxu0
  %v451 = vadd.f32 %v338, %v450
  %v452 = vpop.f32.mrb[0].mxu0
  %453 = vmatprep.mubr.f32.mxu0 0.0
  %454 = vmatmul.mubr.f32.gmra.mrb[0].mxu0 %v356
  %v455 = vpop.f32.mrb[0].mxu0
  %v456 = vadd.f32 %v338, %v455
  %v457 = vpop.f32.mrb[0].mxu0
  %458 = vmatprep.mubr.f32.mxu0 0.0
  %459 = vmatmul.mubr.f32.gmra.mrb[0].mxu0 %v359
  %v460 = vpop.f32.mrb[0].mxu0
  %v461 = vadd.f32 %v338, %v460
  %v462 = vpop.f32.mrb[0].mxu0
  %463 = vmatprep.mubr.f32.mxu0 0.0
  %464 = vmatmul.mubr.f32.gmra.mrb[0].mxu0 %v362
  %v465 = vpop.f32.mrb[0].mxu0
  %v466 = vadd.f32 %v338, %v465
  %v467 = vpop.f32.mrb[0].mxu0
  %468 = vdwg.mxu0
  %v469 = vtanh.pop %v431
  %v470 = vtanh.pop %v436
  %v471 = vtanh.pop %v441
  %v472 = vtanh.pop %v446
  %v473 = vtanh.pop %v451
  %v474 = vtanh.pop %v456
  %v475 = vtanh.pop %v461
  %v476 = vtanh.pop %v466
  %v477 = vld [vmem:[%s2 + $0x78] sm:$0xff]
  %v478 = vld [vmem:[%s2 + $0x80] sm:$0xff]
  %v479 = vld [vmem:[%s2 + $0x88] sm:$0xff]
  %v480 = vld [vmem:[%s2 + $0x90] sm:$0xff]
  %v481 = vld [vmem:[%s2 + $0x98] sm:$0xff]
  %v482 = vld [vmem:[%s2 + $0xa0] sm:$0xff]
  %v483 = vld [vmem:[%s2 + $0xa8] sm:$0xff]
  %v484 = vld [vmem:[%s2 + $0xb0] sm:$0xff]
  %v485 = vld [vmem:[%s3 + $0x3] sm:$0x1]
  %v486 = vlaneseq
  %v487 = vshrl.u32 %v486, 7
  %v488 = vsub.s32 0, %v487
  %v489 = vrot.slane %v485, %v488
  %v491 = vsel %vm185, %v469, 0
  %v494 = vsel %vm185, %v470, 0
  %v497 = vsel %vm185, %v471, 0
  %v500 = vsel %vm185, %v472, 0
  %v503 = vsel %vm185, %v473, 0
  %v506 = vsel %vm185, %v474, 0
  %v509 = vsel %vm185, %v475, 0
  %v512 = vsel %vm185, %v476, 0
  %514 = vmatprep.subr.mxu0 0.0
  %515 = vmatpush1.msra.mxu0 %v477
  %516 = vmatprep.subr.mxu0 0.0
  %517 = vmatpush1.msra.mxu0 %v478
  %518 = vmatprep.subr.mxu0 0.0
  %519 = vmatpush1.msra.mxu0 %v479
  %520 = vmatprep.subr.mxu0 0.0
  %521 = vmatpush1.msra.mxu0 %v480
  %522 = vmatprep.subr.mxu0 0.0
  %523 = vmatpush1.msra.mxu0 %v481
  %524 = vmatprep.subr.mxu0 0.0
  %525 = vmatpush1.msra.mxu0 %v482
  %526 = vmatprep.subr.mxu0 0.0
  %527 = vmatpush1.msra.mxu0 %v483
  %528 = vmatprep.subr.mxu0 0.0
  %529 = vmatpush1.msra.mxu0 %v484
  %530 = vmatprep.subr.mxu0 0.0
  %531 = vmatpush1.msra.mxu0 0.0
  %532 = vmatprep.subr.mxu0 0.0
  %533 = vmatpush1.msra.mxu0 0.0
  %534 = vmatprep.subr.mxu0 0.0
  %535 = vmatpush1.msra.mxu0 0.0
  %536 = vmatprep.subr.mxu0 0.0
  %537 = vmatpush1.msra.mxu0 0.0
  %538 = vmatprep.subr.mxu0 0.0
  %539 = vmatpush1.msra.mxu0 0.0
  %540 = vmatprep.subr.mxu0 0.0
  %541 = vmatpush1.msra.mxu0 0.0
  %542 = vmatprep.subr.mxu0 0.0
  %543 = vmatpush1.msra.mxu0 0.0
  %544 = vmatprep.subr.mxu0 0.0
  %545 = vmatpush1.msra.mxu0 0.0
  %546 = vmatprep.subr.mxu0 0.0
  %547 = vmatpush1.msra.mxu0 0.0
  %548 = vmatprep.subr.mxu0 0.0
  %549 = vmatpush1.msra.mxu0 0.0
  %550 = vmatprep.subr.mxu0 0.0
  %551 = vmatpush1.msra.mxu0 0.0
  %552 = vmatprep.subr.mxu0 0.0
  %553 = vmatpush1.msra.mxu0 0.0
  %554 = vmatprep.subr.mxu0 0.0
  %555 = vmatpush1.msra.mxu0 0.0
  %556 = vmatprep.subr.mxu0 0.0
  %557 = vmatpush1.msra.mxu0 0.0
  %558 = vmatprep.subr.mxu0 0.0
  %559 = vmatpush1.msra.mxu0 0.0
  %560 = vmatprep.subr.mxu0 0.0
  %561 = vmatpush1.msra.mxu0 0.0
  %562 = vmatprep.subr.mxu0 0.0
  %563 = vmatpush1.msra.mxu0 0.0
  %564 = vmatprep.subr.mxu0 0.0
  %565 = vmatpush1.msra.mxu0 0.0
  %566 = vmatprep.subr.mxu0 0.0
  %567 = vmatpush1.msra.mxu0 0.0
  %568 = vmatprep.subr.mxu0 0.0
  %569 = vmatpush1.msra.mxu0 0.0
  %570 = vmatprep.subr.mxu0 0.0
  %571 = vmatpush1.msra.mxu0 0.0
  %572 = vmatprep.subr.mxu0 0.0
  %573 = vmatpush1.msra.mxu0 0.0
  %574 = vmatprep.subr.mxu0 0.0
  %575 = vmatpush1.msra.mxu0 0.0
  %576 = vmatprep.subr.mxu0 0.0
  %577 = vmatpush1.msra.mxu0 0.0
  %578 = vmatprep.mubr.f32.mxu0 0.0
  %579 = vmatmul.mubr.f32.gmra.mrb[0].mxu0 %v491
  %v580 = vpop.f32.mrb[0].mxu0
  %v581 = vadd.f32 %v489, %v580
  %v582 = vpop.f32.mrb[0].mxu0
  %583 = vmatprep.mubr.f32.mxu0 0.0
  %584 = vmatmul.mubr.f32.gmra.mrb[0].mxu0 %v494
  %v585 = vpop.f32.mrb[0].mxu0
  %v586 = vadd.f32 %v489, %v585
  %v587 = vpop.f32.mrb[0].mxu0
  %588 = vmatprep.mubr.f32.mxu0 0.0
  %589 = vmatmul.mubr.f32.gmra.mrb[0].mxu0 %v497
  %v590 = vpop.f32.mrb[0].mxu0
  %v591 = vadd.f32 %v489, %v590
  %v592 = vpop.f32.mrb[0].mxu0
  %593 = vmatprep.mubr.f32.mxu0 0.0
  %594 = vmatmul.mubr.f32.gmra.mrb[0].mxu0 %v500
  %v595 = vpop.f32.mrb[0].mxu0
  %v596 = vadd.f32 %v489, %v595
  %v597 = vpop.f32.mrb[0].mxu0
  %598 = vmatprep.mubr.f32.mxu0 0.0
  %599 = vmatmul.mubr.f32.gmra.mrb[0].mxu0 %v503
  %v600 = vpop.f32.mrb[0].mxu0
  %v601 = vadd.f32 %v489, %v600
  %v602 = vpop.f32.mrb[0].mxu0
  %603 = vmatprep.mubr.f32.mxu0 0.0
  %604 = vmatmul.mubr.f32.gmra.mrb[0].mxu0 %v506
  %v605 = vpop.f32.mrb[0].mxu0
  %v606 = vadd.f32 %v489, %v605
  %v607 = vpop.f32.mrb[0].mxu0
  %608 = vmatprep.mubr.f32.mxu0 0.0
  %609 = vmatmul.mubr.f32.gmra.mrb[0].mxu0 %v509
  %v610 = vpop.f32.mrb[0].mxu0
  %v611 = vadd.f32 %v489, %v610
  %v612 = vpop.f32.mrb[0].mxu0
  %613 = vmatprep.mubr.f32.mxu0 0.0
  %614 = vmatmul.mubr.f32.gmra.mrb[0].mxu0 %v512
  %v615 = vpop.f32.mrb[0].mxu0
  %v616 = vadd.f32 %v489, %v615
  %v617 = vpop.f32.mrb[0].mxu0
  %618 = vdwg.mxu0
  %v619 = vtanh.pop %v581
  %v620 = vtanh.pop %v586
  %v621 = vtanh.pop %v591
  %v622 = vtanh.pop %v596
  %v623 = vtanh.pop %v601
  %v624 = vtanh.pop %v606
  %v625 = vtanh.pop %v611
  %v626 = vtanh.pop %v616
  %v627 = vld [vmem:[%s2 + $0xb8] sm:$0xff]
  %v628 = vld [vmem:[%s2 + $0xc0] sm:$0xff]
  %v629 = vld [vmem:[%s2 + $0xc8] sm:$0xff]
  %v630 = vld [vmem:[%s2 + $0xd0] sm:$0xff]
  %v631 = vld [vmem:[%s3 + $0x4] sm:$0x1]
  %v632 = vlaneseq
  %v633 = vshrl.u32 %v632, 7
  %v634 = vsub.s32 0, %v633
  %v635 = vrot.slane %v631, %v634
  %v637 = vsel %vm34, %v315, 0
  %v640 = vsel %vm34, %v316, 0
  %v643 = vsel %vm34, %v317, 0
  %v646 = vsel %vm34, %v318, 0
  %v649 = vsel %vm34, %v319, 0
  %v652 = vsel %vm34, %v320, 0
  %v655 = vsel %vm34, %v321, 0
  %v658 = vsel %vm34, %v322, 0
  %660 = vmatprep.subr.mxu0 0.0
  %661 = vmatpush1.msra.mxu0 %v627
  %662 = vmatprep.subr.mxu0 0.0
  %663 = vmatpush1.msra.mxu0 %v628
  %664 = vmatprep.subr.mxu0 0.0
  %665 = vmatpush1.msra.mxu0 %v629
  %666 = vmatprep.subr.mxu0 0.0
  %667 = vmatpush1.msra.mxu0 %v630
  %668 = vmatprep.subr.mxu0 0.0
  %669 = vmatpush1.msra.mxu0 0.0
  %670 = vmatprep.subr.mxu0 0.0
  %671 = vmatpush1.msra.mxu0 0.0
  %672 = vmatprep.subr.mxu0 0.0
  %673 = vmatpush1.msra.mxu0 0.0
  %674 = vmatprep.subr.mxu0 0.0
  %675 = vmatpush1.msra.mxu0 0.0
  %676 = vmatprep.subr.mxu0 0.0
  %677 = vmatpush1.msra.mxu0 0.0
  %678 = vmatprep.subr.mxu0 0.0
  %679 = vmatpush1.msra.mxu0 0.0
  %680 = vmatprep.subr.mxu0 0.0
  %681 = vmatpush1.msra.mxu0 0.0
  %682 = vmatprep.subr.mxu0 0.0
  %683 = vmatpush1.msra.mxu0 0.0
  %684 = vmatprep.subr.mxu0 0.0
  %685 = vmatpush1.msra.mxu0 0.0
  %686 = vmatprep.subr.mxu0 0.0
  %687 = vmatpush1.msra.mxu0 0.0
  %688 = vmatprep.subr.mxu0 0.0
  %689 = vmatpush1.msra.mxu0 0.0
  %690 = vmatprep.subr.mxu0 0.0
  %691 = vmatpush1.msra.mxu0 0.0
  %692 = vmatprep.subr.mxu0 0.0
  %693 = vmatpush1.msra.mxu0 0.0
  %694 = vmatprep.subr.mxu0 0.0
  %695 = vmatpush1.msra.mxu0 0.0
  %696 = vmatprep.subr.mxu0 0.0
  %697 = vmatpush1.msra.mxu0 0.0
  %698 = vmatprep.subr.mxu0 0.0
  %699 = vmatpush1.msra.mxu0 0.0
  %700 = vmatprep.subr.mxu0 0.0
  %701 = vmatpush1.msra.mxu0 0.0
  %702 = vmatprep.subr.mxu0 0.0
  %703 = vmatpush1.msra.mxu0 0.0
  %704 = vmatprep.subr.mxu0 0.0
  %705 = vmatpush1.msra.mxu0 0.0
  %706 = vmatprep.subr.mxu0 0.0
  %707 = vmatpush1.msra.mxu0 0.0
  %708 = vmatprep.subr.mxu0 0.0
  %709 = vmatpush1.msra.mxu0 0.0
  %710 = vmatprep.subr.mxu0 0.0
  %711 = vmatpush1.msra.mxu0 0.0
  %712 = vmatprep.subr.mxu0 0.0
  %713 = vmatpush1.msra.mxu0 0.0
  %714 = vmatprep.subr.mxu0 0.0
  %715 = vmatpush1.msra.mxu0 0.0
  %716 = vmatprep.subr.mxu0 0.0
  %717 = vmatpush1.msra.mxu0 0.0
  %718 = vmatprep.subr.mxu0 0.0
  %719 = vmatpush1.msra.mxu0 0.0
  %720 = vmatprep.subr.mxu0 0.0
  %721 = vmatpush1.msra.mxu0 0.0
  %722 = vmatprep.subr.mxu0 0.0
  %723 = vmatpush1.msra.mxu0 0.0
  %724 = vmatprep.mubr.f32.mxu0 0.0
  %725 = vmatmul.mubr.f32.gmra.mrb[0].mxu0 %v637
  %v726 = vpop.f32.mrb[0].mxu0
  %v727 = vadd.f32 %v635, %v726
  %v728 = vpop.f32.mrb[0].mxu0
  %729 = vmatprep.mubr.f32.mxu0 0.0
  %730 = vmatmul.mubr.f32.gmra.mrb[0].mxu0 %v640
  %v731 = vpop.f32.mrb[0].mxu0
  %v732 = vadd.f32 %v635, %v731
  %v733 = vpop.f32.mrb[0].mxu0
  %734 = vmatprep.mubr.f32.mxu0 0.0
  %735 = vmatmul.mubr.f32.gmra.mrb[0].mxu0 %v643
  %v736 = vpop.f32.mrb[0].mxu0
  %v737 = vadd.f32 %v635, %v736
  %v738 = vpop.f32.mrb[0].mxu0
  %739 = vmatprep.mubr.f32.mxu0 0.0
  %740 = vmatmul.mubr.f32.gmra.mrb[0].mxu0 %v646
  %v741 = vpop.f32.mrb[0].mxu0
  %v742 = vadd.f32 %v635, %v741
  %v743 = vpop.f32.mrb[0].mxu0
  %744 = vmatprep.mubr.f32.mxu0 0.0
  %745 = vmatmul.mubr.f32.gmra.mrb[0].mxu0 %v649
  %v746 = vpop.f32.mrb[0].mxu0
  %v747 = vadd.f32 %v635, %v746
  %v748 = vpop.f32.mrb[0].mxu0
  %749 = vmatprep.mubr.f32.mxu0 0.0
  %750 = vmatmul.mubr.f32.gmra.mrb[0].mxu0 %v652
  %v751 = vpop.f32.mrb[0].mxu0
  %v752 = vadd.f32 %v635, %v751
  %v753 = vpop.f32.mrb[0].mxu0
  %754 = vmatprep.mubr.f32.mxu0 0.0
  %755 = vmatmul.mubr.f32.gmra.mrb[0].mxu0 %v655
  %v756 = vpop.f32.mrb[0].mxu0
  %v757 = vadd.f32 %v635, %v756
  %v758 = vpop.f32.mrb[0].mxu0
  %759 = vmatprep.mubr.f32.mxu0 0.0
  %760 = vmatmul.mubr.f32.gmra.mrb[0].mxu0 %v658
  %v761 = vpop.f32.mrb[0].mxu0
  %v762 = vadd.f32 %v635, %v761
  %v763 = vpop.f32.mrb[0].mxu0
  %764 = vdwg.mxu0
  %v765 = vld [vmem:[%s2 + $0xd8] sm:$0xff]
  %v766 = vld [vmem:[%s2 + $0xe0] sm:$0xff]
  %v767 = vld [vmem:[%s2 + $0xe8] sm:$0xff]
  %v768 = vld [vmem:[%s2 + $0xf0] sm:$0xff]
  %v769 = vld [vmem:[%s3 + $0x5] sm:$0x1]
  %v770 = vlaneseq
  %v771 = vshrl.u32 %v770, 7
  %v772 = vsub.s32 0, %v771
  %v773 = vrot.slane %v769, %v772
  %v775 = vsel %vm34, %v727, 0
  %v778 = vsel %vm34, %v732, 0
  %v781 = vsel %vm34, %v737, 0
  %v784 = vsel %vm34, %v742, 0
  %v787 = vsel %vm34, %v747, 0
  %v790 = vsel %vm34, %v752, 0
  %v793 = vsel %vm34, %v757, 0
  %v796 = vsel %vm34, %v762, 0
  %798 = vmatprep.subr.mxu0 0.0
  %799 = vmatpush1.msra.mxu0 %v765
  %800 = vmatprep.subr.mxu0 0.0
  %801 = vmatpush1.msra.mxu0 %v766
  %802 = vmatprep.subr.mxu0 0.0
  %803 = vmatpush1.msra.mxu0 %v767
  %804 = vmatprep.subr.mxu0 0.0
  %805 = vmatpush1.msra.mxu0 %v768
  %806 = vmatprep.subr.mxu0 0.0
  %807 = vmatpush1.msra.mxu0 0.0
  %808 = vmatprep.subr.mxu0 0.0
  %809 = vmatpush1.msra.mxu0 0.0
  %810 = vmatprep.subr.mxu0 0.0
  %811 = vmatpush1.msra.mxu0 0.0
  %812 = vmatprep.subr.mxu0 0.0
  %813 = vmatpush1.msra.mxu0 0.0
  %814 = vmatprep.subr.mxu0 0.0
  %815 = vmatpush1.msra.mxu0 0.0
  %816 = vmatprep.subr.mxu0 0.0
  %817 = vmatpush1.msra.mxu0 0.0
  %818 = vmatprep.subr.mxu0 0.0
  %819 = vmatpush1.msra.mxu0 0.0
  %820 = vmatprep.subr.mxu0 0.0
  %821 = vmatpush1.msra.mxu0 0.0
  %822 = vmatprep.subr.mxu0 0.0
  %823 = vmatpush1.msra.mxu0 0.0
  %824 = vmatprep.subr.mxu0 0.0
  %825 = vmatpush1.msra.mxu0 0.0
  %826 = vmatprep.subr.mxu0 0.0
  %827 = vmatpush1.msra.mxu0 0.0
  %828 = vmatprep.subr.mxu0 0.0
  %829 = vmatpush1.msra.mxu0 0.0
  %830 = vmatprep.subr.mxu0 0.0
  %831 = vmatpush1.msra.mxu0 0.0
  %832 = vmatprep.subr.mxu0 0.0
  %833 = vmatpush1.msra.mxu0 0.0
  %834 = vmatprep.subr.mxu0 0.0
  %835 = vmatpush1.msra.mxu0 0.0
  %836 = vmatprep.subr.mxu0 0.0
  %837 = vmatpush1.msra.mxu0 0.0
  %838 = vmatprep.subr.mxu0 0.0
  %839 = vmatpush1.msra.mxu0 0.0
  %840 = vmatprep.subr.mxu0 0.0
  %841 = vmatpush1.msra.mxu0 0.0
  %842 = vmatprep.subr.mxu0 0.0
  %843 = vmatpush1.msra.mxu0 0.0
  %844 = vmatprep.subr.mxu0 0.0
  %845 = vmatpush1.msra.mxu0 0.0
  %846 = vmatprep.subr.mxu0 0.0
  %847 = vmatpush1.msra.mxu0 0.0
  %848 = vmatprep.subr.mxu0 0.0
  %849 = vmatpush1.msra.mxu0 0.0
  %850 = vmatprep.subr.mxu0 0.0
  %851 = vmatpush1.msra.mxu0 0.0
  %852 = vmatprep.subr.mxu0 0.0
  %853 = vmatpush1.msra.mxu0 0.0
  %854 = vmatprep.subr.mxu0 0.0
  %855 = vmatpush1.msra.mxu0 0.0
  %856 = vmatprep.subr.mxu0 0.0
  %857 = vmatpush1.msra.mxu0 0.0
  %858 = vmatprep.subr.mxu0 0.0
  %859 = vmatpush1.msra.mxu0 0.0
  %860 = vmatprep.subr.mxu0 0.0
  %861 = vmatpush1.msra.mxu0 0.0
  %862 = vmatprep.mubr.f32.mxu0 0.0
  %863 = vmatmul.mubr.f32.gmra.mrb[0].mxu0 %v775
  %v864 = vpop.f32.mrb[0].mxu0
  %v865 = vadd.f32 %v773, %v864
  %v866 = vpop.f32.mrb[0].mxu0
  %867 = vmatprep.mubr.f32.mxu0 0.0
  %868 = vmatmul.mubr.f32.gmra.mrb[0].mxu0 %v778
  %v869 = vpop.f32.mrb[0].mxu0
  %v870 = vadd.f32 %v773, %v869
  %v871 = vpop.f32.mrb[0].mxu0
  %872 = vmatprep.mubr.f32.mxu0 0.0
  %873 = vmatmul.mubr.f32.gmra.mrb[0].mxu0 %v781
  %v874 = vpop.f32.mrb[0].mxu0
  %v875 = vadd.f32 %v773, %v874
  %v876 = vpop.f32.mrb[0].mxu0
  %877 = vmatprep.mubr.f32.mxu0 0.0
  %878 = vmatmul.mubr.f32.gmra.mrb[0].mxu0 %v784
  %v879 = vpop.f32.mrb[0].mxu0
  %v880 = vadd.f32 %v773, %v879
  %v881 = vpop.f32.mrb[0].mxu0
  %882 = vmatprep.mubr.f32.mxu0 0.0
  %883 = vmatmul.mubr.f32.gmra.mrb[0].mxu0 %v787
  %v884 = vpop.f32.mrb[0].mxu0
  %v885 = vadd.f32 %v773, %v884
  %v886 = vpop.f32.mrb[0].mxu0
  %887 = vmatprep.mubr.f32.mxu0 0.0
  %888 = vmatmul.mubr.f32.gmra.mrb[0].mxu0 %v790
  %v889 = vpop.f32.mrb[0].mxu0
  %v890 = vadd.f32 %v773, %v889
  %v891 = vpop.f32.mrb[0].mxu0
  %892 = vmatprep.mubr.f32.mxu0 0.0
  %893 = vmatmul.mubr.f32.gmra.mrb[0].mxu0 %v793
  %v894 = vpop.f32.mrb[0].mxu0
  %v895 = vadd.f32 %v773, %v894
  %v896 = vpop.f32.mrb[0].mxu0
  %897 = vmatprep.mubr.f32.mxu0 0.0
  %898 = vmatmul.mubr.f32.gmra.mrb[0].mxu0 %v796
  %v899 = vpop.f32.mrb[0].mxu0
  %v900 = vadd.f32 %v773, %v899
  %v901 = vpop.f32.mrb[0].mxu0
  %902 = vdwg.mxu0
  %v903 = vsel %vm34, %v865, 0.0
  %v904 = vsel %vm34, %v870, 0.0
  %v905 = vadd.f32 %v903, %v904
  %v906 = vsel %vm34, %v875, 0.0
  %v907 = vadd.f32 %v905, %v906
  %v908 = vsel %vm34, %v880, 0.0
  %v909 = vadd.f32 %v907, %v908
  %v910 = vsel %vm34, %v885, 0.0
  %v911 = vadd.f32 %v909, %v910
  %v912 = vsel %vm34, %v890, 0.0
  %v913 = vadd.f32 %v911, %v912
  %v914 = vsel %vm34, %v895, 0.0
  %v915 = vadd.f32 %v913, %v914
  %v916 = vsel %vm34, %v900, 0.0
  %v917 = vadd.f32 %v915, %v916
  %v918 = vrot.slane %v917, 4
  %v919 = vadd.f32 %v917, %v918
  %v920 = vrot.slane %v919, 2
  %v921 = vadd.f32 %v919, %v920
  %v922 = vrot.slane %v921, 1
  %v923 = vadd.f32 %v921, %v922
  %v924 = vrcp.pop 64.0
  %v925 = vmul.f32 %v923, %v924
  %v926 = vsub.f32 %v865, %v925
  %v927 = vsub.f32 %v870, %v925
  %v928 = vsub.f32 %v875, %v925
  %v929 = vsub.f32 %v880, %v925
  %v930 = vsub.f32 %v885, %v925
  %v931 = vsub.f32 %v890, %v925
  %v932 = vsub.f32 %v895, %v925
  %v933 = vsub.f32 %v900, %v925
  %v934 = vmul.f32 %v926, %v926
  %v935 = vmul.f32 %v927, %v927
  %v936 = vmul.f32 %v928, %v928
  %v937 = vmul.f32 %v929, %v929
  %v938 = vmul.f32 %v930, %v930
  %v939 = vmul.f32 %v931, %v931
  %v940 = vmul.f32 %v932, %v932
  %v941 = vmul.f32 %v933, %v933
  %v942 = vsel %vm34, %v934, 0.0
  %v943 = vsel %vm34, %v935, 0.0
  %v944 = vadd.f32 %v942, %v943
  %v945 = vsel %vm34, %v936, 0.0
  %v946 = vadd.f32 %v944, %v945
  %v947 = vsel %vm34, %v937, 0.0
  %v948 = vadd.f32 %v946, %v947
  %v949 = vsel %vm34, %v938, 0.0
  %v950 = vadd.f32 %v948, %v949
  %v951 = vsel %vm34, %v939, 0.0
  %v952 = vadd.f32 %v950, %v951
  %v953 = vsel %vm34, %v940, 0.0
  %v954 = vadd.f32 %v952, %v953
  %v955 = vsel %vm34, %v941, 0.0
  %v956 = vadd.f32 %v954, %v955
  %v957 = vrot.slane %v956, 4
  %v958 = vadd.f32 %v956, %v957
  %v959 = vrot.slane %v958, 2
  %v960 = vadd.f32 %v958, %v959
  %v961 = vrot.slane %v960, 1
  %v962 = vadd.f32 %v960, %v961
  %v963 = vmul.f32 %v962, %v924
  %v964 = vadd.f32 %v963, 1e-05
  %v965 = vrsqrt.pop %v964
  %v966 = vmul.f32 %v926, %v965
  %v967 = vmul.f32 %v927, %v965
  %v968 = vmul.f32 %v928, %v965
  %v969 = vmul.f32 %v929, %v965
  %v970 = vmul.f32 %v930, %v965
  %v971 = vmul.f32 %v931, %v965
  %v972 = vmul.f32 %v932, %v965
  %v973 = vmul.f32 %v933, %v965
  %v974 = vld [vmem:[%s3 + $0x6] sm:$0x1]
  %v975 = vlaneseq
  %v976 = vshrl.u32 %v975, 7
  %v977 = vsub.s32 0, %v976
  %v978 = vrot.slane %v974, %v977
  %v979 = vmul.f32 %v966, %v978
  %v980 = vmul.f32 %v967, %v978
  %v981 = vmul.f32 %v968, %v978
  %v982 = vmul.f32 %v969, %v978
  %v983 = vmul.f32 %v970, %v978
  %v984 = vmul.f32 %v971, %v978
  %v985 = vmul.f32 %v972, %v978
  %v986 = vmul.f32 %v973, %v978
  %v987 = vld [vmem:[%s3 + $0x7] sm:$0x1]
  %v988 = vlaneseq
  %v989 = vshrl.u32 %v988, 7
  %v990 = vsub.s32 0, %v989
  %v991 = vrot.slane %v987, %v990
  %v992 = vadd.f32 %v979, %v991
  %v993 = vadd.f32 %v980, %v991
  %v994 = vadd.f32 %v981, %v991
  %v995 = vadd.f32 %v982, %v991
  %v996 = vadd.f32 %v983, %v991
  %v997 = vadd.f32 %v984, %v991
  %v998 = vadd.f32 %v985, %v991
  %v999 = vadd.f32 %v986, %v991
  %v1000 = vmax.f32 %v992, 0.0
  %v1001 = vmax.f32 %v993, 0.0
  %v1002 = vmax.f32 %v994, 0.0
  %v1003 = vmax.f32 %v995, 0.0
  %v1004 = vmax.f32 %v996, 0.0
  %v1005 = vmax.f32 %v997, 0.0
  %v1006 = vmax.f32 %v998, 0.0
  %v1007 = vmax.f32 %v999, 0.0
  %v1008 = vld [vmem:[%s2 + $0xf8] sm:$0xff]
  %v1009 = vld [vmem:[%s2 + $0x100] sm:$0xff]
  %v1010 = vld [vmem:[%s2 + $0x108] sm:$0xff]
  %v1011 = vld [vmem:[%s2 + $0x110] sm:$0xff]
  %v1012 = vld [vmem:[%s3 + $0x8] sm:$0x1]
  %v1013 = vlaneseq
  %v1014 = vshrl.u32 %v1013, 7
  %v1015 = vsub.s32 0, %v1014
  %v1016 = vrot.slane %v1012, %v1015
  %v1018 = vsel %vm34, %v619, 0
  %v1021 = vsel %vm34, %v620, 0
  %v1024 = vsel %vm34, %v621, 0
  %v1027 = vsel %vm34, %v622, 0
  %v1030 = vsel %vm34, %v623, 0
  %v1033 = vsel %vm34, %v624, 0
  %v1036 = vsel %vm34, %v625, 0
  %v1039 = vsel %vm34, %v626, 0
  %1041 = vmatprep.subr.mxu0 0.0
  %1042 = vmatpush1.msra.mxu0 %v1008
  %1043 = vmatprep.subr.mxu0 0.0
  %1044 = vmatpush1.msra.mxu0 %v1009
  %1045 = vmatprep.subr.mxu0 0.0
  %1046 = vmatpush1.msra.mxu0 %v1010
  %1047 = vmatprep.subr.mxu0 0.0
  %1048 = vmatpush1.msra.mxu0 %v1011
  %1049 = vmatprep.subr.mxu0 0.0
  %1050 = vmatpush1.msra.mxu0 0.0
  %1051 = vmatprep.subr.mxu0 0.0
  %1052 = vmatpush1.msra.mxu0 0.0
  %1053 = vmatprep.subr.mxu0 0.0
  %1054 = vmatpush1.msra.mxu0 0.0
  %1055 = vmatprep.subr.mxu0 0.0
  %1056 = vmatpush1.msra.mxu0 0.0
  %1057 = vmatprep.subr.mxu0 0.0
  %1058 = vmatpush1.msra.mxu0 0.0
  %1059 = vmatprep.subr.mxu0 0.0
  %1060 = vmatpush1.msra.mxu0 0.0
  %1061 = vmatprep.subr.mxu0 0.0
  %1062 = vmatpush1.msra.mxu0 0.0
  %1063 = vmatprep.subr.mxu0 0.0
  %1064 = vmatpush1.msra.mxu0 0.0
  %1065 = vmatprep.subr.mxu0 0.0
  %1066 = vmatpush1.msra.mxu0 0.0
  %1067 = vmatprep.subr.mxu0 0.0
  %1068 = vmatpush1.msra.mxu0 0.0
  %1069 = vmatprep.subr.mxu0 0.0
  %1070 = vmatpush1.msra.mxu0 0.0
  %1071 = vmatprep.subr.mxu0 0.0
  %1072 = vmatpush1.msra.mxu0 0.0
  %1073 = vmatprep.subr.mxu0 0.0
  %1074 = vmatpush1.msra.mxu0 0.0
  %1075 = vmatprep.subr.mxu0 0.0
  %1076 = vmatpush1.msra.mxu0 0.0
  %1077 = vmatprep.subr.mxu0 0.0
  %1078 = vmatpush1.msra.mxu0 0.0
  %1079 = vmatprep.subr.mxu0 0.0
  %1080 = vmatpush1.msra.mxu0 0.0
  %1081 = vmatprep.subr.mxu0 0.0
  %1082 = vmatpush1.msra.mxu0 0.0
  %1083 = vmatprep.subr.mxu0 0.0
  %1084 = vmatpush1.msra.mxu0 0.0
  %1085 = vmatprep.subr.mxu0 0.0
  %1086 = vmatpush1.msra.mxu0 0.0
  %1087 = vmatprep.subr.mxu0 0.0
  %1088 = vmatpush1.msra.mxu0 0.0
  %1089 = vmatprep.subr.mxu0 0.0
  %1090 = vmatpush1.msra.mxu0 0.0
  %1091 = vmatprep.subr.mxu0 0.0
  %1092 = vmatpush1.msra.mxu0 0.0
  %1093 = vmatprep.subr.mxu0 0.0
  %1094 = vmatpush1.msra.mxu0 0.0
  %1095 = vmatprep.subr.mxu0 0.0
  %1096 = vmatpush1.msra.mxu0 0.0
  %1097 = vmatprep.subr.mxu0 0.0
  %1098 = vmatpush1.msra.mxu0 0.0
  %1099 = vmatprep.subr.mxu0 0.0
  %1100 = vmatpush1.msra.mxu0 0.0
  %1101 = vmatprep.subr.mxu0 0.0
  %1102 = vmatpush1.msra.mxu0 0.0
  %1103 = vmatprep.subr.mxu0 0.0
  %1104 = vmatpush1.msra.mxu0 0.0
  %1105 = vmatprep.mubr.f32.mxu0 0.0
  %1106 = vmatmul.mubr.f32.gmra.mrb[0].mxu0 %v1018
  %v1107 = vpop.f32.mrb[0].mxu0
  %v1108 = vadd.f32 %v1016, %v1107
  %v1109 = vpop.f32.mrb[0].mxu0
  %1110 = vmatprep.mubr.f32.mxu0 0.0
  %1111 = vmatmul.mubr.f32.gmra.mrb[0].mxu0 %v1021
  %v1112 = vpop.f32.mrb[0].mxu0
  %v1113 = vadd.f32 %v1016, %v1112
  %v1114 = vpop.f32.mrb[0].mxu0
  %1115 = vmatprep.mubr.f32.mxu0 0.0
  %1116 = vmatmul.mubr.f32.gmra.mrb[0].mxu0 %v1024
  %v1117 = vpop.f32.mrb[0].mxu0
  %v1118 = vadd.f32 %v1016, %v1117
  %v1119 = vpop.f32.mrb[0].mxu0
  %1120 = vmatprep.mubr.f32.mxu0 0.0
  %1121 = vmatmul.mubr.f32.gmra.mrb[0].mxu0 %v1027
  %v1122 = vpop.f32.mrb[0].mxu0
  %v1123 = vadd.f32 %v1016, %v1122
  %v1124 = vpop.f32.mrb[0].mxu0
  %1125 = vmatprep.mubr.f32.mxu0 0.0
  %1126 = vmatmul.mubr.f32.gmra.mrb[0].mxu0 %v1030
  %v1127 = vpop.f32.mrb[0].mxu0
  %v1128 = vadd.f32 %v1016, %v1127
  %v1129 = vpop.f32.mrb[0].mxu0
  %1130 = vmatprep.mubr.f32.mxu0 0.0
  %1131 = vmatmul.mubr.f32.gmra.mrb[0].mxu0 %v1033
  %v1132 = vpop.f32.mrb[0].mxu0
  %v1133 = vadd.f32 %v1016, %v1132
  %v1134 = vpop.f32.mrb[0].mxu0
  %1135 = vmatprep.mubr.f32.mxu0 0.0
  %1136 = vmatmul.mubr.f32.gmra.mrb[0].mxu0 %v1036
  %v1137 = vpop.f32.mrb[0].mxu0
  %v1138 = vadd.f32 %v1016, %v1137
  %v1139 = vpop.f32.mrb[0].mxu0
  %1140 = vmatprep.mubr.f32.mxu0 0.0
  %1141 = vmatmul.mubr.f32.gmra.mrb[0].mxu0 %v1039
  %v1142 = vpop.f32.mrb[0].mxu0
  %v1143 = vadd.f32 %v1016, %v1142
  %v1144 = vpop.f32.mrb[0].mxu0
  %1145 = vdwg.mxu0
  %v1146 = vld [vmem:[%s2 + $0x118] sm:$0xff]
  %v1147 = vld [vmem:[%s2 + $0x120] sm:$0xff]
  %v1148 = vld [vmem:[%s2 + $0x128] sm:$0xff]
  %v1149 = vld [vmem:[%s2 + $0x130] sm:$0xff]
  %v1150 = vld [vmem:[%s3 + $0x9] sm:$0x1]
  %v1151 = vlaneseq
  %v1152 = vshrl.u32 %v1151, 7
  %v1153 = vsub.s32 0, %v1152
  %v1154 = vrot.slane %v1150, %v1153
  %v1156 = vsel %vm34, %v1108, 0
  %v1159 = vsel %vm34, %v1113, 0
  %v1162 = vsel %vm34, %v1118, 0
  %v1165 = vsel %vm34, %v1123, 0
  %v1168 = vsel %vm34, %v1128, 0
  %v1171 = vsel %vm34, %v1133, 0
  %v1174 = vsel %vm34, %v1138, 0
  %v1177 = vsel %vm34, %v1143, 0
  %1179 = vmatprep.subr.mxu0 0.0
  %1180 = vmatpush1.msra.mxu0 %v1146
  %1181 = vmatprep.subr.mxu0 0.0
  %1182 = vmatpush1.msra.mxu0 %v1147
  %1183 = vmatprep.subr.mxu0 0.0
  %1184 = vmatpush1.msra.mxu0 %v1148
  %1185 = vmatprep.subr.mxu0 0.0
  %1186 = vmatpush1.msra.mxu0 %v1149
  %1187 = vmatprep.subr.mxu0 0.0
  %1188 = vmatpush1.msra.mxu0 0.0
  %1189 = vmatprep.subr.mxu0 0.0
  %1190 = vmatpush1.msra.mxu0 0.0
  %1191 = vmatprep.subr.mxu0 0.0
  %1192 = vmatpush1.msra.mxu0 0.0
  %1193 = vmatprep.subr.mxu0 0.0
  %1194 = vmatpush1.msra.mxu0 0.0
  %1195 = vmatprep.subr.mxu0 0.0
  %1196 = vmatpush1.msra.mxu0 0.0
  %1197 = vmatprep.subr.mxu0 0.0
  %1198 = vmatpush1.msra.mxu0 0.0
  %1199 = vmatprep.subr.mxu0 0.0
  %1200 = vmatpush1.msra.mxu0 0.0
  %1201 = vmatprep.subr.mxu0 0.0
  %1202 = vmatpush1.msra.mxu0 0.0
  %1203 = vmatprep.subr.mxu0 0.0
  %1204 = vmatpush1.msra.mxu0 0.0
  %1205 = vmatprep.subr.mxu0 0.0
  %1206 = vmatpush1.msra.mxu0 0.0
  %1207 = vmatprep.subr.mxu0 0.0
  %1208 = vmatpush1.msra.mxu0 0.0
  %1209 = vmatprep.subr.mxu0 0.0
  %1210 = vmatpush1.msra.mxu0 0.0
  %1211 = vmatprep.subr.mxu0 0.0
  %1212 = vmatpush1.msra.mxu0 0.0
  %1213 = vmatprep.subr.mxu0 0.0
  %1214 = vmatpush1.msra.mxu0 0.0
  %1215 = vmatprep.subr.mxu0 0.0
  %1216 = vmatpush1.msra.mxu0 0.0
  %1217 = vmatprep.subr.mxu0 0.0
  %1218 = vmatpush1.msra.mxu0 0.0
  %1219 = vmatprep.subr.mxu0 0.0
  %1220 = vmatpush1.msra.mxu0 0.0
  %1221 = vmatprep.subr.mxu0 0.0
  %1222 = vmatpush1.msra.mxu0 0.0
  %1223 = vmatprep.subr.mxu0 0.0
  %1224 = vmatpush1.msra.mxu0 0.0
  %1225 = vmatprep.subr.mxu0 0.0
  %1226 = vmatpush1.msra.mxu0 0.0
  %1227 = vmatprep.subr.mxu0 0.0
  %1228 = vmatpush1.msra.mxu0 0.0
  %1229 = vmatprep.subr.mxu0 0.0
  %1230 = vmatpush1.msra.mxu0 0.0
  %1231 = vmatprep.subr.mxu0 0.0
  %1232 = vmatpush1.msra.mxu0 0.0
  %1233 = vmatprep.subr.mxu0 0.0
  %1234 = vmatpush1.msra.mxu0 0.0
  %1235 = vmatprep.subr.mxu0 0.0
  %1236 = vmatpush1.msra.mxu0 0.0
  %1237 = vmatprep.subr.mxu0 0.0
  %1238 = vmatpush1.msra.mxu0 0.0
  %1239 = vmatprep.subr.mxu0 0.0
  %1240 = vmatpush1.msra.mxu0 0.0
  %1241 = vmatprep.subr.mxu0 0.0
  %1242 = vmatpush1.msra.mxu0 0.0
  %1243 = vmatprep.mubr.f32.mxu0 0.0
  %1244 = vmatmul.mubr.f32.gmra.mrb[0].mxu0 %v1156
  %v1245 = vpop.f32.mrb[0].mxu0
  %v1246 = vadd.f32 %v1154, %v1245
  %v1247 = vpop.f32.mrb[0].mxu0
  %1248 = vmatprep.mubr.f32.mxu0 0.0
  %1249 = vmatmul.mubr.f32.gmra.mrb[0].mxu0 %v1159
  %v1250 = vpop.f32.mrb[0].mxu0
  %v1251 = vadd.f32 %v1154, %v1250
  %v1252 = vpop.f32.mrb[0].mxu0
  %1253 = vmatprep.mubr.f32.mxu0 0.0
  %1254 = vmatmul.mubr.f32.gmra.mrb[0].mxu0 %v1162
  %v1255 = vpop.f32.mrb[0].mxu0
  %v1256 = vadd.f32 %v1154, %v1255
  %v1257 = vpop.f32.mrb[0].mxu0
  %1258 = vmatprep.mubr.f32.mxu0 0.0
  %1259 = vmatmul.mubr.f32.gmra.mrb[0].mxu0 %v1165
  %v1260 = vpop.f32.mrb[0].mxu0
  %v1261 = vadd.f32 %v1154, %v1260
  %v1262 = vpop.f32.mrb[0].mxu0
  %1263 = vmatprep.mubr.f32.mxu0 0.0
  %1264 = vmatmul.mubr.f32.gmra.mrb[0].mxu0 %v1168
  %v1265 = vpop.f32.mrb[0].mxu0
  %v1266 = vadd.f32 %v1154, %v1265
  %v1267 = vpop.f32.mrb[0].mxu0
  %1268 = vmatprep.mubr.f32.mxu0 0.0
  %1269 = vmatmul.mubr.f32.gmra.mrb[0].mxu0 %v1171
  %v1270 = vpop.f32.mrb[0].mxu0
  %v1271 = vadd.f32 %v1154, %v1270
  %v1272 = vpop.f32.mrb[0].mxu0
  %1273 = vmatprep.mubr.f32.mxu0 0.0
  %1274 = vmatmul.mubr.f32.gmra.mrb[0].mxu0 %v1174
  %v1275 = vpop.f32.mrb[0].mxu0
  %v1276 = vadd.f32 %v1154, %v1275
  %v1277 = vpop.f32.mrb[0].mxu0
  %1278 = vmatprep.mubr.f32.mxu0 0.0
  %1279 = vmatmul.mubr.f32.gmra.mrb[0].mxu0 %v1177
  %v1280 = vpop.f32.mrb[0].mxu0
  %v1281 = vadd.f32 %v1154, %v1280
  %v1282 = vpop.f32.mrb[0].mxu0
  %1283 = vdwg.mxu0
  %v1284 = vsel %vm34, %v1246, 0.0
  %v1285 = vsel %vm34, %v1251, 0.0
  %v1286 = vadd.f32 %v1284, %v1285
  %v1287 = vsel %vm34, %v1256, 0.0
  %v1288 = vadd.f32 %v1286, %v1287
  %v1289 = vsel %vm34, %v1261, 0.0
  %v1290 = vadd.f32 %v1288, %v1289
  %v1291 = vsel %vm34, %v1266, 0.0
  %v1292 = vadd.f32 %v1290, %v1291
  %v1293 = vsel %vm34, %v1271, 0.0
  %v1294 = vadd.f32 %v1292, %v1293
  %v1295 = vsel %vm34, %v1276, 0.0
  %v1296 = vadd.f32 %v1294, %v1295
  %v1297 = vsel %vm34, %v1281, 0.0
  %v1298 = vadd.f32 %v1296, %v1297
  %v1299 = vrot.slane %v1298, 4
  %v1300 = vadd.f32 %v1298, %v1299
  %v1301 = vrot.slane %v1300, 2
  %v1302 = vadd.f32 %v1300, %v1301
  %v1303 = vrot.slane %v1302, 1
  %v1304 = vadd.f32 %v1302, %v1303
  %v1305 = vmul.f32 %v1304, %v924
  %v1306 = vsub.f32 %v1246, %v1305
  %v1307 = vsub.f32 %v1251, %v1305
  %v1308 = vsub.f32 %v1256, %v1305
  %v1309 = vsub.f32 %v1261, %v1305
  %v1310 = vsub.f32 %v1266, %v1305
  %v1311 = vsub.f32 %v1271, %v1305
  %v1312 = vsub.f32 %v1276, %v1305
  %v1313 = vsub.f32 %v1281, %v1305
  %v1314 = vmul.f32 %v1306, %v1306
  %v1315 = vmul.f32 %v1307, %v1307
  %v1316 = vmul.f32 %v1308, %v1308
  %v1317 = vmul.f32 %v1309, %v1309
  %v1318 = vmul.f32 %v1310, %v1310
  %v1319 = vmul.f32 %v1311, %v1311
  %v1320 = vmul.f32 %v1312, %v1312
  %v1321 = vmul.f32 %v1313, %v1313
  %v1322 = vsel %vm34, %v1314, 0.0
  %v1323 = vsel %vm34, %v1315, 0.0
  %v1324 = vadd.f32 %v1322, %v1323
  %v1325 = vsel %vm34, %v1316, 0.0
  %v1326 = vadd.f32 %v1324, %v1325
  %v1327 = vsel %vm34, %v1317, 0.0
  %v1328 = vadd.f32 %v1326, %v1327
  %v1329 = vsel %vm34, %v1318, 0.0
  %v1330 = vadd.f32 %v1328, %v1329
  %v1331 = vsel %vm34, %v1319, 0.0
  %v1332 = vadd.f32 %v1330, %v1331
  %v1333 = vsel %vm34, %v1320, 0.0
  %v1334 = vadd.f32 %v1332, %v1333
  %v1335 = vsel %vm34, %v1321, 0.0
  %v1336 = vadd.f32 %v1334, %v1335
  %v1337 = vrot.slane %v1336, 4
  %v1338 = vadd.f32 %v1336, %v1337
  %v1339 = vrot.slane %v1338, 2
  %v1340 = vadd.f32 %v1338, %v1339
  %v1341 = vrot.slane %v1340, 1
  %v1342 = vadd.f32 %v1340, %v1341
  %v1343 = vmul.f32 %v1342, %v924
  %v1344 = vadd.f32 %v1343, 1e-05
  %v1345 = vrsqrt.pop %v1344
  %v1346 = vmul.f32 %v1306, %v1345
  %v1347 = vmul.f32 %v1307, %v1345
  %v1348 = vmul.f32 %v1308, %v1345
  %v1349 = vmul.f32 %v1309, %v1345
  %v1350 = vmul.f32 %v1310, %v1345
  %v1351 = vmul.f32 %v1311, %v1345
  %v1352 = vmul.f32 %v1312, %v1345
  %v1353 = vmul.f32 %v1313, %v1345
  %v1354 = vld [vmem:[%s3 + $0xa] sm:$0x1]
  %v1355 = vlaneseq
  %v1356 = vshrl.u32 %v1355, 7
  %v1357 = vsub.s32 0, %v1356
  %v1358 = vrot.slane %v1354, %v1357
  %v1359 = vmul.f32 %v1346, %v1358
  %v1360 = vmul.f32 %v1347, %v1358
  %v1361 = vmul.f32 %v1348, %v1358
  %v1362 = vmul.f32 %v1349, %v1358
  %v1363 = vmul.f32 %v1350, %v1358
  %v1364 = vmul.f32 %v1351, %v1358
  %v1365 = vmul.f32 %v1352, %v1358
  %v1366 = vmul.f32 %v1353, %v1358
  %v1367 = vld [vmem:[%s3 + $0xb] sm:$0x1]
  %v1368 = vlaneseq
  %v1369 = vshrl.u32 %v1368, 7
  %v1370 = vsub.s32 0, %v1369
  %v1371 = vrot.slane %v1367, %v1370
  %v1372 = vadd.f32 %v1359, %v1371
  %v1373 = vadd.f32 %v1360, %v1371
  %v1374 = vadd.f32 %v1361, %v1371
  %v1375 = vadd.f32 %v1362, %v1371
  %v1376 = vadd.f32 %v1363, %v1371
  %v1377 = vadd.f32 %v1364, %v1371
  %v1378 = vadd.f32 %v1365, %v1371
  %v1379 = vadd.f32 %v1366, %v1371
  %v1380 = vmax.f32 %v1372, 0.0
  %v1381 = vmax.f32 %v1373, 0.0
  %v1382 = vmax.f32 %v1374, 0.0
  %v1383 = vmax.f32 %v1375, 0.0
  %v1384 = vmax.f32 %v1376, 0.0
  %v1385 = vmax.f32 %v1377, 0.0
  %v1386 = vmax.f32 %v1378, 0.0
  %v1387 = vmax.f32 %v1379, 0.0
  %v1388 = vld [vmem:[%s2 + $0x138] sm:$0xff]
  %v1389 = vld [vmem:[%s2 + $0x140] sm:$0xff]
  %v1390 = vld [vmem:[%s2 + $0x148] sm:$0xff]
  %v1391 = vld [vmem:[%s2 + $0x150] sm:$0xff]
  %v1392 = vld [vmem:[%s2 + $0x158] sm:$0xff]
  %v1393 = vld [vmem:[%s2 + $0x160] sm:$0xff]
  %v1394 = vld [vmem:[%s2 + $0x168] sm:$0xff]
  %v1395 = vld [vmem:[%s2 + $0x170] sm:$0xff]
  %v1396 = vld [vmem:[%s3 + $0xc] sm:$0x1]
  %v1398 = vsel %vm34, %v1000, 0
  %v1401 = vsel %vm34, %v1001, 0
  %v1404 = vsel %vm34, %v1002, 0
  %v1407 = vsel %vm34, %v1003, 0
  %v1410 = vsel %vm34, %v1004, 0
  %v1413 = vsel %vm34, %v1005, 0
  %v1416 = vsel %vm34, %v1006, 0
  %v1419 = vsel %vm34, %v1007, 0
  %v1422 = vsel %vm34, %v1380, 0
  %v1425 = vsel %vm34, %v1381, 0
  %v1428 = vsel %vm34, %v1382, 0
  %v1431 = vsel %vm34, %v1383, 0
  %v1434 = vsel %vm34, %v1384, 0
  %v1437 = vsel %vm34, %v1385, 0
  %v1440 = vsel %vm34, %v1386, 0
  %v1443 = vsel %vm34, %v1387, 0
  %1445 = vmatprep.subr.mxu0 0.0
  %1446 = vmatpush1.msra.mxu0 %v1392
  %1447 = vmatprep.subr.mxu0 0.0
  %1448 = vmatpush1.msra.mxu0 %v1393
  %1449 = vmatprep.subr.mxu0 0.0
  %1450 = vmatpush1.msra.mxu0 %v1394
  %1451 = vmatprep.subr.mxu0 0.0
  %1452 = vmatpush1.msra.mxu0 %v1395
  %1453 = vmatprep.subr.mxu0 0.0
  %1454 = vmatpush1.msra.mxu0 0.0
  %1455 = vmatprep.subr.mxu0 0.0
  %1456 = vmatpush1.msra.mxu0 0.0
  %1457 = vmatprep.subr.mxu0 0.0
  %1458 = vmatpush1.msra.mxu0 0.0
  %1459 = vmatprep.subr.mxu0 0.0
  %1460 = vmatpush1.msra.mxu0 0.0
  %1461 = vmatprep.subr.mxu0 0.0
  %1462 = vmatpush1.msra.mxu0 0.0
  %1463 = vmatprep.subr.mxu0 0.0
  %1464 = vmatpush1.msra.mxu0 0.0
  %1465 = vmatprep.subr.mxu0 0.0
  %1466 = vmatpush1.msra.mxu0 0.0
  %1467 = vmatprep.subr.mxu0 0.0
  %1468 = vmatpush1.msra.mxu0 0.0
  %1469 = vmatprep.subr.mxu0 0.0
  %1470 = vmatpush1.msra.mxu0 0.0
  %1471 = vmatprep.subr.mxu0 0.0
  %1472 = vmatpush1.msra.mxu0 0.0
  %1473 = vmatprep.subr.mxu0 0.0
  %1474 = vmatpush1.msra.mxu0 0.0
  %1475 = vmatprep.subr.mxu0 0.0
  %1476 = vmatpush1.msra.mxu0 0.0
  %1477 = vmatprep.subr.mxu0 0.0
  %1478 = vmatpush1.msra.mxu0 0.0
  %1479 = vmatprep.subr.mxu0 0.0
  %1480 = vmatpush1.msra.mxu0 0.0
  %1481 = vmatprep.subr.mxu0 0.0
  %1482 = vmatpush1.msra.mxu0 0.0
  %1483 = vmatprep.subr.mxu0 0.0
  %1484 = vmatpush1.msra.mxu0 0.0
  %1485 = vmatprep.subr.mxu0 0.0
  %1486 = vmatpush1.msra.mxu0 0.0
  %1487 = vmatprep.subr.mxu0 0.0
  %1488 = vmatpush1.msra.mxu0 0.0
  %1489 = vmatprep.subr.mxu0 0.0
  %1490 = vmatpush1.msra.mxu0 0.0
  %1491 = vmatprep.subr.mxu0 0.0
  %1492 = vmatpush1.msra.mxu0 0.0
  %1493 = vmatprep.subr.mxu0 0.0
  %1494 = vmatpush1.msra.mxu0 0.0
  %1495 = vmatprep.subr.mxu0 0.0
  %1496 = vmatpush1.msra.mxu0 0.0
  %1497 = vmatprep.subr.mxu0 0.0
  %1498 = vmatpush1.msra.mxu0 0.0
  %1499 = vmatprep.subr.mxu0 0.0
  %1500 = vmatpush1.msra.mxu0 0.0
  %1501 = vmatprep.subr.mxu0 0.0
  %1502 = vmatpush1.msra.mxu0 0.0
  %1503 = vmatprep.subr.mxu0 0.0
  %1504 = vmatpush1.msra.mxu0 0.0
  %1505 = vmatprep.subr.mxu0 0.0
  %1506 = vmatpush1.msra.mxu0 0.0
  %1507 = vmatprep.subr.mxu0 0.0
  %1508 = vmatpush1.msra.mxu0 0.0
  %1509 = vmatprep.mubr.f32.mxu0 0.0
  %1510 = vmatmul.mubr.f32.gmra.mrb[0].mxu0 %v1398
  %v1511 = vpop.f32.mrb[0].mxu0
  %v1512 = vadd.f32 0.0, %v1511
  %v1513 = vpop.f32.mrb[0].mxu0
  %1514 = vmatprep.mubr.f32.mxu0 0.0
  %1515 = vmatmul.mubr.f32.gmra.mrb[0].mxu0 %v1401
  %v1516 = vpop.f32.mrb[0].mxu0
  %v1517 = vadd.f32 0.0, %v1516
  %v1518 = vpop.f32.mrb[0].mxu0
  %1519 = vmatprep.mubr.f32.mxu0 0.0
  %1520 = vmatmul.mubr.f32.gmra.mrb[0].mxu0 %v1404
  %v1521 = vpop.f32.mrb[0].mxu0
  %v1522 = vadd.f32 0.0, %v1521
  %v1523 = vpop.f32.mrb[0].mxu0
  %1524 = vmatprep.mubr.f32.mxu0 0.0
  %1525 = vmatmul.mubr.f32.gmra.mrb[0].mxu0 %v1407
  %v1526 = vpop.f32.mrb[0].mxu0
  %v1527 = vadd.f32 0.0, %v1526
  %v1528 = vpop.f32.mrb[0].mxu0
  %1529 = vmatprep.mubr.f32.mxu0 0.0
  %1530 = vmatmul.mubr.f32.gmra.mrb[0].mxu0 %v1410
  %v1531 = vpop.f32.mrb[0].mxu0
  %v1532 = vadd.f32 0.0, %v1531
  %v1533 = vpop.f32.mrb[0].mxu0
  %1534 = vmatprep.mubr.f32.mxu0 0.0
  %1535 = vmatmul.mubr.f32.gmra.mrb[0].mxu0 %v1413
  %v1536 = vpop.f32.mrb[0].mxu0
  %v1537 = vadd.f32 0.0, %v1536
  %v1538 = vpop.f32.mrb[0].mxu0
  %1539 = vmatprep.mubr.f32.mxu0 0.0
  %1540 = vmatmul.mubr.f32.gmra.mrb[0].mxu0 %v1416
  %v1541 = vpop.f32.mrb[0].mxu0
  %v1542 = vadd.f32 0.0, %v1541
  %v1543 = vpop.f32.mrb[0].mxu0
  %1544 = vmatprep.mubr.f32.mxu0 0.0
  %1545 = vmatmul.mubr.f32.gmra.mrb[0].mxu0 %v1419
  %v1546 = vpop.f32.mrb[0].mxu0
  %v1547 = vadd.f32 0.0, %v1546
  %v1548 = vpop.f32.mrb[0].mxu0
  %1549 = vmatprep.mubr.f32.mxu0 0.0
  %1550 = vmatmul.mubr.f32.gmra.mrb[0].mxu0 %v1422
  %v1551 = vpop.f32.mrb[0].mxu0
  %v1552 = vadd.f32 0.0, %v1551
  %v1553 = vpop.f32.mrb[0].mxu0
  %1554 = vmatprep.mubr.f32.mxu0 0.0
  %1555 = vmatmul.mubr.f32.gmra.mrb[0].mxu0 %v1425
  %v1556 = vpop.f32.mrb[0].mxu0
  %v1557 = vadd.f32 0.0, %v1556
  %v1558 = vpop.f32.mrb[0].mxu0
  %1559 = vmatprep.mubr.f32.mxu0 0.0
  %1560 = vmatmul.mubr.f32.gmra.mrb[0].mxu0 %v1428
  %v1561 = vpop.f32.mrb[0].mxu0
  %v1562 = vadd.f32 0.0, %v1561
  %v1563 = vpop.f32.mrb[0].mxu0
  %1564 = vmatprep.mubr.f32.mxu0 0.0
  %1565 = vmatmul.mubr.f32.gmra.mrb[0].mxu0 %v1431
  %v1566 = vpop.f32.mrb[0].mxu0
  %v1567 = vadd.f32 0.0, %v1566
  %v1568 = vpop.f32.mrb[0].mxu0
  %1569 = vmatprep.mubr.f32.mxu0 0.0
  %1570 = vmatmul.mubr.f32.gmra.mrb[0].mxu0 %v1434
  %v1571 = vpop.f32.mrb[0].mxu0
  %v1572 = vadd.f32 0.0, %v1571
  %v1573 = vpop.f32.mrb[0].mxu0
  %1574 = vmatprep.mubr.f32.mxu0 0.0
  %1575 = vmatmul.mubr.f32.gmra.mrb[0].mxu0 %v1437
  %v1576 = vpop.f32.mrb[0].mxu0
  %v1577 = vadd.f32 0.0, %v1576
  %v1578 = vpop.f32.mrb[0].mxu0
  %1579 = vmatprep.mubr.f32.mxu0 0.0
  %1580 = vmatmul.mubr.f32.gmra.mrb[0].mxu0 %v1440
  %v1581 = vpop.f32.mrb[0].mxu0
  %v1582 = vadd.f32 0.0, %v1581
  %v1583 = vpop.f32.mrb[0].mxu0
  %1584 = vmatprep.mubr.f32.mxu0 0.0
  %1585 = vmatmul.mubr.f32.gmra.mrb[0].mxu0 %v1443
  %v1586 = vpop.f32.mrb[0].mxu0
  %v1587 = vadd.f32 0.0, %v1586
  %v1588 = vpop.f32.mrb[0].mxu0
  %1589 = vdwg.mxu0
  %1590 = vmatprep.subr.mxu0 0.0
  %1591 = vmatpush1.msra.mxu0 %v1388
  %1592 = vmatprep.subr.mxu0 0.0
  %1593 = vmatpush1.msra.mxu0 %v1389
  %1594 = vmatprep.subr.mxu0 0.0
  %1595 = vmatpush1.msra.mxu0 %v1390
  %1596 = vmatprep.subr.mxu0 0.0
  %1597 = vmatpush1.msra.mxu0 %v1391
  %1598 = vmatprep.subr.mxu0 0.0
  %1599 = vmatpush1.msra.mxu0 0.0
  %1600 = vmatprep.subr.mxu0 0.0
  %1601 = vmatpush1.msra.mxu0 0.0
  %1602 = vmatprep.subr.mxu0 0.0
  %1603 = vmatpush1.msra.mxu0 0.0
  %1604 = vmatprep.subr.mxu0 0.0
  %1605 = vmatpush1.msra.mxu0 0.0
  %1606 = vmatprep.subr.mxu0 0.0
  %1607 = vmatpush1.msra.mxu0 0.0
  %1608 = vmatprep.subr.mxu0 0.0
  %1609 = vmatpush1.msra.mxu0 0.0
  %1610 = vmatprep.subr.mxu0 0.0
  %1611 = vmatpush1.msra.mxu0 0.0
  %1612 = vmatprep.subr.mxu0 0.0
  %1613 = vmatpush1.msra.mxu0 0.0
  %1614 = vmatprep.subr.mxu0 0.0
  %1615 = vmatpush1.msra.mxu0 0.0
  %1616 = vmatprep.subr.mxu0 0.0
  %1617 = vmatpush1.msra.mxu0 0.0
  %1618 = vmatprep.subr.mxu0 0.0
  %1619 = vmatpush1.msra.mxu0 0.0
  %1620 = vmatprep.subr.mxu0 0.0
  %1621 = vmatpush1.msra.mxu0 0.0
  %1622 = vmatprep.subr.mxu0 0.0
  %1623 = vmatpush1.msra.mxu0 0.0
  %1624 = vmatprep.subr.mxu0 0.0
  %1625 = vmatpush1.msra.mxu0 0.0
  %1626 = vmatprep.subr.mxu0 0.0
  %1627 = vmatpush1.msra.mxu0 0.0
  %1628 = vmatprep.subr.mxu0 0.0
  %1629 = vmatpush1.msra.mxu0 0.0
  %1630 = vmatprep.subr.mxu0 0.0
  %1631 = vmatpush1.msra.mxu0 0.0
  %1632 = vmatprep.subr.mxu0 0.0
  %1633 = vmatpush1.msra.mxu0 0.0
  %1634 = vmatprep.subr.mxu0 0.0
  %1635 = vmatpush1.msra.mxu0 0.0
  %1636 = vmatprep.subr.mxu0 0.0
  %1637 = vmatpush1.msra.mxu0 0.0
  %1638 = vmatprep.subr.mxu0 0.0
  %1639 = vmatpush1.msra.mxu0 0.0
  %1640 = vmatprep.subr.mxu0 0.0
  %1641 = vmatpush1.msra.mxu0 0.0
  %1642 = vmatprep.subr.mxu0 0.0
  %1643 = vmatpush1.msra.mxu0 0.0
  %1644 = vmatprep.subr.mxu0 0.0
  %1645 = vmatpush1.msra.mxu0 0.0
  %1646 = vmatprep.subr.mxu0 0.0
  %1647 = vmatpush1.msra.mxu0 0.0
  %1648 = vmatprep.subr.mxu0 0.0
  %1649 = vmatpush1.msra.mxu0 0.0
  %1650 = vmatprep.subr.mxu0 0.0
  %1651 = vmatpush1.msra.mxu0 0.0
  %1652 = vmatprep.subr.mxu0 0.0
  %1653 = vmatpush1.msra.mxu0 0.0
  %1654 = vmatprep.mubr.f32.mxu0 0.0
  %1655 = vmatmul.mubr.f32.gmra.mrb[0].mxu0 %v637
  %v1656 = vpop.f32.mrb[0].mxu0
  %v1657 = vadd.f32 %v1512, %v1656
  %v1658 = vpop.f32.mrb[0].mxu0
  %1659 = vmatprep.mubr.f32.mxu0 0.0
  %1660 = vmatmul.mubr.f32.gmra.mrb[0].mxu0 %v640
  %v1661 = vpop.f32.mrb[0].mxu0
  %v1662 = vadd.f32 %v1517, %v1661
  %v1663 = vpop.f32.mrb[0].mxu0
  %1664 = vmatprep.mubr.f32.mxu0 0.0
  %1665 = vmatmul.mubr.f32.gmra.mrb[0].mxu0 %v643
  %v1666 = vpop.f32.mrb[0].mxu0
  %v1667 = vadd.f32 %v1522, %v1666
  %v1668 = vpop.f32.mrb[0].mxu0
  %1669 = vmatprep.mubr.f32.mxu0 0.0
  %1670 = vmatmul.mubr.f32.gmra.mrb[0].mxu0 %v646
  %v1671 = vpop.f32.mrb[0].mxu0
  %v1672 = vadd.f32 %v1527, %v1671
  %v1673 = vpop.f32.mrb[0].mxu0
  %1674 = vmatprep.mubr.f32.mxu0 0.0
  %1675 = vmatmul.mubr.f32.gmra.mrb[0].mxu0 %v649
  %v1676 = vpop.f32.mrb[0].mxu0
  %v1677 = vadd.f32 %v1532, %v1676
  %v1678 = vpop.f32.mrb[0].mxu0
  %1679 = vmatprep.mubr.f32.mxu0 0.0
  %1680 = vmatmul.mubr.f32.gmra.mrb[0].mxu0 %v652
  %v1681 = vpop.f32.mrb[0].mxu0
  %v1682 = vadd.f32 %v1537, %v1681
  %v1683 = vpop.f32.mrb[0].mxu0
  %1684 = vmatprep.mubr.f32.mxu0 0.0
  %1685 = vmatmul.mubr.f32.gmra.mrb[0].mxu0 %v655
  %v1686 = vpop.f32.mrb[0].mxu0
  %v1687 = vadd.f32 %v1542, %v1686
  %v1688 = vpop.f32.mrb[0].mxu0
  %1689 = vmatprep.mubr.f32.mxu0 0.0
  %1690 = vmatmul.mubr.f32.gmra.mrb[0].mxu0 %v658
  %v1691 = vpop.f32.mrb[0].mxu0
  %v1692 = vadd.f32 %v1547, %v1691
  %v1693 = vpop.f32.mrb[0].mxu0
  %1694 = vmatprep.mubr.f32.mxu0 0.0
  %1695 = vmatmul.mubr.f32.gmra.mrb[0].mxu0 %v1018
  %v1696 = vpop.f32.mrb[0].mxu0
  %v1697 = vadd.f32 %v1552, %v1696
  %v1698 = vpop.f32.mrb[0].mxu0
  %1699 = vmatprep.mubr.f32.mxu0 0.0
  %1700 = vmatmul.mubr.f32.gmra.mrb[0].mxu0 %v1021
  %v1701 = vpop.f32.mrb[0].mxu0
  %v1702 = vadd.f32 %v1557, %v1701
  %v1703 = vpop.f32.mrb[0].mxu0
  %1704 = vmatprep.mubr.f32.mxu0 0.0
  %1705 = vmatmul.mubr.f32.gmra.mrb[0].mxu0 %v1024
  %v1706 = vpop.f32.mrb[0].mxu0
  %v1707 = vadd.f32 %v1562, %v1706
  %v1708 = vpop.f32.mrb[0].mxu0
  %1709 = vmatprep.mubr.f32.mxu0 0.0
  %1710 = vmatmul.mubr.f32.gmra.mrb[0].mxu0 %v1027
  %v1711 = vpop.f32.mrb[0].mxu0
  %v1712 = vadd.f32 %v1567, %v1711
  %v1713 = vpop.f32.mrb[0].mxu0
  %1714 = vmatprep.mubr.f32.mxu0 0.0
  %1715 = vmatmul.mubr.f32.gmra.mrb[0].mxu0 %v1030
  %v1716 = vpop.f32.mrb[0].mxu0
  %v1717 = vadd.f32 %v1572, %v1716
  %v1718 = vpop.f32.mrb[0].mxu0
  %1719 = vmatprep.mubr.f32.mxu0 0.0
  %1720 = vmatmul.mubr.f32.gmra.mrb[0].mxu0 %v1033
  %v1721 = vpop.f32.mrb[0].mxu0
  %v1722 = vadd.f32 %v1577, %v1721
  %v1723 = vpop.f32.mrb[0].mxu0
  %1724 = vmatprep.mubr.f32.mxu0 0.0
  %1725 = vmatmul.mubr.f32.gmra.mrb[0].mxu0 %v1036
  %v1726 = vpop.f32.mrb[0].mxu0
  %v1727 = vadd.f32 %v1582, %v1726
  %v1728 = vpop.f32.mrb[0].mxu0
  %1729 = vmatprep.mubr.f32.mxu0 0.0
  %1730 = vmatmul.mubr.f32.gmra.mrb[0].mxu0 %v1039
  %v1731 = vpop.f32.mrb[0].mxu0
  %v1732 = vadd.f32 %v1587, %v1731
  %v1733 = vpop.f32.mrb[0].mxu0
  %1734 = vdwg.mxu0
  %v1735 = vlaneseq
  %v1736 = vshrl.u32 %v1735, 7
  %v1737 = vsub.s32 0, %v1736
  %v1738 = vrot.slane %v1396, %v1737
  %v1739 = vadd.f32 %v1657, %v1738
  %v1740 = vadd.f32 %v1662, %v1738
  %v1741 = vadd.f32 %v1667, %v1738
  %v1742 = vadd.f32 %v1672, %v1738
  %v1743 = vadd.f32 %v1677, %v1738
  %v1744 = vadd.f32 %v1682, %v1738
  %v1745 = vadd.f32 %v1687, %v1738
  %v1746 = vadd.f32 %v1692, %v1738
  %v1747 = vadd.f32 %v1697, %v1738
  %v1748 = vadd.f32 %v1702, %v1738
  %v1749 = vadd.f32 %v1707, %v1738
  %v1750 = vadd.f32 %v1712, %v1738
  %v1751 = vadd.f32 %v1717, %v1738
  %v1752 = vadd.f32 %v1722, %v1738
  %v1753 = vadd.f32 %v1727, %v1738
  %v1754 = vadd.f32 %v1732, %v1738
  %v1755 = vld [vmem:[%s2 + $0x178] sm:$0xff]
  %v1756 = vld [vmem:[%s2 + $0x180] sm:$0xff]
  %v1757 = vld [vmem:[%s2 + $0x188] sm:$0xff]
  %v1758 = vld [vmem:[%s2 + $0x190] sm:$0xff]
  %v1759 = vld [vmem:[%s2 + $0x198] sm:$0xff]
  %v1760 = vld [vmem:[%s2 + $0x1a0] sm:$0xff]
  %v1761 = vld [vmem:[%s2 + $0x1a8] sm:$0xff]
  %v1762 = vld [vmem:[%s2 + $0x1b0] sm:$0xff]
  %v1764 = vsel %vm34, %v1747, 0
  %v1767 = vsel %vm34, %v1748, 0
  %v1770 = vsel %vm34, %v1749, 0
  %v1773 = vsel %vm34, %v1750, 0
  %v1776 = vsel %vm34, %v1751, 0
  %v1779 = vsel %vm34, %v1752, 0
  %v1782 = vsel %vm34, %v1753, 0
  %v1785 = vsel %vm34, %v1754, 0
  %1787 = vmatprep.subr.mxu0 0.0
  %1788 = vmatpush1.msra.mxu0 %v1759
  %1789 = vmatprep.subr.mxu0 0.0
  %1790 = vmatpush1.msra.mxu0 %v1760
  %1791 = vmatprep.subr.mxu0 0.0
  %1792 = vmatpush1.msra.mxu0 %v1761
  %1793 = vmatprep.subr.mxu0 0.0
  %1794 = vmatpush1.msra.mxu0 %v1762
  %1795 = vmatprep.subr.mxu0 0.0
  %1796 = vmatpush1.msra.mxu0 0.0
  %1797 = vmatprep.subr.mxu0 0.0
  %1798 = vmatpush1.msra.mxu0 0.0
  %1799 = vmatprep.subr.mxu0 0.0
  %1800 = vmatpush1.msra.mxu0 0.0
  %1801 = vmatprep.subr.mxu0 0.0
  %1802 = vmatpush1.msra.mxu0 0.0
  %1803 = vmatprep.subr.mxu0 0.0
  %1804 = vmatpush1.msra.mxu0 0.0
  %1805 = vmatprep.subr.mxu0 0.0
  %1806 = vmatpush1.msra.mxu0 0.0
  %1807 = vmatprep.subr.mxu0 0.0
  %1808 = vmatpush1.msra.mxu0 0.0
  %1809 = vmatprep.subr.mxu0 0.0
  %1810 = vmatpush1.msra.mxu0 0.0
  %1811 = vmatprep.subr.mxu0 0.0
  %1812 = vmatpush1.msra.mxu0 0.0
  %1813 = vmatprep.subr.mxu0 0.0
  %1814 = vmatpush1.msra.mxu0 0.0
  %1815 = vmatprep.subr.mxu0 0.0
  %1816 = vmatpush1.msra.mxu0 0.0
  %1817 = vmatprep.subr.mxu0 0.0
  %1818 = vmatpush1.msra.mxu0 0.0
  %1819 = vmatprep.subr.mxu0 0.0
  %1820 = vmatpush1.msra.mxu0 0.0
  %1821 = vmatprep.subr.mxu0 0.0
  %1822 = vmatpush1.msra.mxu0 0.0
  %1823 = vmatprep.subr.mxu0 0.0
  %1824 = vmatpush1.msra.mxu0 0.0
  %1825 = vmatprep.subr.mxu0 0.0
  %1826 = vmatpush1.msra.mxu0 0.0
  %1827 = vmatprep.subr.mxu0 0.0
  %1828 = vmatpush1.msra.mxu0 0.0
  %1829 = vmatprep.subr.mxu0 0.0
  %1830 = vmatpush1.msra.mxu0 0.0
  %1831 = vmatprep.subr.mxu0 0.0
  %1832 = vmatpush1.msra.mxu0 0.0
  %1833 = vmatprep.subr.mxu0 0.0
  %1834 = vmatpush1.msra.mxu0 0.0
  %1835 = vmatprep.subr.mxu0 0.0
  %1836 = vmatpush1.msra.mxu0 0.0
  %1837 = vmatprep.subr.mxu0 0.0
  %1838 = vmatpush1.msra.mxu0 0.0
  %1839 = vmatprep.subr.mxu0 0.0
  %1840 = vmatpush1.msra.mxu0 0.0
  %1841 = vmatprep.subr.mxu0 0.0
  %1842 = vmatpush1.msra.mxu0 0.0
  %1843 = vmatprep.subr.mxu0 0.0
  %1844 = vmatpush1.msra.mxu0 0.0
  %1845 = vmatprep.subr.mxu0 0.0
  %1846 = vmatpush1.msra.mxu0 0.0
  %1847 = vmatprep.subr.mxu0 0.0
  %1848 = vmatpush1.msra.mxu0 0.0
  %1849 = vmatprep.subr.mxu0 0.0
  %1850 = vmatpush1.msra.mxu0 0.0
  %1851 = vmatprep.mubr.f32.mxu0 0.0
  %1852 = vmatmul.mubr.f32.gmra.mrb[0].mxu0 %v1764
  %v1853 = vpop.f32.mrb[0].mxu0
  %v1854 = vadd.f32 0.0, %v1853
  %v1855 = vpop.f32.mrb[0].mxu0
  %1856 = vmatprep.mubr.f32.mxu0 0.0
  %1857 = vmatmul.mubr.f32.gmra.mrb[0].mxu0 %v1767
  %v1858 = vpop.f32.mrb[0].mxu0
  %v1859 = vadd.f32 0.0, %v1858
  %v1860 = vpop.f32.mrb[0].mxu0
  %1861 = vmatprep.mubr.f32.mxu0 0.0
  %1862 = vmatmul.mubr.f32.gmra.mrb[0].mxu0 %v1770
  %v1863 = vpop.f32.mrb[0].mxu0
  %v1864 = vadd.f32 0.0, %v1863
  %v1865 = vpop.f32.mrb[0].mxu0
  %1866 = vmatprep.mubr.f32.mxu0 0.0
  %1867 = vmatmul.mubr.f32.gmra.mrb[0].mxu0 %v1773
  %v1868 = vpop.f32.mrb[0].mxu0
  %v1869 = vadd.f32 0.0, %v1868
  %v1870 = vpop.f32.mrb[0].mxu0
  %1871 = vmatprep.mubr.f32.mxu0 0.0
  %1872 = vmatmul.mubr.f32.gmra.mrb[0].mxu0 %v1776
  %v1873 = vpop.f32.mrb[0].mxu0
  %v1874 = vadd.f32 0.0, %v1873
  %v1875 = vpop.f32.mrb[0].mxu0
  %1876 = vmatprep.mubr.f32.mxu0 0.0
  %1877 = vmatmul.mubr.f32.gmra.mrb[0].mxu0 %v1779
  %v1878 = vpop.f32.mrb[0].mxu0
  %v1879 = vadd.f32 0.0, %v1878
  %v1880 = vpop.f32.mrb[0].mxu0
  %1881 = vmatprep.mubr.f32.mxu0 0.0
  %1882 = vmatmul.mubr.f32.gmra.mrb[0].mxu0 %v1782
  %v1883 = vpop.f32.mrb[0].mxu0
  %v1884 = vadd.f32 0.0, %v1883
  %v1885 = vpop.f32.mrb[0].mxu0
  %1886 = vmatprep.mubr.f32.mxu0 0.0
  %1887 = vmatmul.mubr.f32.gmra.mrb[0].mxu0 %v1785
  %v1888 = vpop.f32.mrb[0].mxu0
  %v1889 = vadd.f32 0.0, %v1888
  %v1890 = vpop.f32.mrb[0].mxu0
  %1891 = vdwg.mxu0
  %v1893 = vsel %vm34, %v1739, 0
  %v1896 = vsel %vm34, %v1740, 0
  %v1899 = vsel %vm34, %v1741, 0
  %v1902 = vsel %vm34, %v1742, 0
  %v1905 = vsel %vm34, %v1743, 0
  %v1908 = vsel %vm34, %v1744, 0
  %v1911 = vsel %vm34, %v1745, 0
  %v1914 = vsel %vm34, %v1746, 0
  %1916 = vmatprep.subr.mxu0 0.0
  %1917 = vmatpush1.msra.mxu0 %v1755
  %1918 = vmatprep.subr.mxu0 0.0
  %1919 = vmatpush1.msra.mxu0 %v1756
  %1920 = vmatprep.subr.mxu0 0.0
  %1921 = vmatpush1.msra.mxu0 %v1757
  %1922 = vmatprep.subr.mxu0 0.0
  %1923 = vmatpush1.msra.mxu0 %v1758
  %1924 = vmatprep.subr.mxu0 0.0
  %1925 = vmatpush1.msra.mxu0 0.0
  %1926 = vmatprep.subr.mxu0 0.0
  %1927 = vmatpush1.msra.mxu0 0.0
  %1928 = vmatprep.subr.mxu0 0.0
  %1929 = vmatpush1.msra.mxu0 0.0
  %1930 = vmatprep.subr.mxu0 0.0
  %1931 = vmatpush1.msra.mxu0 0.0
  %1932 = vmatprep.subr.mxu0 0.0
  %1933 = vmatpush1.msra.mxu0 0.0
  %1934 = vmatprep.subr.mxu0 0.0
  %1935 = vmatpush1.msra.mxu0 0.0
  %1936 = vmatprep.subr.mxu0 0.0
  %1937 = vmatpush1.msra.mxu0 0.0
  %1938 = vmatprep.subr.mxu0 0.0
  %1939 = vmatpush1.msra.mxu0 0.0
  %1940 = vmatprep.subr.mxu0 0.0
  %1941 = vmatpush1.msra.mxu0 0.0
  %1942 = vmatprep.subr.mxu0 0.0
  %1943 = vmatpush1.msra.mxu0 0.0
  %1944 = vmatprep.subr.mxu0 0.0
  %1945 = vmatpush1.msra.mxu0 0.0
  %1946 = vmatprep.subr.mxu0 0.0
  %1947 = vmatpush1.msra.mxu0 0.0
  %1948 = vmatprep.subr.mxu0 0.0
  %1949 = vmatpush1.msra.mxu0 0.0
  %1950 = vmatprep.subr.mxu0 0.0
  %1951 = vmatpush1.msra.mxu0 0.0
  %1952 = vmatprep.subr.mxu0 0.0
  %1953 = vmatpush1.msra.mxu0 0.0
  %1954 = vmatprep.subr.mxu0 0.0
  %1955 = vmatpush1.msra.mxu0 0.0
  %1956 = vmatprep.subr.mxu0 0.0
  %1957 = vmatpush1.msra.mxu0 0.0
  %1958 = vmatprep.subr.mxu0 0.0
  %1959 = vmatpush1.msra.mxu0 0.0
  %1960 = vmatprep.subr.mxu0 0.0
  %1961 = vmatpush1.msra.mxu0 0.0
  %1962 = vmatprep.subr.mxu0 0.0
  %1963 = vmatpush1.msra.mxu0 0.0
  %1964 = vmatprep.subr.mxu0 0.0
  %1965 = vmatpush1.msra.mxu0 0.0
  %1966 = vmatprep.subr.mxu0 0.0
  %1967 = vmatpush1.msra.mxu0 0.0
  %1968 = vmatprep.subr.mxu0 0.0
  %1969 = vmatpush1.msra.mxu0 0.0
  %1970 = vmatprep.subr.mxu0 0.0
  %1971 = vmatpush1.msra.mxu0 0.0
  %1972 = vmatprep.subr.mxu0 0.0
  %1973 = vmatpush1.msra.mxu0 0.0
  %1974 = vmatprep.subr.mxu0 0.0
  %1975 = vmatpush1.msra.mxu0 0.0
  %1976 = vmatprep.subr.mxu0 0.0
  %1977 = vmatpush1.msra.mxu0 0.0
  %1978 = vmatprep.subr.mxu0 0.0
  %1979 = vmatpush1.msra.mxu0 0.0
  %1980 = vmatprep.mubr.f32.mxu0 0.0
  %1981 = vmatmul.mubr.f32.gmra.mrb[0].mxu0 %v1893
  %v1982 = vpop.f32.mrb[0].mxu0
  %v1983 = vadd.f32 %v1854, %v1982
  %v1984 = vpop.f32.mrb[0].mxu0
  %1985 = vmatprep.mubr.f32.mxu0 0.0
  %1986 = vmatmul.mubr.f32.gmra.mrb[0].mxu0 %v1896
  %v1987 = vpop.f32.mrb[0].mxu0
  %v1988 = vadd.f32 %v1859, %v1987
  %v1989 = vpop.f32.mrb[0].mxu0
  %1990 = vmatprep.mubr.f32.mxu0 0.0
  %1991 = vmatmul.mubr.f32.gmra.mrb[0].mxu0 %v1899
  %v1992 = vpop.f32.mrb[0].mxu0
  %v1993 = vadd.f32 %v1864, %v1992
  %v1994 = vpop.f32.mrb[0].mxu0
  %1995 = vmatprep.mubr.f32.mxu0 0.0
  %1996 = vmatmul.mubr.f32.gmra.mrb[0].mxu0 %v1902
  %v1997 = vpop.f32.mrb[0].mxu0
  %v1998 = vadd.f32 %v1869, %v1997
  %v1999 = vpop.f32.mrb[0].mxu0
  %2000 = vmatprep.mubr.f32.mxu0 0.0
  %2001 = vmatmul.mubr.f32.gmra.mrb[0].mxu0 %v1905
  %v2002 = vpop.f32.mrb[0].mxu0
  %v2003 = vadd.f32 %v1874, %v2002
  %v2004 = vpop.f32.mrb[0].mxu0
  %2005 = vmatprep.mubr.f32.mxu0 0.0
  %2006 = vmatmul.mubr.f32.gmra.mrb[0].mxu0 %v1908
  %v2007 = vpop.f32.mrb[0].mxu0
  %v2008 = vadd.f32 %v1879, %v2007
  %v2009 = vpop.f32.mrb[0].mxu0
  %2010 = vmatprep.mubr.f32.mxu0 0.0
  %2011 = vmatmul.mubr.f32.gmra.mrb[0].mxu0 %v1911
  %v2012 = vpop.f32.mrb[0].mxu0
  %v2013 = vadd.f32 %v1884, %v2012
  %v2014 = vpop.f32.mrb[0].mxu0
  %2015 = vmatprep.mubr.f32.mxu0 0.0
  %2016 = vmatmul.mubr.f32.gmra.mrb[0].mxu0 %v1914
  %v2017 = vpop.f32.mrb[0].mxu0
  %v2018 = vadd.f32 %v1889, %v2017
  %v2019 = vpop.f32.mrb[0].mxu0
  %2020 = vdwg.mxu0
  %v2021 = vld [vmem:[%s3 + $0xd] sm:$0x1]
  %v2022 = vlaneseq
  %v2023 = vshrl.u32 %v2022, 7
  %v2024 = vsub.s32 0, %v2023
  %v2025 = vrot.slane %v2021, %v2024
  %v2026 = vadd.f32 %v1983, %v2025
  %v2027 = vadd.f32 %v1988, %v2025
  %v2028 = vadd.f32 %v1993, %v2025
  %v2029 = vadd.f32 %v1998, %v2025
  %v2030 = vadd.f32 %v2003, %v2025
  %v2031 = vadd.f32 %v2008, %v2025
  %v2032 = vadd.f32 %v2013, %v2025
  %v2033 = vadd.f32 %v2018, %v2025
  %v2034 = vmax.f32 %v2026, 0.0
  %v2035 = vmax.f32 %v2027, 0.0
  %v2036 = vmax.f32 %v2028, 0.0
  %v2037 = vmax.f32 %v2029, 0.0
  %v2038 = vmax.f32 %v2030, 0.0
  %v2039 = vmax.f32 %v2031, 0.0
  %v2040 = vmax.f32 %v2032, 0.0
  %v2041 = vmax.f32 %v2033, 0.0
  %v2042 = vld [vmem:[%s2 + $0x1b8] sm:$0xff]
  %v2043 = vld [vmem:[%s2 + $0x1c0] sm:$0xff]
  %v2044 = vld [vmem:[%s2 + $0x1c8] sm:$0xff]
  %v2045 = vld [vmem:[%s2 + $0x1d0] sm:$0xff]
  %v2046 = vld [vmem:[%s3 + $0xe] sm:$0x1]
  %v2047 = vlaneseq
  %v2048 = vshrl.u32 %v2047, 7
  %v2049 = vsub.s32 0, %v2048
  %v2050 = vrot.slane %v2046, %v2049
  %v2052 = vsel %vm34, %v2034, 0
  %v2055 = vsel %vm34, %v2035, 0
  %v2058 = vsel %vm34, %v2036, 0
  %v2061 = vsel %vm34, %v2037, 0
  %v2064 = vsel %vm34, %v2038, 0
  %v2067 = vsel %vm34, %v2039, 0
  %v2070 = vsel %vm34, %v2040, 0
  %v2073 = vsel %vm34, %v2041, 0
  %2075 = vmatprep.subr.mxu0 0.0
  %2076 = vmatpush1.msra.mxu0 %v2042
  %2077 = vmatprep.subr.mxu0 0.0
  %2078 = vmatpush1.msra.mxu0 %v2043
  %2079 = vmatprep.subr.mxu0 0.0
  %2080 = vmatpush1.msra.mxu0 %v2044
  %2081 = vmatprep.subr.mxu0 0.0
  %2082 = vmatpush1.msra.mxu0 %v2045
  %2083 = vmatprep.subr.mxu0 0.0
  %2084 = vmatpush1.msra.mxu0 0.0
  %2085 = vmatprep.subr.mxu0 0.0
  %2086 = vmatpush1.msra.mxu0 0.0
  %2087 = vmatprep.subr.mxu0 0.0
  %2088 = vmatpush1.msra.mxu0 0.0
  %2089 = vmatprep.subr.mxu0 0.0
  %2090 = vmatpush1.msra.mxu0 0.0
  %2091 = vmatprep.subr.mxu0 0.0
  %2092 = vmatpush1.msra.mxu0 0.0
  %2093 = vmatprep.subr.mxu0 0.0
  %2094 = vmatpush1.msra.mxu0 0.0
  %2095 = vmatprep.subr.mxu0 0.0
  %2096 = vmatpush1.msra.mxu0 0.0
  %2097 = vmatprep.subr.mxu0 0.0
  %2098 = vmatpush1.msra.mxu0 0.0
  %2099 = vmatprep.subr.mxu0 0.0
  %2100 = vmatpush1.msra.mxu0 0.0
  %2101 = vmatprep.subr.mxu0 0.0
  %2102 = vmatpush1.msra.mxu0 0.0
  %2103 = vmatprep.subr.mxu0 0.0
  %2104 = vmatpush1.msra.mxu0 0.0
  %2105 = vmatprep.subr.mxu0 0.0
  %2106 = vmatpush1.msra.mxu0 0.0
  %2107 = vmatprep.subr.mxu0 0.0
  %2108 = vmatpush1.msra.mxu0 0.0
  %2109 = vmatprep.subr.mxu0 0.0
  %2110 = vmatpush1.msra.mxu0 0.0
  %2111 = vmatprep.subr.mxu0 0.0
  %2112 = vmatpush1.msra.mxu0 0.0
  %2113 = vmatprep.subr.mxu0 0.0
  %2114 = vmatpush1.msra.mxu0 0.0
  %2115 = vmatprep.subr.mxu0 0.0
  %2116 = vmatpush1.msra.mxu0 0.0
  %2117 = vmatprep.subr.mxu0 0.0
  %2118 = vmatpush1.msra.mxu0 0.0
  %2119 = vmatprep.subr.mxu0 0.0
  %2120 = vmatpush1.msra.mxu0 0.0
  %2121 = vmatprep.subr.mxu0 0.0
  %2122 = vmatpush1.msra.mxu0 0.0
  %2123 = vmatprep.subr.mxu0 0.0
  %2124 = vmatpush1.msra.mxu0 0.0
  %2125 = vmatprep.subr.mxu0 0.0
  %2126 = vmatpush1.msra.mxu0 0.0
  %2127 = vmatprep.subr.mxu0 0.0
  %2128 = vmatpush1.msra.mxu0 0.0
  %2129 = vmatprep.subr.mxu0 0.0
  %2130 = vmatpush1.msra.mxu0 0.0
  %2131 = vmatprep.subr.mxu0 0.0
  %2132 = vmatpush1.msra.mxu0 0.0
  %2133 = vmatprep.subr.mxu0 0.0
  %2134 = vmatpush1.msra.mxu0 0.0
  %2135 = vmatprep.subr.mxu0 0.0
  %2136 = vmatpush1.msra.mxu0 0.0
  %2137 = vmatprep.subr.mxu0 0.0
  %2138 = vmatpush1.msra.mxu0 0.0
  %2139 = vmatprep.mubr.f32.mxu0 0.0
  %2140 = vmatmul.mubr.f32.gmra.mrb[0].mxu0 %v2052
  %v2141 = vpop.f32.mrb[0].mxu0
  %v2142 = vadd.f32 %v2050, %v2141
  %v2143 = vpop.f32.mrb[0].mxu0
  %2144 = vmatprep.mubr.f32.mxu0 0.0
  %2145 = vmatmul.mubr.f32.gmra.mrb[0].mxu0 %v2055
  %v2146 = vpop.f32.mrb[0].mxu0
  %v2147 = vadd.f32 %v2050, %v2146
  %v2148 = vpop.f32.mrb[0].mxu0
  %2149 = vmatprep.mubr.f32.mxu0 0.0
  %2150 = vmatmul.mubr.f32.gmra.mrb[0].mxu0 %v2058
  %v2151 = vpop.f32.mrb[0].mxu0
  %v2152 = vadd.f32 %v2050, %v2151
  %v2153 = vpop.f32.mrb[0].mxu0
  %2154 = vmatprep.mubr.f32.mxu0 0.0
  %2155 = vmatmul.mubr.f32.gmra.mrb[0].mxu0 %v2061
  %v2156 = vpop.f32.mrb[0].mxu0
  %v2157 = vadd.f32 %v2050, %v2156
  %v2158 = vpop.f32.mrb[0].mxu0
  %2159 = vmatprep.mubr.f32.mxu0 0.0
  %2160 = vmatmul.mubr.f32.gmra.mrb[0].mxu0 %v2064
  %v2161 = vpop.f32.mrb[0].mxu0
  %v2162 = vadd.f32 %v2050, %v2161
  %v2163 = vpop.f32.mrb[0].mxu0
  %2164 = vmatprep.mubr.f32.mxu0 0.0
  %2165 = vmatmul.mubr.f32.gmra.mrb[0].mxu0 %v2067
  %v2166 = vpop.f32.mrb[0].mxu0
  %v2167 = vadd.f32 %v2050, %v2166
  %v2168 = vpop.f32.mrb[0].mxu0
  %2169 = vmatprep.mubr.f32.mxu0 0.0
  %2170 = vmatmul.mubr.f32.gmra.mrb[0].mxu0 %v2070
  %v2171 = vpop.f32.mrb[0].mxu0
  %v2172 = vadd.f32 %v2050, %v2171
  %v2173 = vpop.f32.mrb[0].mxu0
  %2174 = vmatprep.mubr.f32.mxu0 0.0
  %2175 = vmatmul.mubr.f32.gmra.mrb[0].mxu0 %v2073
  %v2176 = vpop.f32.mrb[0].mxu0
  %v2177 = vadd.f32 %v2050, %v2176
  %v2178 = vpop.f32.mrb[0].mxu0
  %2179 = vdwg.mxu0
  %v2180 = vmax.f32 %v2142, 0.0
  %v2181 = vmax.f32 %v2147, 0.0
  %v2182 = vmax.f32 %v2152, 0.0
  %v2183 = vmax.f32 %v2157, 0.0
  %v2184 = vmax.f32 %v2162, 0.0
  %v2185 = vmax.f32 %v2167, 0.0
  %v2186 = vmax.f32 %v2172, 0.0
  %v2187 = vmax.f32 %v2177, 0.0
  %v2188 = vld [vmem:[%s2 + $0x1d8] sm:$0xff]
  %v2189 = vld [vmem:[%s2 + $0x1e0] sm:$0xff]
  %v2190 = vld [vmem:[%s2 + $0x1e8] sm:$0xff]
  %v2191 = vld [vmem:[%s2 + $0x1f0] sm:$0xff]
  %v2192 = vld [vmem:[%s3 + $0xf] sm:$0x1]
  %v2193 = vlaneseq
  %v2194 = vshrl.u32 %v2193, 7
  %v2195 = vsub.s32 0, %v2194
  %v2196 = vrot.slane %v2192, %v2195
  %v2198 = vsel %vm34, %v2180, 0
  %v2201 = vsel %vm34, %v2181, 0
  %v2204 = vsel %vm34, %v2182, 0
  %v2207 = vsel %vm34, %v2183, 0
  %v2210 = vsel %vm34, %v2184, 0
  %v2213 = vsel %vm34, %v2185, 0
  %v2216 = vsel %vm34, %v2186, 0
  %v2219 = vsel %vm34, %v2187, 0
  %2221 = vmatprep.subr.mxu0 0.0
  %2222 = vmatpush1.msra.mxu0 %v2188
  %2223 = vmatprep.subr.mxu0 0.0
  %2224 = vmatpush1.msra.mxu0 %v2189
  %2225 = vmatprep.subr.mxu0 0.0
  %2226 = vmatpush1.msra.mxu0 %v2190
  %2227 = vmatprep.subr.mxu0 0.0
  %2228 = vmatpush1.msra.mxu0 %v2191
  %2229 = vmatprep.subr.mxu0 0.0
  %2230 = vmatpush1.msra.mxu0 0.0
  %2231 = vmatprep.subr.mxu0 0.0
  %2232 = vmatpush1.msra.mxu0 0.0
  %2233 = vmatprep.subr.mxu0 0.0
  %2234 = vmatpush1.msra.mxu0 0.0
  %2235 = vmatprep.subr.mxu0 0.0
  %2236 = vmatpush1.msra.mxu0 0.0
  %2237 = vmatprep.subr.mxu0 0.0
  %2238 = vmatpush1.msra.mxu0 0.0
  %2239 = vmatprep.subr.mxu0 0.0
  %2240 = vmatpush1.msra.mxu0 0.0
  %2241 = vmatprep.subr.mxu0 0.0
  %2242 = vmatpush1.msra.mxu0 0.0
  %2243 = vmatprep.subr.mxu0 0.0
  %2244 = vmatpush1.msra.mxu0 0.0
  %2245 = vmatprep.subr.mxu0 0.0
  %2246 = vmatpush1.msra.mxu0 0.0
  %2247 = vmatprep.subr.mxu0 0.0
  %2248 = vmatpush1.msra.mxu0 0.0
  %2249 = vmatprep.subr.mxu0 0.0
  %2250 = vmatpush1.msra.mxu0 0.0
  %2251 = vmatprep.subr.mxu0 0.0
  %2252 = vmatpush1.msra.mxu0 0.0
  %2253 = vmatprep.subr.mxu0 0.0
  %2254 = vmatpush1.msra.mxu0 0.0
  %2255 = vmatprep.subr.mxu0 0.0
  %2256 = vmatpush1.msra.mxu0 0.0
  %2257 = vmatprep.subr.mxu0 0.0
  %2258 = vmatpush1.msra.mxu0 0.0
  %2259 = vmatprep.subr.mxu0 0.0
  %2260 = vmatpush1.msra.mxu0 0.0
  %2261 = vmatprep.subr.mxu0 0.0
  %2262 = vmatpush1.msra.mxu0 0.0
  %2263 = vmatprep.subr.mxu0 0.0
  %2264 = vmatpush1.msra.mxu0 0.0
  %2265 = vmatprep.subr.mxu0 0.0
  %2266 = vmatpush1.msra.mxu0 0.0
  %2267 = vmatprep.subr.mxu0 0.0
  %2268 = vmatpush1.msra.mxu0 0.0
  %2269 = vmatprep.subr.mxu0 0.0
  %2270 = vmatpush1.msra.mxu0 0.0
  %2271 = vmatprep.subr.mxu0 0.0
  %2272 = vmatpush1.msra.mxu0 0.0
  %2273 = vmatprep.subr.mxu0 0.0
  %2274 = vmatpush1.msra.mxu0 0.0
  %2275 = vmatprep.subr.mxu0 0.0
  %2276 = vmatpush1.msra.mxu0 0.0
  %2277 = vmatprep.subr.mxu0 0.0
  %2278 = vmatpush1.msra.mxu0 0.0
  %2279 = vmatprep.subr.mxu0 0.0
  %2280 = vmatpush1.msra.mxu0 0.0
  %2281 = vmatprep.subr.mxu0 0.0
  %2282 = vmatpush1.msra.mxu0 0.0
  %2283 = vmatprep.subr.mxu0 0.0
  %2284 = vmatpush1.msra.mxu0 0.0
  %2285 = vmatprep.mubr.f32.mxu0 0.0
  %2286 = vmatmul.mubr.f32.gmra.mrb[0].mxu0 %v2198
  %v2287 = vpop.f32.mrb[0].mxu0
  %v2288 = vadd.f32 %v2196, %v2287
  %v2289 = vpop.f32.mrb[0].mxu0
  %2290 = vmatprep.mubr.f32.mxu0 0.0
  %2291 = vmatmul.mubr.f32.gmra.mrb[0].mxu0 %v2201
  %v2292 = vpop.f32.mrb[0].mxu0
  %v2293 = vadd.f32 %v2196, %v2292
  %v2294 = vpop.f32.mrb[0].mxu0
  %2295 = vmatprep.mubr.f32.mxu0 0.0
  %2296 = vmatmul.mubr.f32.gmra.mrb[0].mxu0 %v2204
  %v2297 = vpop.f32.mrb[0].mxu0
  %v2298 = vadd.f32 %v2196, %v2297
  %v2299 = vpop.f32.mrb[0].mxu0
  %2300 = vmatprep.mubr.f32.mxu0 0.0
  %2301 = vmatmul.mubr.f32.gmra.mrb[0].mxu0 %v2207
  %v2302 = vpop.f32.mrb[0].mxu0
  %v2303 = vadd.f32 %v2196, %v2302
  %v2304 = vpop.f32.mrb[0].mxu0
  %2305 = vmatprep.mubr.f32.mxu0 0.0
  %2306 = vmatmul.mubr.f32.gmra.mrb[0].mxu0 %v2210
  %v2307 = vpop.f32.mrb[0].mxu0
  %v2308 = vadd.f32 %v2196, %v2307
  %v2309 = vpop.f32.mrb[0].mxu0
  %2310 = vmatprep.mubr.f32.mxu0 0.0
  %2311 = vmatmul.mubr.f32.gmra.mrb[0].mxu0 %v2213
  %v2312 = vpop.f32.mrb[0].mxu0
  %v2313 = vadd.f32 %v2196, %v2312
  %v2314 = vpop.f32.mrb[0].mxu0
  %2315 = vmatprep.mubr.f32.mxu0 0.0
  %2316 = vmatmul.mubr.f32.gmra.mrb[0].mxu0 %v2216
  %v2317 = vpop.f32.mrb[0].mxu0
  %v2318 = vadd.f32 %v2196, %v2317
  %v2319 = vpop.f32.mrb[0].mxu0
  %2320 = vmatprep.mubr.f32.mxu0 0.0
  %2321 = vmatmul.mubr.f32.gmra.mrb[0].mxu0 %v2219
  %v2322 = vpop.f32.mrb[0].mxu0
  %v2323 = vadd.f32 %v2196, %v2322
  %v2324 = vpop.f32.mrb[0].mxu0
  %2325 = vdwg.mxu0
  %vm2326 = vcmask 130048
  %v2327 = vsel %vm2326, %v2288, 0.0
  %v2328 = vsel %vm2326, %v2293, 0.0
  %v2329 = vadd.f32 %v2327, %v2328
  %v2330 = vsel %vm2326, %v2298, 0.0
  %v2331 = vadd.f32 %v2329, %v2330
  %v2332 = vsel %vm2326, %v2303, 0.0
  %v2333 = vadd.f32 %v2331, %v2332
  %v2334 = vsel %vm2326, %v2308, 0.0
  %v2335 = vadd.f32 %v2333, %v2334
  %v2336 = vsel %vm2326, %v2313, 0.0
  %v2337 = vadd.f32 %v2335, %v2336
  %v2338 = vsel %vm2326, %v2318, 0.0
  %v2339 = vadd.f32 %v2337, %v2338
  %v2340 = vsel %vm2326, %v2323, 0.0
  %v2341 = vadd.f32 %v2339, %v2340
  %v2342 = vrot.slane %v2341, 4
  %v2343 = vadd.f32 %v2341, %v2342
  %v2344 = vrot.slane %v2343, 2
  %v2345 = vadd.f32 %v2343, %v2344
  %v2346 = vrot.slane %v2345, 1
  %v2347 = vadd.f32 %v2345, %v2346
  %v2348 = vmul.f32 %v2347, %v924
  %v2349 = vsub.f32 %v2288, %v2348
  %v2350 = vsub.f32 %v2293, %v2348
  %v2351 = vsub.f32 %v2298, %v2348
  %v2352 = vsub.f32 %v2303, %v2348
  %v2353 = vsub.f32 %v2308, %v2348
  %v2354 = vsub.f32 %v2313, %v2348
  %v2355 = vsub.f32 %v2318, %v2348
  %v2356 = vsub.f32 %v2323, %v2348
  %v2357 = vmul.f32 %v2349, %v2349
  %v2358 = vmul.f32 %v2350, %v2350
  %v2359 = vmul.f32 %v2351, %v2351
  %v2360 = vmul.f32 %v2352, %v2352
  %v2361 = vmul.f32 %v2353, %v2353
  %v2362 = vmul.f32 %v2354, %v2354
  %v2363 = vmul.f32 %v2355, %v2355
  %v2364 = vmul.f32 %v2356, %v2356
  %v2365 = vsel %vm2326, %v2357, 0.0
  %v2366 = vsel %vm2326, %v2358, 0.0
  %v2367 = vadd.f32 %v2365, %v2366
  %v2368 = vsel %vm2326, %v2359, 0.0
  %v2369 = vadd.f32 %v2367, %v2368
  %v2370 = vsel %vm2326, %v2360, 0.0
  %v2371 = vadd.f32 %v2369, %v2370
  %v2372 = vsel %vm2326, %v2361, 0.0
  %v2373 = vadd.f32 %v2371, %v2372
  %v2374 = vsel %vm2326, %v2362, 0.0
  %v2375 = vadd.f32 %v2373, %v2374
  %v2376 = vsel %vm2326, %v2363, 0.0
  %v2377 = vadd.f32 %v2375, %v2376
  %v2378 = vsel %vm2326, %v2364, 0.0
  %v2379 = vadd.f32 %v2377, %v2378
  %v2380 = vrot.slane %v2379, 4
  %v2381 = vadd.f32 %v2379, %v2380
  %v2382 = vrot.slane %v2381, 2
  %v2383 = vadd.f32 %v2381, %v2382
  %v2384 = vrot.slane %v2383, 1
  %v2385 = vadd.f32 %v2383, %v2384
  %v2386 = vmul.f32 %v2385, %v924
  %v2387 = vadd.f32 %v2386, 1e-05
  %v2388 = vrsqrt.pop %v2387
  %v2389 = vmul.f32 %v2349, %v2388
  %v2390 = vmul.f32 %v2350, %v2388
  %v2391 = vmul.f32 %v2351, %v2388
  %v2392 = vmul.f32 %v2352, %v2388
  %v2393 = vmul.f32 %v2353, %v2388
  %v2394 = vmul.f32 %v2354, %v2388
  %v2395 = vmul.f32 %v2355, %v2388
  %v2396 = vmul.f32 %v2356, %v2388
  %v2397 = vld [vmem:[%s3 + $0x10] sm:$0x1]
  %v2398 = vlaneseq
  %v2399 = vshrl.u32 %v2398, 7
  %v2400 = vsub.s32 0, %v2399
  %v2401 = vrot.slane %v2397, %v2400
  %v2402 = vmul.f32 %v2389, %v2401
  %v2403 = vmul.f32 %v2390, %v2401
  %v2404 = vmul.f32 %v2391, %v2401
  %v2405 = vmul.f32 %v2392, %v2401
  %v2406 = vmul.f32 %v2393, %v2401
  %v2407 = vmul.f32 %v2394, %v2401
  %v2408 = vmul.f32 %v2395, %v2401
  %v2409 = vmul.f32 %v2396, %v2401
  %v2410 = vld [vmem:[%s3 + $0x11] sm:$0x1]
  %v2411 = vlaneseq
  %v2412 = vshrl.u32 %v2411, 7
  %v2413 = vsub.s32 0, %v2412
  %v2414 = vrot.slane %v2410, %v2413
  %v2415 = vadd.f32 %v2402, %v2414
  %v2416 = vadd.f32 %v2403, %v2414
  %v2417 = vadd.f32 %v2404, %v2414
  %v2418 = vadd.f32 %v2405, %v2414
  %v2419 = vadd.f32 %v2406, %v2414
  %v2420 = vadd.f32 %v2407, %v2414
  %v2421 = vadd.f32 %v2408, %v2414
  %v2422 = vadd.f32 %v2409, %v2414
  %v2423 = vtanh.pop %v2415
  %v2424 = vtanh.pop %v2416
  %v2425 = vtanh.pop %v2417
  %v2426 = vtanh.pop %v2418
  %v2427 = vtanh.pop %v2419
  %v2428 = vtanh.pop %v2420
  %v2429 = vtanh.pop %v2421
  %v2430 = vtanh.pop %v2422
  %v2431 = vld [vmem:[%s2 + $0x1f8] sm:$0xff]
  %v2432 = vld [vmem:[%s2 + $0x200] sm:$0xff]
  %v2433 = vld [vmem:[%s3 + $0x12] sm:$0x1]
  %v2434 = vlaneseq
  %v2435 = vshrl.u32 %v2434, 7
  %v2436 = vsub.s32 0, %v2435
  %v2437 = vrot.slane %v2433, %v2436
  %v2439 = vsel %vm2326, %v2423, 0
  %v2442 = vsel %vm2326, %v2424, 0
  %v2445 = vsel %vm2326, %v2425, 0
  %v2448 = vsel %vm2326, %v2426, 0
  %v2451 = vsel %vm2326, %v2427, 0
  %v2454 = vsel %vm2326, %v2428, 0
  %v2457 = vsel %vm2326, %v2429, 0
  %v2460 = vsel %vm2326, %v2430, 0
  %2462 = vmatprep.subr.mxu0 0.0
  %2463 = vmatpush1.msra.mxu0 %v2431
  %2464 = vmatprep.subr.mxu0 0.0
  %2465 = vmatpush1.msra.mxu0 %v2432
  %2466 = vmatprep.subr.mxu0 0.0
  %2467 = vmatpush1.msra.mxu0 0.0
  %2468 = vmatprep.subr.mxu0 0.0
  %2469 = vmatpush1.msra.mxu0 0.0
  %2470 = vmatprep.subr.mxu0 0.0
  %2471 = vmatpush1.msra.mxu0 0.0
  %2472 = vmatprep.subr.mxu0 0.0
  %2473 = vmatpush1.msra.mxu0 0.0
  %2474 = vmatprep.subr.mxu0 0.0
  %2475 = vmatpush1.msra.mxu0 0.0
  %2476 = vmatprep.subr.mxu0 0.0
  %2477 = vmatpush1.msra.mxu0 0.0
  %2478 = vmatprep.subr.mxu0 0.0
  %2479 = vmatpush1.msra.mxu0 0.0
  %2480 = vmatprep.subr.mxu0 0.0
  %2481 = vmatpush1.msra.mxu0 0.0
  %2482 = vmatprep.subr.mxu0 0.0
  %2483 = vmatpush1.msra.mxu0 0.0
  %2484 = vmatprep.subr.mxu0 0.0
  %2485 = vmatpush1.msra.mxu0 0.0
  %2486 = vmatprep.subr.mxu0 0.0
  %2487 = vmatpush1.msra.mxu0 0.0
  %2488 = vmatprep.subr.mxu0 0.0
  %2489 = vmatpush1.msra.mxu0 0.0
  %2490 = vmatprep.subr.mxu0 0.0
  %2491 = vmatpush1.msra.mxu0 0.0
  %2492 = vmatprep.subr.mxu0 0.0
  %2493 = vmatpush1.msra.mxu0 0.0
  %2494 = vmatprep.subr.mxu0 0.0
  %2495 = vmatpush1.msra.mxu0 0.0
  %2496 = vmatprep.subr.mxu0 0.0
  %2497 = vmatpush1.msra.mxu0 0.0
  %2498 = vmatprep.subr.mxu0 0.0
  %2499 = vmatpush1.msra.mxu0 0.0
  %2500 = vmatprep.subr.mxu0 0.0
  %2501 = vmatpush1.msra.mxu0 0.0
  %2502 = vmatprep.subr.mxu0 0.0
  %2503 = vmatpush1.msra.mxu0 0.0
  %2504 = vmatprep.subr.mxu0 0.0
  %2505 = vmatpush1.msra.mxu0 0.0
  %2506 = vmatprep.subr.mxu0 0.0
  %2507 = vmatpush1.msra.mxu0 0.0
  %2508 = vmatprep.subr.mxu0 0.0
  %2509 = vmatpush1.msra.mxu0 0.0
  %2510 = vmatprep.subr.mxu0 0.0
  %2511 = vmatpush1.msra.mxu0 0.0
  %2512 = vmatprep.subr.mxu0 0.0
  %2513 = vmatpush1.msra.mxu0 0.0
  %2514 = vmatprep.subr.mxu0 0.0
  %2515 = vmatpush1.msra.mxu0 0.0
  %2516 = vmatprep.subr.mxu0 0.0
  %2517 = vmatpush1.msra.mxu0 0.0
  %2518 = vmatprep.subr.mxu0 0.0
  %2519 = vmatpush1.msra.mxu0 0.0
  %2520 = vmatprep.subr.mxu0 0.0
  %2521 = vmatpush1.msra.mxu0 0.0
  %2522 = vmatprep.subr.mxu0 0.0
  %2523 = vmatpush1.msra.mxu0 0.0
  %2524 = vmatprep.subr.mxu0 0.0
  %2525 = vmatpush1.msra.mxu0 0.0
  %2526 = vmatprep.mubr.f32.mxu0 0.0
  %2527 = vmatmul.mubr.f32.gmra.mrb[0].mxu0 %v2439
  %v2528 = vpop.f32.mrb[0].mxu0
  %v2529 = vadd.f32 %v2437, %v2528
  %v2530 = vpop.f32.mrb[0].mxu0
  %2531 = vmatprep.mubr.f32.mxu0 0.0
  %2532 = vmatmul.mubr.f32.gmra.mrb[0].mxu0 %v2442
  %v2533 = vpop.f32.mrb[0].mxu0
  %v2534 = vadd.f32 %v2437, %v2533
  %v2535 = vpop.f32.mrb[0].mxu0
  %2536 = vmatprep.mubr.f32.mxu0 0.0
  %2537 = vmatmul.mubr.f32.gmra.mrb[0].mxu0 %v2445
  %v2538 = vpop.f32.mrb[0].mxu0
  %v2539 = vadd.f32 %v2437, %v2538
  %v2540 = vpop.f32.mrb[0].mxu0
  %2541 = vmatprep.mubr.f32.mxu0 0.0
  %2542 = vmatmul.mubr.f32.gmra.mrb[0].mxu0 %v2448
  %v2543 = vpop.f32.mrb[0].mxu0
  %v2544 = vadd.f32 %v2437, %v2543
  %v2545 = vpop.f32.mrb[0].mxu0
  %2546 = vmatprep.mubr.f32.mxu0 0.0
  %2547 = vmatmul.mubr.f32.gmra.mrb[0].mxu0 %v2451
  %v2548 = vpop.f32.mrb[0].mxu0
  %v2549 = vadd.f32 %v2437, %v2548
  %v2550 = vpop.f32.mrb[0].mxu0
  %2551 = vmatprep.mubr.f32.mxu0 0.0
  %2552 = vmatmul.mubr.f32.gmra.mrb[0].mxu0 %v2454
  %v2553 = vpop.f32.mrb[0].mxu0
  %v2554 = vadd.f32 %v2437, %v2553
  %v2555 = vpop.f32.mrb[0].mxu0
  %2556 = vmatprep.mubr.f32.mxu0 0.0
  %2557 = vmatmul.mubr.f32.gmra.mrb[0].mxu0 %v2457
  %v2558 = vpop.f32.mrb[0].mxu0
  %v2559 = vadd.f32 %v2437, %v2558
  %v2560 = vpop.f32.mrb[0].mxu0
  %2561 = vmatprep.mubr.f32.mxu0 0.0
  %2562 = vmatmul.mubr.f32.gmra.mrb[0].mxu0 %v2460
  %v2563 = vpop.f32.mrb[0].mxu0
  %v2564 = vadd.f32 %v2437, %v2563
  %v2565 = vpop.f32.mrb[0].mxu0
  %2566 = vdwg.mxu0
  %v2567 = vmax.f32 %v2529, 0.0
  %v2568 = vmax.f32 %v2534, 0.0
  %v2569 = vmax.f32 %v2539, 0.0
  %v2570 = vmax.f32 %v2544, 0.0
  %v2571 = vmax.f32 %v2549, 0.0
  %v2572 = vmax.f32 %v2554, 0.0
  %v2573 = vmax.f32 %v2559, 0.0
  %v2574 = vmax.f32 %v2564, 0.0
  %v2575 = vld [vmem:[%s2 + $0x208] sm:$0xff]
  %v2576 = vld [vmem:[%s2 + $0x210] sm:$0xff]
  %v2577 = vld [vmem:[%s2 + $0x218] sm:$0xff]
  %v2578 = vld [vmem:[%s2 + $0x220] sm:$0xff]
  %v2579 = vld [vmem:[%s3 + $0x13] sm:$0x1]
  %v2580 = vlaneseq
  %v2581 = vshrl.u32 %v2580, 7
  %v2582 = vsub.s32 0, %v2581
  %v2583 = vrot.slane %v2579, %v2582
  %v2585 = vsel %vm34, %v2567, 0
  %v2588 = vsel %vm34, %v2568, 0
  %v2591 = vsel %vm34, %v2569, 0
  %v2594 = vsel %vm34, %v2570, 0
  %v2597 = vsel %vm34, %v2571, 0
  %v2600 = vsel %vm34, %v2572, 0
  %v2603 = vsel %vm34, %v2573, 0
  %v2606 = vsel %vm34, %v2574, 0
  %2608 = vmatprep.subr.mxu0 0.0
  %2609 = vmatpush1.msra.mxu0 %v2575
  %2610 = vmatprep.subr.mxu0 0.0
  %2611 = vmatpush1.msra.mxu0 %v2576
  %2612 = vmatprep.subr.mxu0 0.0
  %2613 = vmatpush1.msra.mxu0 %v2577
  %2614 = vmatprep.subr.mxu0 0.0
  %2615 = vmatpush1.msra.mxu0 %v2578
  %2616 = vmatprep.subr.mxu0 0.0
  %2617 = vmatpush1.msra.mxu0 0.0
  %2618 = vmatprep.subr.mxu0 0.0
  %2619 = vmatpush1.msra.mxu0 0.0
  %2620 = vmatprep.subr.mxu0 0.0
  %2621 = vmatpush1.msra.mxu0 0.0
  %2622 = vmatprep.subr.mxu0 0.0
  %2623 = vmatpush1.msra.mxu0 0.0
  %2624 = vmatprep.subr.mxu0 0.0
  %2625 = vmatpush1.msra.mxu0 0.0
  %2626 = vmatprep.subr.mxu0 0.0
  %2627 = vmatpush1.msra.mxu0 0.0
  %2628 = vmatprep.subr.mxu0 0.0
  %2629 = vmatpush1.msra.mxu0 0.0
  %2630 = vmatprep.subr.mxu0 0.0
  %2631 = vmatpush1.msra.mxu0 0.0
  %2632 = vmatprep.subr.mxu0 0.0
  %2633 = vmatpush1.msra.mxu0 0.0
  %2634 = vmatprep.subr.mxu0 0.0
  %2635 = vmatpush1.msra.mxu0 0.0
  %2636 = vmatprep.subr.mxu0 0.0
  %2637 = vmatpush1.msra.mxu0 0.0
  %2638 = vmatprep.subr.mxu0 0.0
  %2639 = vmatpush1.msra.mxu0 0.0
  %2640 = vmatprep.subr.mxu0 0.0
  %2641 = vmatpush1.msra.mxu0 0.0
  %2642 = vmatprep.subr.mxu0 0.0
  %2643 = vmatpush1.msra.mxu0 0.0
  %2644 = vmatprep.subr.mxu0 0.0
  %2645 = vmatpush1.msra.mxu0 0.0
  %2646 = vmatprep.subr.mxu0 0.0
  %2647 = vmatpush1.msra.mxu0 0.0
  %2648 = vmatprep.subr.mxu0 0.0
  %2649 = vmatpush1.msra.mxu0 0.0
  %2650 = vmatprep.subr.mxu0 0.0
  %2651 = vmatpush1.msra.mxu0 0.0
  %2652 = vmatprep.subr.mxu0 0.0
  %2653 = vmatpush1.msra.mxu0 0.0
  %2654 = vmatprep.subr.mxu0 0.0
  %2655 = vmatpush1.msra.mxu0 0.0
  %2656 = vmatprep.subr.mxu0 0.0
  %2657 = vmatpush1.msra.mxu0 0.0
  %2658 = vmatprep.subr.mxu0 0.0
  %2659 = vmatpush1.msra.mxu0 0.0
  %2660 = vmatprep.subr.mxu0 0.0
  %2661 = vmatpush1.msra.mxu0 0.0
  %2662 = vmatprep.subr.mxu0 0.0
  %2663 = vmatpush1.msra.mxu0 0.0
  %2664 = vmatprep.subr.mxu0 0.0
  %2665 = vmatpush1.msra.mxu0 0.0
  %2666 = vmatprep.subr.mxu0 0.0
  %2667 = vmatpush1.msra.mxu0 0.0
  %2668 = vmatprep.subr.mxu0 0.0
  %2669 = vmatpush1.msra.mxu0 0.0
  %2670 = vmatprep.subr.mxu0 0.0
  %2671 = vmatpush1.msra.mxu0 0.0
  %2672 = vmatprep.mubr.f32.mxu0 0.0
  %2673 = vmatmul.mubr.f32.gmra.mrb[0].mxu0 %v2585
  %v2674 = vpop.f32.mrb[0].mxu0
  %v2675 = vadd.f32 %v2583, %v2674
  %v2676 = vpop.f32.mrb[0].mxu0
  %2677 = vmatprep.mubr.f32.mxu0 0.0
  %2678 = vmatmul.mubr.f32.gmra.mrb[0].mxu0 %v2588
  %v2679 = vpop.f32.mrb[0].mxu0
  %v2680 = vadd.f32 %v2583, %v2679
  %v2681 = vpop.f32.mrb[0].mxu0
  %2682 = vmatprep.mubr.f32.mxu0 0.0
  %2683 = vmatmul.mubr.f32.gmra.mrb[0].mxu0 %v2591
  %v2684 = vpop.f32.mrb[0].mxu0
  %v2685 = vadd.f32 %v2583, %v2684
  %v2686 = vpop.f32.mrb[0].mxu0
  %2687 = vmatprep.mubr.f32.mxu0 0.0
  %2688 = vmatmul.mubr.f32.gmra.mrb[0].mxu0 %v2594
  %v2689 = vpop.f32.mrb[0].mxu0
  %v2690 = vadd.f32 %v2583, %v2689
  %v2691 = vpop.f32.mrb[0].mxu0
  %2692 = vmatprep.mubr.f32.mxu0 0.0
  %2693 = vmatmul.mubr.f32.gmra.mrb[0].mxu0 %v2597
  %v2694 = vpop.f32.mrb[0].mxu0
  %v2695 = vadd.f32 %v2583, %v2694
  %v2696 = vpop.f32.mrb[0].mxu0
  %2697 = vmatprep.mubr.f32.mxu0 0.0
  %2698 = vmatmul.mubr.f32.gmra.mrb[0].mxu0 %v2600
  %v2699 = vpop.f32.mrb[0].mxu0
  %v2700 = vadd.f32 %v2583, %v2699
  %v2701 = vpop.f32.mrb[0].mxu0
  %2702 = vmatprep.mubr.f32.mxu0 0.0
  %2703 = vmatmul.mubr.f32.gmra.mrb[0].mxu0 %v2603
  %v2704 = vpop.f32.mrb[0].mxu0
  %v2705 = vadd.f32 %v2583, %v2704
  %v2706 = vpop.f32.mrb[0].mxu0
  %2707 = vmatprep.mubr.f32.mxu0 0.0
  %2708 = vmatmul.mubr.f32.gmra.mrb[0].mxu0 %v2606
  %v2709 = vpop.f32.mrb[0].mxu0
  %v2710 = vadd.f32 %v2583, %v2709
  %v2711 = vpop.f32.mrb[0].mxu0
  %2712 = vdwg.mxu0
  %v2713 = vtanh.pop %v2675
  %v2714 = vtanh.pop %v2680
  %v2715 = vtanh.pop %v2685
  %v2716 = vtanh.pop %v2690
  %v2717 = vtanh.pop %v2695
  %v2718 = vtanh.pop %v2700
  %v2719 = vtanh.pop %v2705
  %v2720 = vtanh.pop %v2710
  %v2721 = vld [vmem:[%s2 + $0x228] sm:$0xff]
  %v2722 = vld [vmem:[%s2 + $0x230] sm:$0xff]
  %v2723 = vld [vmem:[%s3 + $0x14] sm:$0x1]
  %v2724 = vlaneseq
  %v2725 = vshrl.u32 %v2724, 7
  %v2726 = vsub.s32 0, %v2725
  %v2727 = vrot.slane %v2723, %v2726
  %v2729 = vsel %vm2326, %v2713, 0
  %v2732 = vsel %vm2326, %v2714, 0
  %v2735 = vsel %vm2326, %v2715, 0
  %v2738 = vsel %vm2326, %v2716, 0
  %v2741 = vsel %vm2326, %v2717, 0
  %v2744 = vsel %vm2326, %v2718, 0
  %v2747 = vsel %vm2326, %v2719, 0
  %v2750 = vsel %vm2326, %v2720, 0
  %2752 = vmatprep.subr.mxu0 0.0
  %2753 = vmatpush1.msra.mxu0 %v2721
  %2754 = vmatprep.subr.mxu0 0.0
  %2755 = vmatpush1.msra.mxu0 %v2722
  %2756 = vmatprep.subr.mxu0 0.0
  %2757 = vmatpush1.msra.mxu0 0.0
  %2758 = vmatprep.subr.mxu0 0.0
  %2759 = vmatpush1.msra.mxu0 0.0
  %2760 = vmatprep.subr.mxu0 0.0
  %2761 = vmatpush1.msra.mxu0 0.0
  %2762 = vmatprep.subr.mxu0 0.0
  %2763 = vmatpush1.msra.mxu0 0.0
  %2764 = vmatprep.subr.mxu0 0.0
  %2765 = vmatpush1.msra.mxu0 0.0
  %2766 = vmatprep.subr.mxu0 0.0
  %2767 = vmatpush1.msra.mxu0 0.0
  %2768 = vmatprep.subr.mxu0 0.0
  %2769 = vmatpush1.msra.mxu0 0.0
  %2770 = vmatprep.subr.mxu0 0.0
  %2771 = vmatpush1.msra.mxu0 0.0
  %2772 = vmatprep.subr.mxu0 0.0
  %2773 = vmatpush1.msra.mxu0 0.0
  %2774 = vmatprep.subr.mxu0 0.0
  %2775 = vmatpush1.msra.mxu0 0.0
  %2776 = vmatprep.subr.mxu0 0.0
  %2777 = vmatpush1.msra.mxu0 0.0
  %2778 = vmatprep.subr.mxu0 0.0
  %2779 = vmatpush1.msra.mxu0 0.0
  %2780 = vmatprep.subr.mxu0 0.0
  %2781 = vmatpush1.msra.mxu0 0.0
  %2782 = vmatprep.subr.mxu0 0.0
  %2783 = vmatpush1.msra.mxu0 0.0
  %2784 = vmatprep.subr.mxu0 0.0
  %2785 = vmatpush1.msra.mxu0 0.0
  %2786 = vmatprep.subr.mxu0 0.0
  %2787 = vmatpush1.msra.mxu0 0.0
  %2788 = vmatprep.subr.mxu0 0.0
  %2789 = vmatpush1.msra.mxu0 0.0
  %2790 = vmatprep.subr.mxu0 0.0
  %2791 = vmatpush1.msra.mxu0 0.0
  %2792 = vmatprep.subr.mxu0 0.0
  %2793 = vmatpush1.msra.mxu0 0.0
  %2794 = vmatprep.subr.mxu0 0.0
  %2795 = vmatpush1.msra.mxu0 0.0
  %2796 = vmatprep.subr.mxu0 0.0
  %2797 = vmatpush1.msra.mxu0 0.0
  %2798 = vmatprep.subr.mxu0 0.0
  %2799 = vmatpush1.msra.mxu0 0.0
  %2800 = vmatprep.subr.mxu0 0.0
  %2801 = vmatpush1.msra.mxu0 0.0
  %2802 = vmatprep.subr.mxu0 0.0
  %2803 = vmatpush1.msra.mxu0 0.0
  %2804 = vmatprep.subr.mxu0 0.0
  %2805 = vmatpush1.msra.mxu0 0.0
  %2806 = vmatprep.subr.mxu0 0.0
  %2807 = vmatpush1.msra.mxu0 0.0
  %2808 = vmatprep.subr.mxu0 0.0
  %2809 = vmatpush1.msra.mxu0 0.0
  %2810 = vmatprep.subr.mxu0 0.0
  %2811 = vmatpush1.msra.mxu0 0.0
  %2812 = vmatprep.subr.mxu0 0.0
  %2813 = vmatpush1.msra.mxu0 0.0
  %2814 = vmatprep.subr.mxu0 0.0
  %2815 = vmatpush1.msra.mxu0 0.0
  %2816 = vmatprep.mubr.f32.mxu0 0.0
  %2817 = vmatmul.mubr.f32.gmra.mrb[0].mxu0 %v2729
  %v2818 = vpop.f32.mrb[0].mxu0
  %v2819 = vadd.f32 %v2727, %v2818
  %v2820 = vpop.f32.mrb[0].mxu0
  %2821 = vmatprep.mubr.f32.mxu0 0.0
  %2822 = vmatmul.mubr.f32.gmra.mrb[0].mxu0 %v2732
  %v2823 = vpop.f32.mrb[0].mxu0
  %v2824 = vadd.f32 %v2727, %v2823
  %v2825 = vpop.f32.mrb[0].mxu0
  %2826 = vmatprep.mubr.f32.mxu0 0.0
  %2827 = vmatmul.mubr.f32.gmra.mrb[0].mxu0 %v2735
  %v2828 = vpop.f32.mrb[0].mxu0
  %v2829 = vadd.f32 %v2727, %v2828
  %v2830 = vpop.f32.mrb[0].mxu0
  %2831 = vmatprep.mubr.f32.mxu0 0.0
  %2832 = vmatmul.mubr.f32.gmra.mrb[0].mxu0 %v2738
  %v2833 = vpop.f32.mrb[0].mxu0
  %v2834 = vadd.f32 %v2727, %v2833
  %v2835 = vpop.f32.mrb[0].mxu0
  %2836 = vmatprep.mubr.f32.mxu0 0.0
  %2837 = vmatmul.mubr.f32.gmra.mrb[0].mxu0 %v2741
  %v2838 = vpop.f32.mrb[0].mxu0
  %v2839 = vadd.f32 %v2727, %v2838
  %v2840 = vpop.f32.mrb[0].mxu0
  %2841 = vmatprep.mubr.f32.mxu0 0.0
  %2842 = vmatmul.mubr.f32.gmra.mrb[0].mxu0 %v2744
  %v2843 = vpop.f32.mrb[0].mxu0
  %v2844 = vadd.f32 %v2727, %v2843
  %v2845 = vpop.f32.mrb[0].mxu0
  %2846 = vmatprep.mubr.f32.mxu0 0.0
  %2847 = vmatmul.mubr.f32.gmra.mrb[0].mxu0 %v2747
  %v2848 = vpop.f32.mrb[0].mxu0
  %v2849 = vadd.f32 %v2727, %v2848
  %v2850 = vpop.f32.mrb[0].mxu0
  %2851 = vmatprep.mubr.f32.mxu0 0.0
  %2852 = vmatmul.mubr.f32.gmra.mrb[0].mxu0 %v2750
  %v2853 = vpop.f32.mrb[0].mxu0
  %v2854 = vadd.f32 %v2727, %v2853
  %v2855 = vpop.f32.mrb[0].mxu0
  %2856 = vdwg.mxu0
  %2857 = vst.msk [vmem:[%s4] sm:$0xff] %vm2326, %v2713
  %2858 = vst.msk [vmem:[%s4 + $0x8] sm:$0xff] %vm2326, %v2714
  %2859 = vst.msk [vmem:[%s4 + $0x10] sm:$0xff] %vm2326, %v2715
  %2860 = vst.msk [vmem:[%s4 + $0x18] sm:$0xff] %vm2326, %v2716
  %2861 = vst.msk [vmem:[%s4 + $0x20] sm:$0xff] %vm2326, %v2717
  %2862 = vst.msk [vmem:[%s4 + $0x28] sm:$0xff] %vm2326, %v2718
  %2863 = vst.msk [vmem:[%s4 + $0x30] sm:$0xff] %vm2326, %v2719
  %2864 = vst.msk [vmem:[%s4 + $0x38] sm:$0xff] %vm2326, %v2720
  %2873 = vrot.lane.b32.xlu0 %v2819, 16
  %v2874 = vpop.permute.xlu0 %2873
  %2875 = vrot.lane.b32.xlu0 %v2824, 16
  %v2876 = vpop.permute.xlu0 %2875
  %2877 = vrot.lane.b32.xlu0 %v2829, 16
  %v2878 = vpop.permute.xlu0 %2877
  %2879 = vrot.lane.b32.xlu0 %v2834, 16
  %v2880 = vpop.permute.xlu0 %2879
  %2881 = vrot.lane.b32.xlu0 %v2839, 16
  %v2882 = vpop.permute.xlu0 %2881
  %2883 = vrot.lane.b32.xlu0 %v2844, 16
  %v2884 = vpop.permute.xlu0 %2883
  %2885 = vrot.lane.b32.xlu0 %v2849, 16
  %v2886 = vpop.permute.xlu0 %2885
  %2887 = vrot.lane.b32.xlu0 %v2854, 16
  %v2888 = vpop.permute.xlu0 %2887
  %vm2897 = vcmask 195712
  %2898 = vst.msk [vmem:[%s4] sm:$0xff] %vm2897, %v2874
  %2899 = vst.msk [vmem:[%s4 + $0x8] sm:$0xff] %vm2897, %v2876
  %2900 = vst.msk [vmem:[%s4 + $0x10] sm:$0xff] %vm2897, %v2878
  %2901 = vst.msk [vmem:[%s4 + $0x18] sm:$0xff] %vm2897, %v2880
  %2902 = vst.msk [vmem:[%s4 + $0x20] sm:$0xff] %vm2897, %v2882
  %2903 = vst.msk [vmem:[%s4 + $0x28] sm:$0xff] %vm2897, %v2884
  %2904 = vst.msk [vmem:[%s4 + $0x30] sm:$0xff] %vm2897, %v2886
  %2905 = vst.msk [vmem:[%s4 + $0x38] sm:$0xff] %vm2897, %v2888
  // Predicated region
  $region18: #{pch_forward.1} parent=0 // pred_check
    _
  $region19: #{pch_forward.1} parent=0 // pred_check_branch
    %2907 = sbr.rel (0) target = $region21
  $region20: #{pch_forward.1} parent=0 // pred_region
    _
  $region21: #{pch_forward.1} parent=0 // pred_fallthru
    _
  // Predicated region
  $region22: #{pch_forward.1} parent=0 // pred_check
    _
  $region23: #{pch_forward.1} parent=0 // pred_check_branch
    %2909 = sbr.rel (0) target = $region25
  $region24: #{pch_forward.1} parent=0 // pred_region
    _
  $region25: #{pch_forward.1} parent=0 // pred_fallthru
    _

</llo_original>
